<compile_context>
chip_gen: v5e
topology: v5e:2x2
jax: 0.10.0
libtpu: 0.0.40
codegen_flags: <defaults>
</compile_context>

<pallas_src>
import jax
import jax.numpy as jnp
from jax.experimental import pallas as pl
from jax.experimental.pallas import tpu as pltpu

_BN_EPS = 1e-5
# Pooled positions per tile (lane axis).  1024 keeps the worst-stage working
# set (patch double-buffer + conv stash + output double-buffer) under the
# default scoped-VMEM limit on every generation.  Tuning per review: v5e/v6e
# can raise to 2048-4096 with vmem_limit_bytes; keep <= ~2048 on v7x (64 MiB).
_MT_TARGET = 1024


def _round_up(a, b):
    return (a + b - 1) // b * b


def _make_stage_kernel(m_true, mt, cout):
    """Two-phase stage kernel (grid = (BN phase, position tile)).

    Refs:
      p_ref:     (1, K, 4*mt) bf16 im2col patches (corners concatenated on lanes)
      w_ref:     (Cout, K)    bf16 conv weights (K = 9*Cin), VMEM-resident
      g_ref:     (Cout, 1)    f32 BN gamma, VMEM-resident
      b_ref:     (Cout, 1)    f32 BN beta, VMEM-resident
      o_ref:     (Cout, mt)   f32 pooled output tile (positions on lanes)
      stash_ref: (T, Cout, 4*mt) f32 conv stash (written ph0, read ph1)
      sum_ref / ssq_ref: (Cout, 128) f32 per-lane partial batch stats
      scale_ref / shift_ref: (Cout, 1) f32 folded BN scale / shift
    """
    inv_count = 1.0 / float(4 * m_true)   # stats over all N*H*W conv outputs
    c4 = 4 * mt
    n_chunks = c4 // 128

    def kernel(p_ref, w_ref, g_ref, b_ref, o_ref,
               stash_ref, sum_ref, ssq_ref, scale_ref, shift_ref):
        ph = pl.program_id(0)
        t = pl.program_id(1)

        @pl.when(jnp.logical_and(ph == 0, t == 0))
        def _():
            sum_ref[...] = jnp.zeros_like(sum_ref)
            ssq_ref[...] = jnp.zeros_like(ssq_ref)

        @pl.when(ph == 0)
        def _():
            # One MXU matmul covering all 4 pooling corners of this tile.
            conv = jnp.dot(w_ref[...], p_ref[0],
                           preferred_element_type=jnp.float32)      # (Cout, 4*mt)
            stash_ref[t] = conv                                      # reused in phase 1
            # Per-lane partial stats: pure VPU adds; the cross-lane reduction
            # is deferred to a single XLU pass at (ph==1, t==0).
            s = sum_ref[...]
            q = ssq_ref[...]
            for g in range(n_chunks):
                blk = conv[:, g * 128:(g + 1) * 128]
                s = s + blk
                q = q + blk * blk
            sum_ref[...] = s
            ssq_ref[...] = q

        @pl.when(jnp.logical_and(ph == 1, t == 0))
        def _():
            # Finalize batch stats (single-pass E[x^2]-mean^2) and fold BN into
            # a per-channel scale/shift, once for all phase-1 tiles.
            mean = jnp.sum(sum_ref[...], axis=1, keepdims=True) * inv_count
            ex2 = jnp.sum(ssq_ref[...], axis=1, keepdims=True) * inv_count
            var = jnp.maximum(ex2 - mean * mean, 0.0)
            scale = g_ref[...] * jax.lax.rsqrt(var + _BN_EPS)
            scale_ref[...] = scale
            shift_ref[...] = b_ref[...] - mean * scale

        @pl.when(ph == 1)
        def _():
            conv = stash_ref[t]                                      # (Cout, 4*mt)
            scale = scale_ref[...]
            shift = shift_ref[...]
            mx = None
            av = None
            for k in range(4):                                       # 2x2 pool corners
                yk = jnp.maximum(conv[:, k * mt:(k + 1) * mt] * scale + shift, 0.0)
                mx = yk if mx is None else jnp.maximum(mx, yk)
                av = yk if av is None else av + yk
            o_ref[...] = mx + av * 0.25                              # maxpool + avgpool

    return kernel


def _im2col_corners(x_chw, mt, m_pad):
    """3x3/pad-1 im2col grouped by 2x2 pooling corner.

    x_chw: (Cin, N, H, W) -> (T, K, 4*mt) bf16 patches, K = 9*Cin, position
    tiles on the leading axis so each BlockSpec block is one dense DMA.
    """
    c, n, h, w = x_chw.shape
    h2, w2 = h // 2, w // 2
    m = n * h2 * w2
    k = 9 * c
    x = x_chw.astype(jnp.bfloat16)                      # bf16-first: 9x blob in bf16
    xp = jnp.pad(x, ((0, 0), (0, 0), (1, 1), (1, 1)))
    cols = [xp[:, :, dy:dy + h, dx:dx + w] for dy in range(3) for dx in range(3)]
    pat = jnp.stack(cols, axis=0).reshape(k, n, h2, 2, w2, 2)
    pat = pat.transpose(3, 5, 0, 1, 2, 4).reshape(4, k, m)          # (corner, K, M)
    pat = jnp.pad(pat, ((0, 0), (0, 0), (0, m_pad - m)))            # zero positions
    t = m_pad // mt
    return pat.reshape(4, k, t, mt).transpose(2, 1, 0, 3).reshape(t, k, 4 * mt)


def _stage(x_chw, w, gamma, beta):
    """One DepthNet stage.  x_chw: (Cin, N, H, W); w: (Cout, Cin, 3, 3) PyTorch
    layout.  Returns the pooled activation as (Cout, N, H/2, W/2)."""
    cout, cin = w.shape[0], w.shape[1]
    _, n, h, wd = x_chw.shape
    h2, w2 = h // 2, wd // 2
    m = n * h2 * w2
    k = 9 * cin
    mt = min(_round_up(m, 128), _MT_TARGET)
    m_pad = _round_up(m, mt)
    num_tiles = m_pad // mt
    c4 = 4 * mt

    patches = _im2col_corners(x_chw, mt, m_pad)                      # (T, K, 4*mt) bf16
    # Match the im2col feature order [(ky,kx) row-major, then Cin].
    w2d = jnp.transpose(w, (0, 2, 3, 1)).reshape(cout, k).astype(jnp.bfloat16)

    # Conv stash VMEM footprint = Cout * 4*M_pad * 4 B (<= ~8.4 MB even for a
    # 2x512x512 input); for much larger inputs switch it to bf16 or HBM.
    out = pl.pallas_call(
        _make_stage_kernel(m, mt, cout),
        out_shape=jax.ShapeDtypeStruct((cout, m_pad), jnp.float32),
        grid_spec=pltpu.PrefetchScalarGridSpec(
            num_scalar_prefetch=0,
            grid=(2, num_tiles),                                     # (BN phase, tile)
            in_specs=[
                # Phase 0 streams tile t.  Phase 1 keeps mapping to the last
                # phase-0 block, so no further patch DMAs are issued (phase 1
                # reads the VMEM conv stash instead).
                pl.BlockSpec((1, k, c4),
                             lambda ph, t: (t * (1 - ph) + (num_tiles - 1) * ph, 0, 0)),
                pl.BlockSpec((cout, k), lambda ph, t: (0, 0)),       # VMEM-resident
                pl.BlockSpec((cout, 1), lambda ph, t: (0, 0)),       # VMEM-resident
                pl.BlockSpec((cout, 1), lambda ph, t: (0, 0)),       # VMEM-resident
            ],
            # Phase 0 never writes output; block (0,0) stays resident until its
            # only write at (phase=1, tile=0) and is flushed on the next step.
            out_specs=pl.BlockSpec((cout, mt), lambda ph, t: (0, ph * t)),
            scratch_shapes=[
                pltpu.VMEM((num_tiles, cout, c4), jnp.float32),      # conv stash
                pltpu.VMEM((cout, 128), jnp.float32),                # per-lane sum
                pltpu.VMEM((cout, 128), jnp.float32),                # per-lane sum sq
                pltpu.VMEM((cout, 1), jnp.float32),                  # folded BN scale
                pltpu.VMEM((cout, 1), jnp.float32),                  # folded BN shift
            ],
        ),
        compiler_params=pltpu.CompilerParams(
            dimension_semantics=("arbitrary", "arbitrary")),
    )(
        patches,
        w2d,
        gamma.reshape(cout, 1).astype(jnp.float32),
        beta.reshape(cout, 1).astype(jnp.float32),
    )
    return out[:, :m].reshape(cout, n, h2, w2)


def init_depthnet_params(key, input_dim=1, inter_dim=(4, 16, 32, 64)):
    """Synthetic params matching DepthNet.initialize(): conv weights ~
    kaiming_normal(fan_in), conv bias = 0, BN gamma = 1, beta = 0."""
    dims = (input_dim,) + tuple(inter_dim)
    params = []
    for i in range(4):
        cin, cout = dims[i], dims[i + 1]
        key, sub = jax.random.split(key)
        fan_in = cin * 3 * 3
        std = (2.0 / fan_in) ** 0.5
        w = jax.random.normal(sub, (cout, cin, 3, 3), jnp.float32) * std
        b = jnp.zeros((cout,), jnp.float32)
        gamma = jnp.ones((cout,), jnp.float32)
        beta = jnp.zeros((cout,), jnp.float32)
        params.append((w, b, gamma, beta))
    return params


def depthnet_forward(dp_nchw, params):
    """dp_nchw: (N, Cin, H, W).  Returns [feat0..feat3] in NCHW like PyTorch."""
    x = jnp.transpose(dp_nchw, (1, 0, 2, 3)).astype(jnp.float32)    # (C, N, H, W)
    feats = []
    for (w, _b, gamma, beta) in params:
        # _b (conv bias) is zero-initialized and cancelled by train-mode BN.
        x = _stage(x, w, gamma, beta)                               # (Cout, N, H2, W2)
        feats.append(jnp.transpose(x, (1, 0, 2, 3)))                # NCHW output
    return feats


def _ref_forward(dp_nchw, params):
    """Pure-JAX f32 reference of DepthNet.forward (train-mode BatchNorm)."""
    x = dp_nchw.astype(jnp.float32)
    feats = []
    for (w, b, gamma, beta) in params:
        y = jax.lax.conv_general_dilated(
            x, w, window_strides=(1, 1), padding=((1, 1), (1, 1)),
            dimension_numbers=("NCHW", "OIHW", "NCHW"))
        y = y + b.reshape(1, -1, 1, 1)
        mean = jnp.mean(y, axis=(0, 2, 3), keepdims=True)
        var = jnp.var(y, axis=(0, 2, 3), keepdims=True)             # biased, like BN
        y = (y - mean) * jax.lax.rsqrt(var + _BN_EPS)
        y = y * gamma.reshape(1, -1, 1, 1) + beta.reshape(1, -1, 1, 1)
        y = jnp.maximum(y, 0.0)
        nb, c, h, wd = y.shape
        yb = y.reshape(nb, c, h // 2, 2, wd // 2, 2)
        y = jnp.max(yb, axis=(3, 5)) + jnp.mean(yb, axis=(3, 5))
        feats.append(y)
        x = y
    return feats


if __name__ == "__main__":
    key = jax.random.PRNGKey(0)
    k_param, k_in = jax.random.split(key)
    params = init_depthnet_params(k_param, input_dim=1, inter_dim=(4, 16, 32, 64))

    # Small input consistent with the module: batch=2, 1 depth channel, 16x16.
    dp = jax.random.normal(k_in, (2, 1, 16, 16), jnp.float32)

    feats = jax.jit(depthnet_forward)(dp, params)
    feats = [jax.block_until_ready(f) for f in feats]

    expected = [(2, 4, 8, 8), (2, 16, 4, 4), (2, 32, 2, 2), (2, 64, 1, 1)]
    assert [tuple(f.shape) for f in feats] == expected, [f.shape for f in feats]
    assert all(bool(jnp.all(jnp.isfinite(f))) for f in feats)

    # Numerical check against a pure-JAX f32 reference.  Stages 0-1 have >=32
    # samples/channel for the batch statistics, so the only error source is the
    # bf16 MXU inputs; stages 2-3 (8 and 2 samples/channel) have ill-conditioned
    # batch stats where tiny perturbations legitimately flip near-equal values,
    # so they are only checked for shape/finiteness above.
    ref = _ref_forward(dp, params)
    err0 = float(jnp.max(jnp.abs(feats[0] - ref[0])))
    err1 = float(jnp.max(jnp.abs(feats[1] - ref[1])))
    assert err0 < 0.10, err0
    assert err1 < 0.25, err1

    print("KERNEL_OK")
</pallas_src>

<mosaic_0001>
module attributes {stable_mosaic.version = 11 : i64} {
  func.func @kernel(%arg0: i32, %arg1: i32, %arg2: memref<1x9x512xbf16, #tpu.memory_space<vmem>>, %arg3: memref<4x9xbf16, #tpu.memory_space<vmem>>, %arg4: memref<4x1xf32, #tpu.memory_space<vmem>>, %arg5: memref<4x1xf32, #tpu.memory_space<vmem>>, %arg6: memref<4x128xf32, #tpu.memory_space<vmem>>, %arg7: memref<1x4x512xf32, #tpu.memory_space<vmem>>, %arg8: memref<4x128xf32, #tpu.memory_space<vmem>>, %arg9: memref<4x128xf32, #tpu.memory_space<vmem>>, %arg10: memref<4x1xf32, #tpu.memory_space<vmem>>, %arg11: memref<4x1xf32, #tpu.memory_space<vmem>>) attributes {dimension_semantics = [#tpu.dimension_semantics<arbitrary>, #tpu.dimension_semantics<arbitrary>], iteration_bounds = array<i64: 2, 1>, scalar_prefetch = 0 : i64, scratch_operands = 5 : i64, tpu.core_type = #tpu.core_type<tc>, window_params = [{transform_indices = @transform_0, window_bounds = array<i64: 1, 9, 512>}, {pipeline_mode = #tpu.pipeline_mode<synchronous>, transform_indices = @transform_1, window_bounds = array<i64: 4, 9>}, {pipeline_mode = #tpu.pipeline_mode<synchronous>, transform_indices = @transform_2, window_bounds = array<i64: 4, 1>}, {pipeline_mode = #tpu.pipeline_mode<synchronous>, transform_indices = @transform_3, window_bounds = array<i64: 4, 1>}, {transform_indices = @transform_4, window_bounds = array<i64: 4, 128>}]} {
    %c0_i32 = arith.constant 0 : i32
    %0 = arith.cmpi eq, %arg0, %c0_i32 : i32
    %c0_i32_0 = arith.constant 0 : i32
    %1 = arith.cmpi eq, %arg1, %c0_i32_0 : i32
    %2 = arith.andi %0, %1 : i1
    %3 = arith.extui %2 : i1 to i32
    %c0_i32_1 = arith.constant 0 : i32
    %4 = arith.cmpi ne, %3, %c0_i32_1 : i32
    scf.if %4 {
      %cst = arith.constant 0.000000e+00 : f32
      %16 = vector.broadcast %cst : f32 to vector<4x128xf32>
      %c0 = arith.constant 0 : index
      %c0_8 = arith.constant 0 : index
      %17 = vector.load %arg8[%c0, %c0_8] : memref<4x128xf32, #tpu.memory_space<vmem>>, vector<4x128xf32>
      tpu.vector_store %arg8[%c0, %c0_8], %16 {strides = array<i32>} : memref<4x128xf32, #tpu.memory_space<vmem>>, vector<4x128xf32>,
      %cst_9 = arith.constant 0.000000e+00 : f32
      %18 = vector.broadcast %cst_9 : f32 to vector<4x128xf32>
      %c0_10 = arith.constant 0 : index
      %c0_11 = arith.constant 0 : index
      %19 = vector.load %arg9[%c0_10, %c0_11] : memref<4x128xf32, #tpu.memory_space<vmem>>, vector<4x128xf32>
      tpu.vector_store %arg9[%c0_10, %c0_11], %18 {strides = array<i32>} : memref<4x128xf32, #tpu.memory_space<vmem>>, vector<4x128xf32>,
    } else {
    }
    %c0_i32_2 = arith.constant 0 : i32
    %5 = arith.cmpi eq, %arg0, %c0_i32_2 : i32
    %6 = arith.extui %5 : i1 to i32
    %c0_i32_3 = arith.constant 0 : i32
    %7 = arith.cmpi ne, %6, %c0_i32_3 : i32
    scf.if %7 {
      %c0 = arith.constant 0 : index
      %c0_8 = arith.constant 0 : index
      %16 = vector.load %arg3[%c0, %c0_8] : memref<4x9xbf16, #tpu.memory_space<vmem>>, vector<4x9xbf16>
      %c0_9 = arith.constant 0 : index
      %c0_10 = arith.constant 0 : index
      %c0_11 = arith.constant 0 : index
      %17 = vector.load %arg2[%c0_9, %c0_10, %c0_11] : memref<1x9x512xbf16, #tpu.memory_space<vmem>>, vector<1x9x512xbf16>
      %18 = vector.shape_cast %17 : vector<1x9x512xbf16> to vector<9x512xbf16>
      %cst = arith.constant dense<0.000000e+00> : vector<4x512xf32>
      %19 = tpu.matmul %16, %18, %cst {dimension_numbers = #tpu.dot_dimension_numbers<[1], [0], [0], [1], [0, 0, 1, 1], [], []>} : vector<4x9xbf16>, vector<9x512xbf16>, vector<4x512xf32> -> vector<4x512xf32>
      %20 = arith.index_cast %arg1 : i32 to index
      %c0_12 = arith.constant 0 : index
      %c0_13 = arith.constant 0 : index
      %21 = vector.load %arg7[%20, %c0_12, %c0_13] : memref<1x4x512xf32, #tpu.memory_space<vmem>>, vector<1x4x512xf32>
      %22 = vector.shape_cast %21 : vector<1x4x512xf32> to vector<4x512xf32>
      %23 = vector.shape_cast %19 : vector<4x512xf32> to vector<1x4x512xf32>
      tpu.vector_store %arg7[%20, %c0_12, %c0_13], %23 {strides = array<i32>} : memref<1x4x512xf32, #tpu.memory_space<vmem>>, vector<1x4x512xf32>,
      %c0_14 = arith.constant 0 : index
      %c0_15 = arith.constant 0 : index
      %24 = vector.load %arg8[%c0_14, %c0_15] : memref<4x128xf32, #tpu.memory_space<vmem>>, vector<4x128xf32>
      %c0_16 = arith.constant 0 : index
      %c0_17 = arith.constant 0 : index
      %25 = vector.load %arg9[%c0_16, %c0_17] : memref<4x128xf32, #tpu.memory_space<vmem>>, vector<4x128xf32>
      %26 = vector.extract_strided_slice %19 {offsets = [0, 0], sizes = [4, 128], strides = [1, 1]} : vector<4x512xf32> to vector<4x128xf32>
      %27 = arith.addf %24, %26 : vector<4x128xf32>
      %28 = arith.mulf %26, %26 : vector<4x128xf32>
      %29 = arith.addf %25, %28 : vector<4x128xf32>
      %30 = vector.extract_strided_slice %19 {offsets = [0, 128], sizes = [4, 128], strides = [1, 1]} : vector<4x512xf32> to vector<4x128xf32>
      %31 = arith.addf %27, %30 : vector<4x128xf32>
      %32 = arith.mulf %30, %30 : vector<4x128xf32>
      %33 = arith.addf %29, %32 : vector<4x128xf32>
      %34 = vector.extract_strided_slice %19 {offsets = [0, 256], sizes = [4, 128], strides = [1, 1]} : vector<4x512xf32> to vector<4x128xf32>
      %35 = arith.addf %31, %34 : vector<4x128xf32>
      %36 = arith.mulf %34, %34 : vector<4x128xf32>
      %37 = arith.addf %33, %36 : vector<4x128xf32>
      %38 = vector.extract_strided_slice %19 {offsets = [0, 384], sizes = [4, 128], strides = [1, 1]} : vector<4x512xf32> to vector<4x128xf32>
      %39 = arith.addf %35, %38 : vector<4x128xf32>
      %40 = arith.mulf %38, %38 : vector<4x128xf32>
      %41 = arith.addf %37, %40 : vector<4x128xf32>
      %c0_18 = arith.constant 0 : index
      %c0_19 = arith.constant 0 : index
      %42 = vector.load %arg8[%c0_18, %c0_19] : memref<4x128xf32, #tpu.memory_space<vmem>>, vector<4x128xf32>
      tpu.vector_store %arg8[%c0_18, %c0_19], %39 {strides = array<i32>} : memref<4x128xf32, #tpu.memory_space<vmem>>, vector<4x128xf32>,
      %c0_20 = arith.constant 0 : index
      %c0_21 = arith.constant 0 : index
      %43 = vector.load %arg9[%c0_20, %c0_21] : memref<4x128xf32, #tpu.memory_space<vmem>>, vector<4x128xf32>
      tpu.vector_store %arg9[%c0_20, %c0_21], %41 {strides = array<i32>} : memref<4x128xf32, #tpu.memory_space<vmem>>, vector<4x128xf32>,
    } else {
    }
    %c1_i32 = arith.constant 1 : i32
    %8 = arith.cmpi eq, %arg0, %c1_i32 : i32
    %c0_i32_4 = arith.constant 0 : i32
    %9 = arith.cmpi eq, %arg1, %c0_i32_4 : i32
    %10 = arith.andi %8, %9 : i1
    %11 = arith.extui %10 : i1 to i32
    %c0_i32_5 = arith.constant 0 : i32
    %12 = arith.cmpi ne, %11, %c0_i32_5 : i32
    scf.if %12 {
      %c0 = arith.constant 0 : index
      %c0_8 = arith.constant 0 : index
      %16 = vector.load %arg8[%c0, %c0_8] : memref<4x128xf32, #tpu.memory_space<vmem>>, vector<4x128xf32>
      %cst = arith.constant dense<0.000000e+00> : vector<4xf32>
      %17 = vector.multi_reduction <add>, %16, %cst [1] : vector<4x128xf32> to vector<4xf32>
      %18 = vector.shape_cast %17 : vector<4xf32> to vector<4x1xf32>
      %cst_9 = arith.constant 0.001953125 : f32
      %19 = vector.broadcast %cst_9 : f32 to vector<4x1xf32>
      %20 = arith.mulf %18, %19 : vector<4x1xf32>
      %c0_10 = arith.constant 0 : index
      %c0_11 = arith.constant 0 : index
      %21 = vector.load %arg9[%c0_10, %c0_11] : memref<4x128xf32, #tpu.memory_space<vmem>>, vector<4x128xf32>
      %cst_12 = arith.constant dense<0.000000e+00> : vector<4xf32>
      %22 = vector.multi_reduction <add>, %21, %cst_12 [1] : vector<4x128xf32> to vector<4xf32>
      %23 = vector.shape_cast %22 : vector<4xf32> to vector<4x1xf32>
      %cst_13 = arith.constant 0.001953125 : f32
      %24 = vector.broadcast %cst_13 : f32 to vector<4x1xf32>
      %25 = arith.mulf %23, %24 : vector<4x1xf32>
      %26 = arith.mulf %20, %20 : vector<4x1xf32>
      %27 = arith.subf %25, %26 : vector<4x1xf32>
      %cst_14 = arith.constant 0.000000e+00 : f32
      %28 = vector.broadcast %cst_14 : f32 to vector<4x1xf32>
      %29 = arith.maximumf %27, %28 : vector<4x1xf32>
      %c0_15 = arith.constant 0 : index
      %c0_16 = arith.constant 0 : index
      %30 = vector.load %arg4[%c0_15, %c0_16] : memref<4x1xf32, #tpu.memory_space<vmem>>, vector<4x1xf32>
      %cst_17 = arith.constant 9.99999974E-6 : f32
      %31 = vector.broadcast %cst_17 : f32 to vector<4x1xf32>
      %32 = arith.addf %29, %31 : vector<4x1xf32>
      %33 = math.rsqrt %32 : vector<4x1xf32>
      %34 = arith.mulf %30, %33 : vector<4x1xf32>
      %c0_18 = arith.constant 0 : index
      %c0_19 = arith.constant 0 : index
      %35 = vector.load %arg10[%c0_18, %c0_19] : memref<4x1xf32, #tpu.memory_space<vmem>>, vector<4x1xf32>
      tpu.vector_store %arg10[%c0_18, %c0_19], %34 {strides = array<i32>} : memref<4x1xf32, #tpu.memory_space<vmem>>, vector<4x1xf32>,
      %c0_20 = arith.constant 0 : index
      %c0_21 = arith.constant 0 : index
      %36 = vector.load %arg5[%c0_20, %c0_21] : memref<4x1xf32, #tpu.memory_space<vmem>>, vector<4x1xf32>
      %37 = arith.mulf %20, %34 : vector<4x1xf32>
      %38 = arith.subf %36, %37 : vector<4x1xf32>
      %c0_22 = arith.constant 0 : index
      %c0_23 = arith.constant 0 : index
      %39 = vector.load %arg11[%c0_22, %c0_23] : memref<4x1xf32, #tpu.memory_space<vmem>>, vector<4x1xf32>
      tpu.vector_store %arg11[%c0_22, %c0_23], %38 {strides = array<i32>} : memref<4x1xf32, #tpu.memory_space<vmem>>, vector<4x1xf32>,
    } else {
    }
    %c1_i32_6 = arith.constant 1 : i32
    %13 = arith.cmpi eq, %arg0, %c1_i32_6 : i32
    %14 = arith.extui %13 : i1 to i32
    %c0_i32_7 = arith.constant 0 : i32
    %15 = arith.cmpi ne, %14, %c0_i32_7 : i32
    scf.if %15 {
      %16 = arith.index_cast %arg1 : i32 to index
      %c0 = arith.constant 0 : index
      %c0_8 = arith.constant 0 : index
      %17 = vector.load %arg7[%16, %c0, %c0_8] : memref<1x4x512xf32, #tpu.memory_space<vmem>>, vector<1x4x512xf32>
      %18 = vector.shape_cast %17 : vector<1x4x512xf32> to vector<4x512xf32>
      %c0_9 = arith.constant 0 : index
      %c0_10 = arith.constant 0 : index
      %19 = vector.load %arg10[%c0_9, %c0_10] : memref<4x1xf32, #tpu.memory_space<vmem>>, vector<4x1xf32>
      %c0_11 = arith.constant 0 : index
      %c0_12 = arith.constant 0 : index
      %20 = vector.load %arg11[%c0_11, %c0_12] : memref<4x1xf32, #tpu.memory_space<vmem>>, vector<4x1xf32>
      %21 = vector.extract_strided_slice %18 {offsets = [0, 0], sizes = [4, 128], strides = [1, 1]} : vector<4x512xf32> to vector<4x128xf32>
      %22 = vector.broadcast %19 : vector<4x1xf32> to vector<4x128xf32>
      %23 = arith.mulf %21, %22 : vector<4x128xf32>
      %24 = vector.broadcast %20 : vector<4x1xf32> to vector<4x128xf32>
      %25 = arith.addf %23, %24 : vector<4x128xf32>
      %cst = arith.constant 0.000000e+00 : f32
      %26 = vector.broadcast %cst : f32 to vector<4x128xf32>
      %27 = arith.maximumf %25, %26 : vector<4x128xf32>
      %28 = vector.extract_strided_slice %18 {offsets = [0, 128], sizes = [4, 128], strides = [1, 1]} : vector<4x512xf32> to vector<4x128xf32>
      %29 = vector.broadcast %19 : vector<4x1xf32> to vector<4x128xf32>
      %30 = arith.mulf %28, %29 : vector<4x128xf32>
      %31 = vector.broadcast %20 : vector<4x1xf32> to vector<4x128xf32>
      %32 = arith.addf %30, %31 : vector<4x128xf32>
      %cst_13 = arith.constant 0.000000e+00 : f32
      %33 = vector.broadcast %cst_13 : f32 to vector<4x128xf32>
      %34 = arith.maximumf %32, %33 : vector<4x128xf32>
      %35 = arith.maximumf %27, %34 : vector<4x128xf32>
      %36 = arith.addf %27, %34 : vector<4x128xf32>
      %37 = vector.extract_strided_slice %18 {offsets = [0, 256], sizes = [4, 128], strides = [1, 1]} : vector<4x512xf32> to vector<4x128xf32>
      %38 = vector.broadcast %19 : vector<4x1xf32> to vector<4x128xf32>
      %39 = arith.mulf %37, %38 : vector<4x128xf32>
      %40 = vector.broadcast %20 : vector<4x1xf32> to vector<4x128xf32>
      %41 = arith.addf %39, %40 : vector<4x128xf32>
      %cst_14 = arith.constant 0.000000e+00 : f32
      %42 = vector.broadcast %cst_14 : f32 to vector<4x128xf32>
      %43 = arith.maximumf %41, %42 : vector<4x128xf32>
      %44 = arith.maximumf %35, %43 : vector<4x128xf32>
      %45 = arith.addf %36, %43 : vector<4x128xf32>
      %46 = vector.extract_strided_slice %18 {offsets = [0, 384], sizes = [4, 128], strides = [1, 1]} : vector<4x512xf32> to vector<4x128xf32>
      %47 = vector.broadcast %19 : vector<4x1xf32> to vector<4x128xf32>
      %48 = arith.mulf %46, %47 : vector<4x128xf32>
      %49 = vector.broadcast %20 : vector<4x1xf32> to vector<4x128xf32>
      %50 = arith.addf %48, %49 : vector<4x128xf32>
      %cst_15 = arith.constant 0.000000e+00 : f32
      %51 = vector.broadcast %cst_15 : f32 to vector<4x128xf32>
      %52 = arith.maximumf %50, %51 : vector<4x128xf32>
      %53 = arith.maximumf %44, %52 : vector<4x128xf32>
      %54 = arith.addf %45, %52 : vector<4x128xf32>
      %cst_16 = arith.constant 2.500000e-01 : f32
      %55 = vector.broadcast %cst_16 : f32 to vector<4x128xf32>
      %56 = arith.mulf %54, %55 : vector<4x128xf32>
      %57 = arith.addf %53, %56 : vector<4x128xf32>
      %c0_17 = arith.constant 0 : index
      %c0_18 = arith.constant 0 : index
      %58 = vector.load %arg6[%c0_17, %c0_18] : memref<4x128xf32, #tpu.memory_space<vmem>>, vector<4x128xf32>
      tpu.vector_store %arg6[%c0_17, %c0_18], %57 {strides = array<i32>} : memref<4x128xf32, #tpu.memory_space<vmem>>, vector<4x128xf32>,
    } else {
    }
    return
  }
  func.func @transform_0(%arg0: i32, %arg1: i32) -> (i32, i32, i32) {
    %c1_i32 = arith.constant 1 : i32
    %0 = arith.subi %c1_i32, %arg0 : i32
    %1 = arith.muli %arg1, %0 : i32
    %c0_i32 = arith.constant 0 : i32
    %2 = arith.muli %c0_i32, %arg0 : i32
    %3 = arith.addi %1, %2 : i32
    %c0_i32_0 = arith.constant 0 : i32
    %c0_i32_1 = arith.constant 0 : i32
    %c0_i32_2 = arith.constant 0 : i32
    return %3, %c0_i32_0, %c0_i32_1 : i32, i32, i32
  }
  func.func @transform_1(%arg0: i32, %arg1: i32) -> (i32, i32) {
    %c0_i32 = arith.constant 0 : i32
    %c0_i32_0 = arith.constant 0 : i32
    %c0_i32_1 = arith.constant 0 : i32
    return %c0_i32, %c0_i32_0 : i32, i32
  }
  func.func @transform_2(%arg0: i32, %arg1: i32) -> (i32, i32) {
    %c0_i32 = arith.constant 0 : i32
    %c0_i32_0 = arith.constant 0 : i32
    %c0_i32_1 = arith.constant 0 : i32
    return %c0_i32, %c0_i32_0 : i32, i32
  }
  func.func @transform_3(%arg0: i32, %arg1: i32) -> (i32, i32) {
    %c0_i32 = arith.constant 0 : i32
    %c0_i32_0 = arith.constant 0 : i32
    %c0_i32_1 = arith.constant 0 : i32
    return %c0_i32, %c0_i32_0 : i32, i32
  }
  func.func @transform_4(%arg0: i32, %arg1: i32) -> (i32, i32) {
    %0 = arith.muli %arg0, %arg1 : i32
    %c0_i32 = arith.constant 0 : i32
    %c0_i32_0 = arith.constant 0 : i32
    return %c0_i32, %0 : i32, i32
  }
}

module attributes {stable_mosaic.version = 11 : i64} {
  func.func @kernel(%arg0: i32, %arg1: i32, %arg2: memref<1x36x512xbf16, #tpu.memory_space<vmem>>, %arg3: memref<16x36xbf16, #tpu.memory_space<vmem>>, %arg4: memref<16x1xf32, #tpu.memory_space<vmem>>, %arg5: memref<16x1xf32, #tpu.memory_space<vmem>>, %arg6: memref<16x128xf32, #tpu.memory_space<vmem>>, %arg7: memref<1x16x512xf32, #tpu.memory_space<vmem>>, %arg8: memref<16x128xf32, #tpu.memory_space<vmem>>, %arg9: memref<16x128xf32, #tpu.memory_space<vmem>>, %arg10: memref<16x1xf32, #tpu.memory_space<vmem>>, %arg11: memref<16x1xf32, #tpu.memory_space<vmem>>) attributes {dimension_semantics = [#tpu.dimension_semantics<arbitrary>, #tpu.dimension_semantics<arbitrary>], iteration_bounds = array<i64: 2, 1>, scalar_prefetch = 0 : i64, scratch_operands = 5 : i64, tpu.core_type = #tpu.core_type<tc>, window_params = [{transform_indices = @transform_0, window_bounds = array<i64: 1, 36, 512>}, {pipeline_mode = #tpu.pipeline_mode<synchronous>, transform_indices = @transform_1, window_bounds = array<i64: 16, 36>}, {pipeline_mode = #tpu.pipeline_mode<synchronous>, transform_indices = @transform_2, window_bounds = array<i64: 16, 1>}, {pipeline_mode = #tpu.pipeline_mode<synchronous>, transform_indices = @transform_3, window_bounds = array<i64: 16, 1>}, {transform_indices = @transform_4, window_bounds = array<i64: 16, 128>}]} {
    %c0_i32 = arith.constant 0 : i32
    %0 = arith.cmpi eq, %arg0, %c0_i32 : i32
    %c0_i32_0 = arith.constant 0 : i32
    %1 = arith.cmpi eq, %arg1, %c0_i32_0 : i32
    %2 = arith.andi %0, %1 : i1
    %3 = arith.extui %2 : i1 to i32
    %c0_i32_1 = arith.constant 0 : i32
    %4 = arith.cmpi ne, %3, %c0_i32_1 : i32
    scf.if %4 {
      %cst = arith.constant 0.000000e+00 : f32
      %16 = vector.broadcast %cst : f32 to vector<16x128xf32>
      %c0 = arith.constant 0 : index
      %c0_8 = arith.constant 0 : index
      %17 = vector.load %arg8[%c0, %c0_8] : memref<16x128xf32, #tpu.memory_space<vmem>>, vector<16x128xf32>
      tpu.vector_store %arg8[%c0, %c0_8], %16 {strides = array<i32>} : memref<16x128xf32, #tpu.memory_space<vmem>>, vector<16x128xf32>,
      %cst_9 = arith.constant 0.000000e+00 : f32
      %18 = vector.broadcast %cst_9 : f32 to vector<16x128xf32>
      %c0_10 = arith.constant 0 : index
      %c0_11 = arith.constant 0 : index
      %19 = vector.load %arg9[%c0_10, %c0_11] : memref<16x128xf32, #tpu.memory_space<vmem>>, vector<16x128xf32>
      tpu.vector_store %arg9[%c0_10, %c0_11], %18 {strides = array<i32>} : memref<16x128xf32, #tpu.memory_space<vmem>>, vector<16x128xf32>,
    } else {
    }
    %c0_i32_2 = arith.constant 0 : i32
    %5 = arith.cmpi eq, %arg0, %c0_i32_2 : i32
    %6 = arith.extui %5 : i1 to i32
    %c0_i32_3 = arith.constant 0 : i32
    %7 = arith.cmpi ne, %6, %c0_i32_3 : i32
    scf.if %7 {
      %c0 = arith.constant 0 : index
      %c0_8 = arith.constant 0 : index
      %16 = vector.load %arg3[%c0, %c0_8] : memref<16x36xbf16, #tpu.memory_space<vmem>>, vector<16x36xbf16>
      %c0_9 = arith.constant 0 : index
      %c0_10 = arith.constant 0 : index
      %c0_11 = arith.constant 0 : index
      %17 = vector.load %arg2[%c0_9, %c0_10, %c0_11] : memref<1x36x512xbf16, #tpu.memory_space<vmem>>, vector<1x36x512xbf16>
      %18 = vector.shape_cast %17 : vector<1x36x512xbf16> to vector<36x512xbf16>
      %cst = arith.constant dense<0.000000e+00> : vector<16x512xf32>
      %19 = tpu.matmul %16, %18, %cst {dimension_numbers = #tpu.dot_dimension_numbers<[1], [0], [0], [1], [0, 0, 1, 1], [], []>} : vector<16x36xbf16>, vector<36x512xbf16>, vector<16x512xf32> -> vector<16x512xf32>
      %20 = arith.index_cast %arg1 : i32 to index
      %c0_12 = arith.constant 0 : index
      %c0_13 = arith.constant 0 : index
      %21 = vector.load %arg7[%20, %c0_12, %c0_13] : memref<1x16x512xf32, #tpu.memory_space<vmem>>, vector<1x16x512xf32>
      %22 = vector.shape_cast %21 : vector<1x16x512xf32> to vector<16x512xf32>
      %23 = vector.shape_cast %19 : vector<16x512xf32> to vector<1x16x512xf32>
      tpu.vector_store %arg7[%20, %c0_12, %c0_13], %23 {strides = array<i32>} : memref<1x16x512xf32, #tpu.memory_space<vmem>>, vector<1x16x512xf32>,
      %c0_14 = arith.constant 0 : index
      %c0_15 = arith.constant 0 : index
      %24 = vector.load %arg8[%c0_14, %c0_15] : memref<16x128xf32, #tpu.memory_space<vmem>>, vector<16x128xf32>
      %c0_16 = arith.constant 0 : index
      %c0_17 = arith.constant 0 : index
      %25 = vector.load %arg9[%c0_16, %c0_17] : memref<16x128xf32, #tpu.memory_space<vmem>>, vector<16x128xf32>
      %26 = vector.extract_strided_slice %19 {offsets = [0, 0], sizes = [16, 128], strides = [1, 1]} : vector<16x512xf32> to vector<16x128xf32>
      %27 = arith.addf %24, %26 : vector<16x128xf32>
      %28 = arith.mulf %26, %26 : vector<16x128xf32>
      %29 = arith.addf %25, %28 : vector<16x128xf32>
      %30 = vector.extract_strided_slice %19 {offsets = [0, 128], sizes = [16, 128], strides = [1, 1]} : vector<16x512xf32> to vector<16x128xf32>
      %31 = arith.addf %27, %30 : vector<16x128xf32>
      %32 = arith.mulf %30, %30 : vector<16x128xf32>
      %33 = arith.addf %29, %32 : vector<16x128xf32>
      %34 = vector.extract_strided_slice %19 {offsets = [0, 256], sizes = [16, 128], strides = [1, 1]} : vector<16x512xf32> to vector<16x128xf32>
      %35 = arith.addf %31, %34 : vector<16x128xf32>
      %36 = arith.mulf %34, %34 : vector<16x128xf32>
      %37 = arith.addf %33, %36 : vector<16x128xf32>
      %38 = vector.extract_strided_slice %19 {offsets = [0, 384], sizes = [16, 128], strides = [1, 1]} : vector<16x512xf32> to vector<16x128xf32>
      %39 = arith.addf %35, %38 : vector<16x128xf32>
      %40 = arith.mulf %38, %38 : vector<16x128xf32>
      %41 = arith.addf %37, %40 : vector<16x128xf32>
      %c0_18 = arith.constant 0 : index
      %c0_19 = arith.constant 0 : index
      %42 = vector.load %arg8[%c0_18, %c0_19] : memref<16x128xf32, #tpu.memory_space<vmem>>, vector<16x128xf32>
      tpu.vector_store %arg8[%c0_18, %c0_19], %39 {strides = array<i32>} : memref<16x128xf32, #tpu.memory_space<vmem>>, vector<16x128xf32>,
      %c0_20 = arith.constant 0 : index
      %c0_21 = arith.constant 0 : index
      %43 = vector.load %arg9[%c0_20, %c0_21] : memref<16x128xf32, #tpu.memory_space<vmem>>, vector<16x128xf32>
      tpu.vector_store %arg9[%c0_20, %c0_21], %41 {strides = array<i32>} : memref<16x128xf32, #tpu.memory_space<vmem>>, vector<16x128xf32>,
    } else {
    }
    %c1_i32 = arith.constant 1 : i32
    %8 = arith.cmpi eq, %arg0, %c1_i32 : i32
    %c0_i32_4 = arith.constant 0 : i32
    %9 = arith.cmpi eq, %arg1, %c0_i32_4 : i32
    %10 = arith.andi %8, %9 : i1
    %11 = arith.extui %10 : i1 to i32
    %c0_i32_5 = arith.constant 0 : i32
    %12 = arith.cmpi ne, %11, %c0_i32_5 : i32
    scf.if %12 {
      %c0 = arith.constant 0 : index
      %c0_8 = arith.constant 0 : index
      %16 = vector.load %arg8[%c0, %c0_8] : memref<16x128xf32, #tpu.memory_space<vmem>>, vector<16x128xf32>
      %cst = arith.constant dense<0.000000e+00> : vector<16xf32>
      %17 = vector.multi_reduction <add>, %16, %cst [1] : vector<16x128xf32> to vector<16xf32>
      %18 = vector.shape_cast %17 : vector<16xf32> to vector<16x1xf32>
      %cst_9 = arith.constant 7.812500e-03 : f32
      %19 = vector.broadcast %cst_9 : f32 to vector<16x1xf32>
      %20 = arith.mulf %18, %19 : vector<16x1xf32>
      %c0_10 = arith.constant 0 : index
      %c0_11 = arith.constant 0 : index
      %21 = vector.load %arg9[%c0_10, %c0_11] : memref<16x128xf32, #tpu.memory_space<vmem>>, vector<16x128xf32>
      %cst_12 = arith.constant dense<0.000000e+00> : vector<16xf32>
      %22 = vector.multi_reduction <add>, %21, %cst_12 [1] : vector<16x128xf32> to vector<16xf32>
      %23 = vector.shape_cast %22 : vector<16xf32> to vector<16x1xf32>
      %cst_13 = arith.constant 7.812500e-03 : f32
      %24 = vector.broadcast %cst_13 : f32 to vector<16x1xf32>
      %25 = arith.mulf %23, %24 : vector<16x1xf32>
      %26 = arith.mulf %20, %20 : vector<16x1xf32>
      %27 = arith.subf %25, %26 : vector<16x1xf32>
      %cst_14 = arith.constant 0.000000e+00 : f32
      %28 = vector.broadcast %cst_14 : f32 to vector<16x1xf32>
      %29 = arith.maximumf %27, %28 : vector<16x1xf32>
      %c0_15 = arith.constant 0 : index
      %c0_16 = arith.constant 0 : index
      %30 = vector.load %arg4[%c0_15, %c0_16] : memref<16x1xf32, #tpu.memory_space<vmem>>, vector<16x1xf32>
      %cst_17 = arith.constant 9.99999974E-6 : f32
      %31 = vector.broadcast %cst_17 : f32 to vector<16x1xf32>
      %32 = arith.addf %29, %31 : vector<16x1xf32>
      %33 = math.rsqrt %32 : vector<16x1xf32>
      %34 = arith.mulf %30, %33 : vector<16x1xf32>
      %c0_18 = arith.constant 0 : index
      %c0_19 = arith.constant 0 : index
      %35 = vector.load %arg10[%c0_18, %c0_19] : memref<16x1xf32, #tpu.memory_space<vmem>>, vector<16x1xf32>
      tpu.vector_store %arg10[%c0_18, %c0_19], %34 {strides = array<i32>} : memref<16x1xf32, #tpu.memory_space<vmem>>, vector<16x1xf32>,
      %c0_20 = arith.constant 0 : index
      %c0_21 = arith.constant 0 : index
      %36 = vector.load %arg5[%c0_20, %c0_21] : memref<16x1xf32, #tpu.memory_space<vmem>>, vector<16x1xf32>
      %37 = arith.mulf %20, %34 : vector<16x1xf32>
      %38 = arith.subf %36, %37 : vector<16x1xf32>
      %c0_22 = arith.constant 0 : index
      %c0_23 = arith.constant 0 : index
      %39 = vector.load %arg11[%c0_22, %c0_23] : memref<16x1xf32, #tpu.memory_space<vmem>>, vector<16x1xf32>
      tpu.vector_store %arg11[%c0_22, %c0_23], %38 {strides = array<i32>} : memref<16x1xf32, #tpu.memory_space<vmem>>, vector<16x1xf32>,
    } else {
    }
    %c1_i32_6 = arith.constant 1 : i32
    %13 = arith.cmpi eq, %arg0, %c1_i32_6 : i32
    %14 = arith.extui %13 : i1 to i32
    %c0_i32_7 = arith.constant 0 : i32
    %15 = arith.cmpi ne, %14, %c0_i32_7 : i32
    scf.if %15 {
      %16 = arith.index_cast %arg1 : i32 to index
      %c0 = arith.constant 0 : index
      %c0_8 = arith.constant 0 : index
      %17 = vector.load %arg7[%16, %c0, %c0_8] : memref<1x16x512xf32, #tpu.memory_space<vmem>>, vector<1x16x512xf32>
      %18 = vector.shape_cast %17 : vector<1x16x512xf32> to vector<16x512xf32>
      %c0_9 = arith.constant 0 : index
      %c0_10 = arith.constant 0 : index
      %19 = vector.load %arg10[%c0_9, %c0_10] : memref<16x1xf32, #tpu.memory_space<vmem>>, vector<16x1xf32>
      %c0_11 = arith.constant 0 : index
      %c0_12 = arith.constant 0 : index
      %20 = vector.load %arg11[%c0_11, %c0_12] : memref<16x1xf32, #tpu.memory_space<vmem>>, vector<16x1xf32>
      %21 = vector.extract_strided_slice %18 {offsets = [0, 0], sizes = [16, 128], strides = [1, 1]} : vector<16x512xf32> to vector<16x128xf32>
      %22 = vector.broadcast %19 : vector<16x1xf32> to vector<16x128xf32>
      %23 = arith.mulf %21, %22 : vector<16x128xf32>
      %24 = vector.broadcast %20 : vector<16x1xf32> to vector<16x128xf32>
      %25 = arith.addf %23, %24 : vector<16x128xf32>
      %cst = arith.constant 0.000000e+00 : f32
      %26 = vector.broadcast %cst : f32 to vector<16x128xf32>
      %27 = arith.maximumf %25, %26 : vector<16x128xf32>
      %28 = vector.extract_strided_slice %18 {offsets = [0, 128], sizes = [16, 128], strides = [1, 1]} : vector<16x512xf32> to vector<16x128xf32>
      %29 = vector.broadcast %19 : vector<16x1xf32> to vector<16x128xf32>
      %30 = arith.mulf %28, %29 : vector<16x128xf32>
      %31 = vector.broadcast %20 : vector<16x1xf32> to vector<16x128xf32>
      %32 = arith.addf %30, %31 : vector<16x128xf32>
      %cst_13 = arith.constant 0.000000e+00 : f32
      %33 = vector.broadcast %cst_13 : f32 to vector<16x128xf32>
      %34 = arith.maximumf %32, %33 : vector<16x128xf32>
      %35 = arith.maximumf %27, %34 : vector<16x128xf32>
      %36 = arith.addf %27, %34 : vector<16x128xf32>
      %37 = vector.extract_strided_slice %18 {offsets = [0, 256], sizes = [16, 128], strides = [1, 1]} : vector<16x512xf32> to vector<16x128xf32>
      %38 = vector.broadcast %19 : vector<16x1xf32> to vector<16x128xf32>
      %39 = arith.mulf %37, %38 : vector<16x128xf32>
      %40 = vector.broadcast %20 : vector<16x1xf32> to vector<16x128xf32>
      %41 = arith.addf %39, %40 : vector<16x128xf32>
      %cst_14 = arith.constant 0.000000e+00 : f32
      %42 = vector.broadcast %cst_14 : f32 to vector<16x128xf32>
      %43 = arith.maximumf %41, %42 : vector<16x128xf32>
      %44 = arith.maximumf %35, %43 : vector<16x128xf32>
      %45 = arith.addf %36, %43 : vector<16x128xf32>
      %46 = vector.extract_strided_slice %18 {offsets = [0, 384], sizes = [16, 128], strides = [1, 1]} : vector<16x512xf32> to vector<16x128xf32>
      %47 = vector.broadcast %19 : vector<16x1xf32> to vector<16x128xf32>
      %48 = arith.mulf %46, %47 : vector<16x128xf32>
      %49 = vector.broadcast %20 : vector<16x1xf32> to vector<16x128xf32>
      %50 = arith.addf %48, %49 : vector<16x128xf32>
      %cst_15 = arith.constant 0.000000e+00 : f32
      %51 = vector.broadcast %cst_15 : f32 to vector<16x128xf32>
      %52 = arith.maximumf %50, %51 : vector<16x128xf32>
      %53 = arith.maximumf %44, %52 : vector<16x128xf32>
      %54 = arith.addf %45, %52 : vector<16x128xf32>
      %cst_16 = arith.constant 2.500000e-01 : f32
      %55 = vector.broadcast %cst_16 : f32 to vector<16x128xf32>
      %56 = arith.mulf %54, %55 : vector<16x128xf32>
      %57 = arith.addf %53, %56 : vector<16x128xf32>
      %c0_17 = arith.constant 0 : index
      %c0_18 = arith.constant 0 : index
      %58 = vector.load %arg6[%c0_17, %c0_18] : memref<16x128xf32, #tpu.memory_space<vmem>>, vector<16x128xf32>
      tpu.vector_store %arg6[%c0_17, %c0_18], %57 {strides = array<i32>} : memref<16x128xf32, #tpu.memory_space<vmem>>, vector<16x128xf32>,
    } else {
    }
    return
  }
  func.func @transform_0(%arg0: i32, %arg1: i32) -> (i32, i32, i32) {
    %c1_i32 = arith.constant 1 : i32
    %0 = arith.subi %c1_i32, %arg0 : i32
    %1 = arith.muli %arg1, %0 : i32
    %c0_i32 = arith.constant 0 : i32
    %2 = arith.muli %c0_i32, %arg0 : i32
    %3 = arith.addi %1, %2 : i32
    %c0_i32_0 = arith.constant 0 : i32
    %c0_i32_1 = arith.constant 0 : i32
    %c0_i32_2 = arith.constant 0 : i32
    return %3, %c0_i32_0, %c0_i32_1 : i32, i32, i32
  }
  func.func @transform_1(%arg0: i32, %arg1: i32) -> (i32, i32) {
    %c0_i32 = arith.constant 0 : i32
    %c0_i32_0 = arith.constant 0 : i32
    %c0_i32_1 = arith.constant 0 : i32
    return %c0_i32, %c0_i32_0 : i32, i32
  }
  func.func @transform_2(%arg0: i32, %arg1: i32) -> (i32, i32) {
    %c0_i32 = arith.constant 0 : i32
    %c0_i32_0 = arith.constant 0 : i32
    %c0_i32_1 = arith.constant 0 : i32
    return %c0_i32, %c0_i32_0 : i32, i32
  }
  func.func @transform_3(%arg0: i32, %arg1: i32) -> (i32, i32) {
    %c0_i32 = arith.constant 0 : i32
    %c0_i32_0 = arith.constant 0 : i32
    %c0_i32_1 = arith.constant 0 : i32
    return %c0_i32, %c0_i32_0 : i32, i32
  }
  func.func @transform_4(%arg0: i32, %arg1: i32) -> (i32, i32) {
    %0 = arith.muli %arg0, %arg1 : i32
    %c0_i32 = arith.constant 0 : i32
    %c0_i32_0 = arith.constant 0 : i32
    return %c0_i32, %0 : i32, i32
  }
}

module attributes {stable_mosaic.version = 11 : i64} {
  func.func @kernel(%arg0: i32, %arg1: i32, %arg2: memref<1x144x512xbf16, #tpu.memory_space<vmem>>, %arg3: memref<32x144xbf16, #tpu.memory_space<vmem>>, %arg4: memref<32x1xf32, #tpu.memory_space<vmem>>, %arg5: memref<32x1xf32, #tpu.memory_space<vmem>>, %arg6: memref<32x128xf32, #tpu.memory_space<vmem>>, %arg7: memref<1x32x512xf32, #tpu.memory_space<vmem>>, %arg8: memref<32x128xf32, #tpu.memory_space<vmem>>, %arg9: memref<32x128xf32, #tpu.memory_space<vmem>>, %arg10: memref<32x1xf32, #tpu.memory_space<vmem>>, %arg11: memref<32x1xf32, #tpu.memory_space<vmem>>) attributes {dimension_semantics = [#tpu.dimension_semantics<arbitrary>, #tpu.dimension_semantics<arbitrary>], iteration_bounds = array<i64: 2, 1>, scalar_prefetch = 0 : i64, scratch_operands = 5 : i64, tpu.core_type = #tpu.core_type<tc>, window_params = [{transform_indices = @transform_0, window_bounds = array<i64: 1, 144, 512>}, {pipeline_mode = #tpu.pipeline_mode<synchronous>, transform_indices = @transform_1, window_bounds = array<i64: 32, 144>}, {pipeline_mode = #tpu.pipeline_mode<synchronous>, transform_indices = @transform_2, window_bounds = array<i64: 32, 1>}, {pipeline_mode = #tpu.pipeline_mode<synchronous>, transform_indices = @transform_3, window_bounds = array<i64: 32, 1>}, {transform_indices = @transform_4, window_bounds = array<i64: 32, 128>}]} {
    %c0_i32 = arith.constant 0 : i32
    %0 = arith.cmpi eq, %arg0, %c0_i32 : i32
    %c0_i32_0 = arith.constant 0 : i32
    %1 = arith.cmpi eq, %arg1, %c0_i32_0 : i32
    %2 = arith.andi %0, %1 : i1
    %3 = arith.extui %2 : i1 to i32
    %c0_i32_1 = arith.constant 0 : i32
    %4 = arith.cmpi ne, %3, %c0_i32_1 : i32
    scf.if %4 {
      %cst = arith.constant 0.000000e+00 : f32
      %16 = vector.broadcast %cst : f32 to vector<32x128xf32>
      %c0 = arith.constant 0 : index
      %c0_8 = arith.constant 0 : index
      %17 = vector.load %arg8[%c0, %c0_8] : memref<32x128xf32, #tpu.memory_space<vmem>>, vector<32x128xf32>
      tpu.vector_store %arg8[%c0, %c0_8], %16 {strides = array<i32>} : memref<32x128xf32, #tpu.memory_space<vmem>>, vector<32x128xf32>,
      %cst_9 = arith.constant 0.000000e+00 : f32
      %18 = vector.broadcast %cst_9 : f32 to vector<32x128xf32>
      %c0_10 = arith.constant 0 : index
      %c0_11 = arith.constant 0 : index
      %19 = vector.load %arg9[%c0_10, %c0_11] : memref<32x128xf32, #tpu.memory_space<vmem>>, vector<32x128xf32>
      tpu.vector_store %arg9[%c0_10, %c0_11], %18 {strides = array<i32>} : memref<32x128xf32, #tpu.memory_space<vmem>>, vector<32x128xf32>,
    } else {
    }
    %c0_i32_2 = arith.constant 0 : i32
    %5 = arith.cmpi eq, %arg0, %c0_i32_2 : i32
    %6 = arith.extui %5 : i1 to i32
    %c0_i32_3 = arith.constant 0 : i32
    %7 = arith.cmpi ne, %6, %c0_i32_3 : i32
    scf.if %7 {
      %c0 = arith.constant 0 : index
      %c0_8 = arith.constant 0 : index
      %16 = vector.load %arg3[%c0, %c0_8] : memref<32x144xbf16, #tpu.memory_space<vmem>>, vector<32x144xbf16>
      %c0_9 = arith.constant 0 : index
      %c0_10 = arith.constant 0 : index
      %c0_11 = arith.constant 0 : index
      %17 = vector.load %arg2[%c0_9, %c0_10, %c0_11] : memref<1x144x512xbf16, #tpu.memory_space<vmem>>, vector<1x144x512xbf16>
      %18 = vector.shape_cast %17 : vector<1x144x512xbf16> to vector<144x512xbf16>
      %cst = arith.constant dense<0.000000e+00> : vector<32x512xf32>
      %19 = tpu.matmul %16, %18, %cst {dimension_numbers = #tpu.dot_dimension_numbers<[1], [0], [0], [1], [0, 0, 1, 1], [], []>} : vector<32x144xbf16>, vector<144x512xbf16>, vector<32x512xf32> -> vector<32x512xf32>
      %20 = arith.index_cast %arg1 : i32 to index
      %c0_12 = arith.constant 0 : index
      %c0_13 = arith.constant 0 : index
      %21 = vector.load %arg7[%20, %c0_12, %c0_13] : memref<1x32x512xf32, #tpu.memory_space<vmem>>, vector<1x32x512xf32>
      %22 = vector.shape_cast %21 : vector<1x32x512xf32> to vector<32x512xf32>
      %23 = vector.shape_cast %19 : vector<32x512xf32> to vector<1x32x512xf32>
      tpu.vector_store %arg7[%20, %c0_12, %c0_13], %23 {strides = array<i32>} : memref<1x32x512xf32, #tpu.memory_space<vmem>>, vector<1x32x512xf32>,
      %c0_14 = arith.constant 0 : index
      %c0_15 = arith.constant 0 : index
      %24 = vector.load %arg8[%c0_14, %c0_15] : memref<32x128xf32, #tpu.memory_space<vmem>>, vector<32x128xf32>
      %c0_16 = arith.constant 0 : index
      %c0_17 = arith.constant 0 : index
      %25 = vector.load %arg9[%c0_16, %c0_17] : memref<32x128xf32, #tpu.memory_space<vmem>>, vector<32x128xf32>
      %26 = vector.extract_strided_slice %19 {offsets = [0, 0], sizes = [32, 128], strides = [1, 1]} : vector<32x512xf32> to vector<32x128xf32>
      %27 = arith.addf %24, %26 : vector<32x128xf32>
      %28 = arith.mulf %26, %26 : vector<32x128xf32>
      %29 = arith.addf %25, %28 : vector<32x128xf32>
      %30 = vector.extract_strided_slice %19 {offsets = [0, 128], sizes = [32, 128], strides = [1, 1]} : vector<32x512xf32> to vector<32x128xf32>
      %31 = arith.addf %27, %30 : vector<32x128xf32>
      %32 = arith.mulf %30, %30 : vector<32x128xf32>
      %33 = arith.addf %29, %32 : vector<32x128xf32>
      %34 = vector.extract_strided_slice %19 {offsets = [0, 256], sizes = [32, 128], strides = [1, 1]} : vector<32x512xf32> to vector<32x128xf32>
      %35 = arith.addf %31, %34 : vector<32x128xf32>
      %36 = arith.mulf %34, %34 : vector<32x128xf32>
      %37 = arith.addf %33, %36 : vector<32x128xf32>
      %38 = vector.extract_strided_slice %19 {offsets = [0, 384], sizes = [32, 128], strides = [1, 1]} : vector<32x512xf32> to vector<32x128xf32>
      %39 = arith.addf %35, %38 : vector<32x128xf32>
      %40 = arith.mulf %38, %38 : vector<32x128xf32>
      %41 = arith.addf %37, %40 : vector<32x128xf32>
      %c0_18 = arith.constant 0 : index
      %c0_19 = arith.constant 0 : index
      %42 = vector.load %arg8[%c0_18, %c0_19] : memref<32x128xf32, #tpu.memory_space<vmem>>, vector<32x128xf32>
      tpu.vector_store %arg8[%c0_18, %c0_19], %39 {strides = array<i32>} : memref<32x128xf32, #tpu.memory_space<vmem>>, vector<32x128xf32>,
      %c0_20 = arith.constant 0 : index
      %c0_21 = arith.constant 0 : index
      %43 = vector.load %arg9[%c0_20, %c0_21] : memref<32x128xf32, #tpu.memory_space<vmem>>, vector<32x128xf32>
      tpu.vector_store %arg9[%c0_20, %c0_21], %41 {strides = array<i32>} : memref<32x128xf32, #tpu.memory_space<vmem>>, vector<32x128xf32>,
    } else {
    }
    %c1_i32 = arith.constant 1 : i32
    %8 = arith.cmpi eq, %arg0, %c1_i32 : i32
    %c0_i32_4 = arith.constant 0 : i32
    %9 = arith.cmpi eq, %arg1, %c0_i32_4 : i32
    %10 = arith.andi %8, %9 : i1
    %11 = arith.extui %10 : i1 to i32
    %c0_i32_5 = arith.constant 0 : i32
    %12 = arith.cmpi ne, %11, %c0_i32_5 : i32
    scf.if %12 {
      %c0 = arith.constant 0 : index
      %c0_8 = arith.constant 0 : index
      %16 = vector.load %arg8[%c0, %c0_8] : memref<32x128xf32, #tpu.memory_space<vmem>>, vector<32x128xf32>
      %cst = arith.constant dense<0.000000e+00> : vector<32xf32>
      %17 = vector.multi_reduction <add>, %16, %cst [1] : vector<32x128xf32> to vector<32xf32>
      %18 = vector.shape_cast %17 : vector<32xf32> to vector<32x1xf32>
      %cst_9 = arith.constant 3.125000e-02 : f32
      %19 = vector.broadcast %cst_9 : f32 to vector<32x1xf32>
      %20 = arith.mulf %18, %19 : vector<32x1xf32>
      %c0_10 = arith.constant 0 : index
      %c0_11 = arith.constant 0 : index
      %21 = vector.load %arg9[%c0_10, %c0_11] : memref<32x128xf32, #tpu.memory_space<vmem>>, vector<32x128xf32>
      %cst_12 = arith.constant dense<0.000000e+00> : vector<32xf32>
      %22 = vector.multi_reduction <add>, %21, %cst_12 [1] : vector<32x128xf32> to vector<32xf32>
      %23 = vector.shape_cast %22 : vector<32xf32> to vector<32x1xf32>
      %cst_13 = arith.constant 3.125000e-02 : f32
      %24 = vector.broadcast %cst_13 : f32 to vector<32x1xf32>
      %25 = arith.mulf %23, %24 : vector<32x1xf32>
      %26 = arith.mulf %20, %20 : vector<32x1xf32>
      %27 = arith.subf %25, %26 : vector<32x1xf32>
      %cst_14 = arith.constant 0.000000e+00 : f32
      %28 = vector.broadcast %cst_14 : f32 to vector<32x1xf32>
      %29 = arith.maximumf %27, %28 : vector<32x1xf32>
      %c0_15 = arith.constant 0 : index
      %c0_16 = arith.constant 0 : index
      %30 = vector.load %arg4[%c0_15, %c0_16] : memref<32x1xf32, #tpu.memory_space<vmem>>, vector<32x1xf32>
      %cst_17 = arith.constant 9.99999974E-6 : f32
      %31 = vector.broadcast %cst_17 : f32 to vector<32x1xf32>
      %32 = arith.addf %29, %31 : vector<32x1xf32>
      %33 = math.rsqrt %32 : vector<32x1xf32>
      %34 = arith.mulf %30, %33 : vector<32x1xf32>
      %c0_18 = arith.constant 0 : index
      %c0_19 = arith.constant 0 : index
      %35 = vector.load %arg10[%c0_18, %c0_19] : memref<32x1xf32, #tpu.memory_space<vmem>>, vector<32x1xf32>
      tpu.vector_store %arg10[%c0_18, %c0_19], %34 {strides = array<i32>} : memref<32x1xf32, #tpu.memory_space<vmem>>, vector<32x1xf32>,
      %c0_20 = arith.constant 0 : index
      %c0_21 = arith.constant 0 : index
      %36 = vector.load %arg5[%c0_20, %c0_21] : memref<32x1xf32, #tpu.memory_space<vmem>>, vector<32x1xf32>
      %37 = arith.mulf %20, %34 : vector<32x1xf32>
      %38 = arith.subf %36, %37 : vector<32x1xf32>
      %c0_22 = arith.constant 0 : index
      %c0_23 = arith.constant 0 : index
      %39 = vector.load %arg11[%c0_22, %c0_23] : memref<32x1xf32, #tpu.memory_space<vmem>>, vector<32x1xf32>
      tpu.vector_store %arg11[%c0_22, %c0_23], %38 {strides = array<i32>} : memref<32x1xf32, #tpu.memory_space<vmem>>, vector<32x1xf32>,
    } else {
    }
    %c1_i32_6 = arith.constant 1 : i32
    %13 = arith.cmpi eq, %arg0, %c1_i32_6 : i32
    %14 = arith.extui %13 : i1 to i32
    %c0_i32_7 = arith.constant 0 : i32
    %15 = arith.cmpi ne, %14, %c0_i32_7 : i32
    scf.if %15 {
      %16 = arith.index_cast %arg1 : i32 to index
      %c0 = arith.constant 0 : index
      %c0_8 = arith.constant 0 : index
      %17 = vector.load %arg7[%16, %c0, %c0_8] : memref<1x32x512xf32, #tpu.memory_space<vmem>>, vector<1x32x512xf32>
      %18 = vector.shape_cast %17 : vector<1x32x512xf32> to vector<32x512xf32>
      %c0_9 = arith.constant 0 : index
      %c0_10 = arith.constant 0 : index
      %19 = vector.load %arg10[%c0_9, %c0_10] : memref<32x1xf32, #tpu.memory_space<vmem>>, vector<32x1xf32>
      %c0_11 = arith.constant 0 : index
      %c0_12 = arith.constant 0 : index
      %20 = vector.load %arg11[%c0_11, %c0_12] : memref<32x1xf32, #tpu.memory_space<vmem>>, vector<32x1xf32>
      %21 = vector.extract_strided_slice %18 {offsets = [0, 0], sizes = [32, 128], strides = [1, 1]} : vector<32x512xf32> to vector<32x128xf32>
      %22 = vector.broadcast %19 : vector<32x1xf32> to vector<32x128xf32>
      %23 = arith.mulf %21, %22 : vector<32x128xf32>
      %24 = vector.broadcast %20 : vector<32x1xf32> to vector<32x128xf32>
      %25 = arith.addf %23, %24 : vector<32x128xf32>
      %cst = arith.constant 0.000000e+00 : f32
      %26 = vector.broadcast %cst : f32 to vector<32x128xf32>
      %27 = arith.maximumf %25, %26 : vector<32x128xf32>
      %28 = vector.extract_strided_slice %18 {offsets = [0, 128], sizes = [32, 128], strides = [1, 1]} : vector<32x512xf32> to vector<32x128xf32>
      %29 = vector.broadcast %19 : vector<32x1xf32> to vector<32x128xf32>
      %30 = arith.mulf %28, %29 : vector<32x128xf32>
      %31 = vector.broadcast %20 : vector<32x1xf32> to vector<32x128xf32>
      %32 = arith.addf %30, %31 : vector<32x128xf32>
      %cst_13 = arith.constant 0.000000e+00 : f32
      %33 = vector.broadcast %cst_13 : f32 to vector<32x128xf32>
      %34 = arith.maximumf %32, %33 : vector<32x128xf32>
      %35 = arith.maximumf %27, %34 : vector<32x128xf32>
      %36 = arith.addf %27, %34 : vector<32x128xf32>
      %37 = vector.extract_strided_slice %18 {offsets = [0, 256], sizes = [32, 128], strides = [1, 1]} : vector<32x512xf32> to vector<32x128xf32>
      %38 = vector.broadcast %19 : vector<32x1xf32> to vector<32x128xf32>
      %39 = arith.mulf %37, %38 : vector<32x128xf32>
      %40 = vector.broadcast %20 : vector<32x1xf32> to vector<32x128xf32>
      %41 = arith.addf %39, %40 : vector<32x128xf32>
      %cst_14 = arith.constant 0.000000e+00 : f32
      %42 = vector.broadcast %cst_14 : f32 to vector<32x128xf32>
      %43 = arith.maximumf %41, %42 : vector<32x128xf32>
      %44 = arith.maximumf %35, %43 : vector<32x128xf32>
      %45 = arith.addf %36, %43 : vector<32x128xf32>
      %46 = vector.extract_strided_slice %18 {offsets = [0, 384], sizes = [32, 128], strides = [1, 1]} : vector<32x512xf32> to vector<32x128xf32>
      %47 = vector.broadcast %19 : vector<32x1xf32> to vector<32x128xf32>
      %48 = arith.mulf %46, %47 : vector<32x128xf32>
      %49 = vector.broadcast %20 : vector<32x1xf32> to vector<32x128xf32>
      %50 = arith.addf %48, %49 : vector<32x128xf32>
      %cst_15 = arith.constant 0.000000e+00 : f32
      %51 = vector.broadcast %cst_15 : f32 to vector<32x128xf32>
      %52 = arith.maximumf %50, %51 : vector<32x128xf32>
      %53 = arith.maximumf %44, %52 : vector<32x128xf32>
      %54 = arith.addf %45, %52 : vector<32x128xf32>
      %cst_16 = arith.constant 2.500000e-01 : f32
      %55 = vector.broadcast %cst_16 : f32 to vector<32x128xf32>
      %56 = arith.mulf %54, %55 : vector<32x128xf32>
      %57 = arith.addf %53, %56 : vector<32x128xf32>
      %c0_17 = arith.constant 0 : index
      %c0_18 = arith.constant 0 : index
      %58 = vector.load %arg6[%c0_17, %c0_18] : memref<32x128xf32, #tpu.memory_space<vmem>>, vector<32x128xf32>
      tpu.vector_store %arg6[%c0_17, %c0_18], %57 {strides = array<i32>} : memref<32x128xf32, #tpu.memory_space<vmem>>, vector<32x128xf32>,
    } else {
    }
    return
  }
  func.func @transform_0(%arg0: i32, %arg1: i32) -> (i32, i32, i32) {
    %c1_i32 = arith.constant 1 : i32
    %0 = arith.subi %c1_i32, %arg0 : i32
    %1 = arith.muli %arg1, %0 : i32
    %c0_i32 = arith.constant 0 : i32
    %2 = arith.muli %c0_i32, %arg0 : i32
    %3 = arith.addi %1, %2 : i32
    %c0_i32_0 = arith.constant 0 : i32
    %c0_i32_1 = arith.constant 0 : i32
    %c0_i32_2 = arith.constant 0 : i32
    return %3, %c0_i32_0, %c0_i32_1 : i32, i32, i32
  }
  func.func @transform_1(%arg0: i32, %arg1: i32) -> (i32, i32) {
    %c0_i32 = arith.constant 0 : i32
    %c0_i32_0 = arith.constant 0 : i32
    %c0_i32_1 = arith.constant 0 : i32
    return %c0_i32, %c0_i32_0 : i32, i32
  }
  func.func @transform_2(%arg0: i32, %arg1: i32) -> (i32, i32) {
    %c0_i32 = arith.constant 0 : i32
    %c0_i32_0 = arith.constant 0 : i32
    %c0_i32_1 = arith.constant 0 : i32
    return %c0_i32, %c0_i32_0 : i32, i32
  }
  func.func @transform_3(%arg0: i32, %arg1: i32) -> (i32, i32) {
    %c0_i32 = arith.constant 0 : i32
    %c0_i32_0 = arith.constant 0 : i32
    %c0_i32_1 = arith.constant 0 : i32
    return %c0_i32, %c0_i32_0 : i32, i32
  }
  func.func @transform_4(%arg0: i32, %arg1: i32) -> (i32, i32) {
    %0 = arith.muli %arg0, %arg1 : i32
    %c0_i32 = arith.constant 0 : i32
    %c0_i32_0 = arith.constant 0 : i32
    return %c0_i32, %0 : i32, i32
  }
}

module attributes {stable_mosaic.version = 11 : i64} {
  func.func @kernel(%arg0: i32, %arg1: i32, %arg2: memref<1x288x512xbf16, #tpu.memory_space<vmem>>, %arg3: memref<64x288xbf16, #tpu.memory_space<vmem>>, %arg4: memref<64x1xf32, #tpu.memory_space<vmem>>, %arg5: memref<64x1xf32, #tpu.memory_space<vmem>>, %arg6: memref<64x128xf32, #tpu.memory_space<vmem>>, %arg7: memref<1x64x512xf32, #tpu.memory_space<vmem>>, %arg8: memref<64x128xf32, #tpu.memory_space<vmem>>, %arg9: memref<64x128xf32, #tpu.memory_space<vmem>>, %arg10: memref<64x1xf32, #tpu.memory_space<vmem>>, %arg11: memref<64x1xf32, #tpu.memory_space<vmem>>) attributes {dimension_semantics = [#tpu.dimension_semantics<arbitrary>, #tpu.dimension_semantics<arbitrary>], iteration_bounds = array<i64: 2, 1>, scalar_prefetch = 0 : i64, scratch_operands = 5 : i64, tpu.core_type = #tpu.core_type<tc>, window_params = [{transform_indices = @transform_0, window_bounds = array<i64: 1, 288, 512>}, {pipeline_mode = #tpu.pipeline_mode<synchronous>, transform_indices = @transform_1, window_bounds = array<i64: 64, 288>}, {pipeline_mode = #tpu.pipeline_mode<synchronous>, transform_indices = @transform_2, window_bounds = array<i64: 64, 1>}, {pipeline_mode = #tpu.pipeline_mode<synchronous>, transform_indices = @transform_3, window_bounds = array<i64: 64, 1>}, {transform_indices = @transform_4, window_bounds = array<i64: 64, 128>}]} {
    %c0_i32 = arith.constant 0 : i32
    %0 = arith.cmpi eq, %arg0, %c0_i32 : i32
    %c0_i32_0 = arith.constant 0 : i32
    %1 = arith.cmpi eq, %arg1, %c0_i32_0 : i32
    %2 = arith.andi %0, %1 : i1
    %3 = arith.extui %2 : i1 to i32
    %c0_i32_1 = arith.constant 0 : i32
    %4 = arith.cmpi ne, %3, %c0_i32_1 : i32
    scf.if %4 {
      %cst = arith.constant 0.000000e+00 : f32
      %16 = vector.broadcast %cst : f32 to vector<64x128xf32>
      %c0 = arith.constant 0 : index
      %c0_8 = arith.constant 0 : index
      %17 = vector.load %arg8[%c0, %c0_8] : memref<64x128xf32, #tpu.memory_space<vmem>>, vector<64x128xf32>
      tpu.vector_store %arg8[%c0, %c0_8], %16 {strides = array<i32>} : memref<64x128xf32, #tpu.memory_space<vmem>>, vector<64x128xf32>,
      %cst_9 = arith.constant 0.000000e+00 : f32
      %18 = vector.broadcast %cst_9 : f32 to vector<64x128xf32>
      %c0_10 = arith.constant 0 : index
      %c0_11 = arith.constant 0 : index
      %19 = vector.load %arg9[%c0_10, %c0_11] : memref<64x128xf32, #tpu.memory_space<vmem>>, vector<64x128xf32>
      tpu.vector_store %arg9[%c0_10, %c0_11], %18 {strides = array<i32>} : memref<64x128xf32, #tpu.memory_space<vmem>>, vector<64x128xf32>,
    } else {
    }
    %c0_i32_2 = arith.constant 0 : i32
    %5 = arith.cmpi eq, %arg0, %c0_i32_2 : i32
    %6 = arith.extui %5 : i1 to i32
    %c0_i32_3 = arith.constant 0 : i32
    %7 = arith.cmpi ne, %6, %c0_i32_3 : i32
    scf.if %7 {
      %c0 = arith.constant 0 : index
      %c0_8 = arith.constant 0 : index
      %16 = vector.load %arg3[%c0, %c0_8] : memref<64x288xbf16, #tpu.memory_space<vmem>>, vector<64x288xbf16>
      %c0_9 = arith.constant 0 : index
      %c0_10 = arith.constant 0 : index
      %c0_11 = arith.constant 0 : index
      %17 = vector.load %arg2[%c0_9, %c0_10, %c0_11] : memref<1x288x512xbf16, #tpu.memory_space<vmem>>, vector<1x288x512xbf16>
      %18 = vector.shape_cast %17 : vector<1x288x512xbf16> to vector<288x512xbf16>
      %cst = arith.constant dense<0.000000e+00> : vector<64x512xf32>
      %19 = tpu.matmul %16, %18, %cst {dimension_numbers = #tpu.dot_dimension_numbers<[1], [0], [0], [1], [0, 0, 1, 1], [], []>} : vector<64x288xbf16>, vector<288x512xbf16>, vector<64x512xf32> -> vector<64x512xf32>
      %20 = arith.index_cast %arg1 : i32 to index
      %c0_12 = arith.constant 0 : index
      %c0_13 = arith.constant 0 : index
      %21 = vector.load %arg7[%20, %c0_12, %c0_13] : memref<1x64x512xf32, #tpu.memory_space<vmem>>, vector<1x64x512xf32>
      %22 = vector.shape_cast %21 : vector<1x64x512xf32> to vector<64x512xf32>
      %23 = vector.shape_cast %19 : vector<64x512xf32> to vector<1x64x512xf32>
      tpu.vector_store %arg7[%20, %c0_12, %c0_13], %23 {strides = array<i32>} : memref<1x64x512xf32, #tpu.memory_space<vmem>>, vector<1x64x512xf32>,
      %c0_14 = arith.constant 0 : index
      %c0_15 = arith.constant 0 : index
      %24 = vector.load %arg8[%c0_14, %c0_15] : memref<64x128xf32, #tpu.memory_space<vmem>>, vector<64x128xf32>
      %c0_16 = arith.constant 0 : index
      %c0_17 = arith.constant 0 : index
      %25 = vector.load %arg9[%c0_16, %c0_17] : memref<64x128xf32, #tpu.memory_space<vmem>>, vector<64x128xf32>
      %26 = vector.extract_strided_slice %19 {offsets = [0, 0], sizes = [64, 128], strides = [1, 1]} : vector<64x512xf32> to vector<64x128xf32>
      %27 = arith.addf %24, %26 : vector<64x128xf32>
      %28 = arith.mulf %26, %26 : vector<64x128xf32>
      %29 = arith.addf %25, %28 : vector<64x128xf32>
      %30 = vector.extract_strided_slice %19 {offsets = [0, 128], sizes = [64, 128], strides = [1, 1]} : vector<64x512xf32> to vector<64x128xf32>
      %31 = arith.addf %27, %30 : vector<64x128xf32>
      %32 = arith.mulf %30, %30 : vector<64x128xf32>
      %33 = arith.addf %29, %32 : vector<64x128xf32>
      %34 = vector.extract_strided_slice %19 {offsets = [0, 256], sizes = [64, 128], strides = [1, 1]} : vector<64x512xf32> to vector<64x128xf32>
      %35 = arith.addf %31, %34 : vector<64x128xf32>
      %36 = arith.mulf %34, %34 : vector<64x128xf32>
      %37 = arith.addf %33, %36 : vector<64x128xf32>
      %38 = vector.extract_strided_slice %19 {offsets = [0, 384], sizes = [64, 128], strides = [1, 1]} : vector<64x512xf32> to vector<64x128xf32>
      %39 = arith.addf %35, %38 : vector<64x128xf32>
      %40 = arith.mulf %38, %38 : vector<64x128xf32>
      %41 = arith.addf %37, %40 : vector<64x128xf32>
      %c0_18 = arith.constant 0 : index
      %c0_19 = arith.constant 0 : index
      %42 = vector.load %arg8[%c0_18, %c0_19] : memref<64x128xf32, #tpu.memory_space<vmem>>, vector<64x128xf32>
      tpu.vector_store %arg8[%c0_18, %c0_19], %39 {strides = array<i32>} : memref<64x128xf32, #tpu.memory_space<vmem>>, vector<64x128xf32>,
      %c0_20 = arith.constant 0 : index
      %c0_21 = arith.constant 0 : index
      %43 = vector.load %arg9[%c0_20, %c0_21] : memref<64x128xf32, #tpu.memory_space<vmem>>, vector<64x128xf32>
      tpu.vector_store %arg9[%c0_20, %c0_21], %41 {strides = array<i32>} : memref<64x128xf32, #tpu.memory_space<vmem>>, vector<64x128xf32>,
    } else {
    }
    %c1_i32 = arith.constant 1 : i32
    %8 = arith.cmpi eq, %arg0, %c1_i32 : i32
    %c0_i32_4 = arith.constant 0 : i32
    %9 = arith.cmpi eq, %arg1, %c0_i32_4 : i32
    %10 = arith.andi %8, %9 : i1
    %11 = arith.extui %10 : i1 to i32
    %c0_i32_5 = arith.constant 0 : i32
    %12 = arith.cmpi ne, %11, %c0_i32_5 : i32
    scf.if %12 {
      %c0 = arith.constant 0 : index
      %c0_8 = arith.constant 0 : index
      %16 = vector.load %arg8[%c0, %c0_8] : memref<64x128xf32, #tpu.memory_space<vmem>>, vector<64x128xf32>
      %cst = arith.constant dense<0.000000e+00> : vector<64xf32>
      %17 = vector.multi_reduction <add>, %16, %cst [1] : vector<64x128xf32> to vector<64xf32>
      %18 = vector.shape_cast %17 : vector<64xf32> to vector<64x1xf32>
      %cst_9 = arith.constant 1.250000e-01 : f32
      %19 = vector.broadcast %cst_9 : f32 to vector<64x1xf32>
      %20 = arith.mulf %18, %19 : vector<64x1xf32>
      %c0_10 = arith.constant 0 : index
      %c0_11 = arith.constant 0 : index
      %21 = vector.load %arg9[%c0_10, %c0_11] : memref<64x128xf32, #tpu.memory_space<vmem>>, vector<64x128xf32>
      %cst_12 = arith.constant dense<0.000000e+00> : vector<64xf32>
      %22 = vector.multi_reduction <add>, %21, %cst_12 [1] : vector<64x128xf32> to vector<64xf32>
      %23 = vector.shape_cast %22 : vector<64xf32> to vector<64x1xf32>
      %cst_13 = arith.constant 1.250000e-01 : f32
      %24 = vector.broadcast %cst_13 : f32 to vector<64x1xf32>
      %25 = arith.mulf %23, %24 : vector<64x1xf32>
      %26 = arith.mulf %20, %20 : vector<64x1xf32>
      %27 = arith.subf %25, %26 : vector<64x1xf32>
      %cst_14 = arith.constant 0.000000e+00 : f32
      %28 = vector.broadcast %cst_14 : f32 to vector<64x1xf32>
      %29 = arith.maximumf %27, %28 : vector<64x1xf32>
      %c0_15 = arith.constant 0 : index
      %c0_16 = arith.constant 0 : index
      %30 = vector.load %arg4[%c0_15, %c0_16] : memref<64x1xf32, #tpu.memory_space<vmem>>, vector<64x1xf32>
      %cst_17 = arith.constant 9.99999974E-6 : f32
      %31 = vector.broadcast %cst_17 : f32 to vector<64x1xf32>
      %32 = arith.addf %29, %31 : vector<64x1xf32>
      %33 = math.rsqrt %32 : vector<64x1xf32>
      %34 = arith.mulf %30, %33 : vector<64x1xf32>
      %c0_18 = arith.constant 0 : index
      %c0_19 = arith.constant 0 : index
      %35 = vector.load %arg10[%c0_18, %c0_19] : memref<64x1xf32, #tpu.memory_space<vmem>>, vector<64x1xf32>
      tpu.vector_store %arg10[%c0_18, %c0_19], %34 {strides = array<i32>} : memref<64x1xf32, #tpu.memory_space<vmem>>, vector<64x1xf32>,
      %c0_20 = arith.constant 0 : index
      %c0_21 = arith.constant 0 : index
      %36 = vector.load %arg5[%c0_20, %c0_21] : memref<64x1xf32, #tpu.memory_space<vmem>>, vector<64x1xf32>
      %37 = arith.mulf %20, %34 : vector<64x1xf32>
      %38 = arith.subf %36, %37 : vector<64x1xf32>
      %c0_22 = arith.constant 0 : index
      %c0_23 = arith.constant 0 : index
      %39 = vector.load %arg11[%c0_22, %c0_23] : memref<64x1xf32, #tpu.memory_space<vmem>>, vector<64x1xf32>
      tpu.vector_store %arg11[%c0_22, %c0_23], %38 {strides = array<i32>} : memref<64x1xf32, #tpu.memory_space<vmem>>, vector<64x1xf32>,
    } else {
    }
    %c1_i32_6 = arith.constant 1 : i32
    %13 = arith.cmpi eq, %arg0, %c1_i32_6 : i32
    %14 = arith.extui %13 : i1 to i32
    %c0_i32_7 = arith.constant 0 : i32
    %15 = arith.cmpi ne, %14, %c0_i32_7 : i32
    scf.if %15 {
      %16 = arith.index_cast %arg1 : i32 to index
      %c0 = arith.constant 0 : index
      %c0_8 = arith.constant 0 : index
      %17 = vector.load %arg7[%16, %c0, %c0_8] : memref<1x64x512xf32, #tpu.memory_space<vmem>>, vector<1x64x512xf32>
      %18 = vector.shape_cast %17 : vector<1x64x512xf32> to vector<64x512xf32>
      %c0_9 = arith.constant 0 : index
      %c0_10 = arith.constant 0 : index
      %19 = vector.load %arg10[%c0_9, %c0_10] : memref<64x1xf32, #tpu.memory_space<vmem>>, vector<64x1xf32>
      %c0_11 = arith.constant 0 : index
      %c0_12 = arith.constant 0 : index
      %20 = vector.load %arg11[%c0_11, %c0_12] : memref<64x1xf32, #tpu.memory_space<vmem>>, vector<64x1xf32>
      %21 = vector.extract_strided_slice %18 {offsets = [0, 0], sizes = [64, 128], strides = [1, 1]} : vector<64x512xf32> to vector<64x128xf32>
      %22 = vector.broadcast %19 : vector<64x1xf32> to vector<64x128xf32>
      %23 = arith.mulf %21, %22 : vector<64x128xf32>
      %24 = vector.broadcast %20 : vector<64x1xf32> to vector<64x128xf32>
      %25 = arith.addf %23, %24 : vector<64x128xf32>
      %cst = arith.constant 0.000000e+00 : f32
      %26 = vector.broadcast %cst : f32 to vector<64x128xf32>
      %27 = arith.maximumf %25, %26 : vector<64x128xf32>
      %28 = vector.extract_strided_slice %18 {offsets = [0, 128], sizes = [64, 128], strides = [1, 1]} : vector<64x512xf32> to vector<64x128xf32>
      %29 = vector.broadcast %19 : vector<64x1xf32> to vector<64x128xf32>
      %30 = arith.mulf %28, %29 : vector<64x128xf32>
      %31 = vector.broadcast %20 : vector<64x1xf32> to vector<64x128xf32>
      %32 = arith.addf %30, %31 : vector<64x128xf32>
      %cst_13 = arith.constant 0.000000e+00 : f32
      %33 = vector.broadcast %cst_13 : f32 to vector<64x128xf32>
      %34 = arith.maximumf %32, %33 : vector<64x128xf32>
      %35 = arith.maximumf %27, %34 : vector<64x128xf32>
      %36 = arith.addf %27, %34 : vector<64x128xf32>
      %37 = vector.extract_strided_slice %18 {offsets = [0, 256], sizes = [64, 128], strides = [1, 1]} : vector<64x512xf32> to vector<64x128xf32>
      %38 = vector.broadcast %19 : vector<64x1xf32> to vector<64x128xf32>
      %39 = arith.mulf %37, %38 : vector<64x128xf32>
      %40 = vector.broadcast %20 : vector<64x1xf32> to vector<64x128xf32>
      %41 = arith.addf %39, %40 : vector<64x128xf32>
      %cst_14 = arith.constant 0.000000e+00 : f32
      %42 = vector.broadcast %cst_14 : f32 to vector<64x128xf32>
      %43 = arith.maximumf %41, %42 : vector<64x128xf32>
      %44 = arith.maximumf %35, %43 : vector<64x128xf32>
      %45 = arith.addf %36, %43 : vector<64x128xf32>
      %46 = vector.extract_strided_slice %18 {offsets = [0, 384], sizes = [64, 128], strides = [1, 1]} : vector<64x512xf32> to vector<64x128xf32>
      %47 = vector.broadcast %19 : vector<64x1xf32> to vector<64x128xf32>
      %48 = arith.mulf %46, %47 : vector<64x128xf32>
      %49 = vector.broadcast %20 : vector<64x1xf32> to vector<64x128xf32>
      %50 = arith.addf %48, %49 : vector<64x128xf32>
      %cst_15 = arith.constant 0.000000e+00 : f32
      %51 = vector.broadcast %cst_15 : f32 to vector<64x128xf32>
      %52 = arith.maximumf %50, %51 : vector<64x128xf32>
      %53 = arith.maximumf %44, %52 : vector<64x128xf32>
      %54 = arith.addf %45, %52 : vector<64x128xf32>
      %cst_16 = arith.constant 2.500000e-01 : f32
      %55 = vector.broadcast %cst_16 : f32 to vector<64x128xf32>
      %56 = arith.mulf %54, %55 : vector<64x128xf32>
      %57 = arith.addf %53, %56 : vector<64x128xf32>
      %c0_17 = arith.constant 0 : index
      %c0_18 = arith.constant 0 : index
      %58 = vector.load %arg6[%c0_17, %c0_18] : memref<64x128xf32, #tpu.memory_space<vmem>>, vector<64x128xf32>
      tpu.vector_store %arg6[%c0_17, %c0_18], %57 {strides = array<i32>} : memref<64x128xf32, #tpu.memory_space<vmem>>, vector<64x128xf32>,
    } else {
    }
    return
  }
  func.func @transform_0(%arg0: i32, %arg1: i32) -> (i32, i32, i32) {
    %c1_i32 = arith.constant 1 : i32
    %0 = arith.subi %c1_i32, %arg0 : i32
    %1 = arith.muli %arg1, %0 : i32
    %c0_i32 = arith.constant 0 : i32
    %2 = arith.muli %c0_i32, %arg0 : i32
    %3 = arith.addi %1, %2 : i32
    %c0_i32_0 = arith.constant 0 : i32
    %c0_i32_1 = arith.constant 0 : i32
    %c0_i32_2 = arith.constant 0 : i32
    return %3, %c0_i32_0, %c0_i32_1 : i32, i32, i32
  }
  func.func @transform_1(%arg0: i32, %arg1: i32) -> (i32, i32) {
    %c0_i32 = arith.constant 0 : i32
    %c0_i32_0 = arith.constant 0 : i32
    %c0_i32_1 = arith.constant 0 : i32
    return %c0_i32, %c0_i32_0 : i32, i32
  }
  func.func @transform_2(%arg0: i32, %arg1: i32) -> (i32, i32) {
    %c0_i32 = arith.constant 0 : i32
    %c0_i32_0 = arith.constant 0 : i32
    %c0_i32_1 = arith.constant 0 : i32
    return %c0_i32, %c0_i32_0 : i32, i32
  }
  func.func @transform_3(%arg0: i32, %arg1: i32) -> (i32, i32) {
    %c0_i32 = arith.constant 0 : i32
    %c0_i32_0 = arith.constant 0 : i32
    %c0_i32_1 = arith.constant 0 : i32
    return %c0_i32, %c0_i32_0 : i32, i32
  }
  func.func @transform_4(%arg0: i32, %arg1: i32) -> (i32, i32) {
    %0 = arith.muli %arg0, %arg1 : i32
    %c0_i32 = arith.constant 0 : i32
    %c0_i32_0 = arith.constant 0 : i32
    return %c0_i32, %0 : i32, i32
  }
}

</mosaic_0001>

<llo_original>
// kernel: depthnet_forward.4
$region0: #{depthnet_forward.4}
  #allocation0 [shape = 'u32[]', space=smem, size = 0x4, offset = 0x4, fixed_abs, tag = 'smem constant byte address 0x4 - core index']
  #allocation1 [shape = 'u32[72,128]{1,0:T(1,128)}', space=vmem, size = 0x9000, scoped, tag = 'internal scratch']
  #allocation2 [shape = 'f32[1,4,512]{2,1,0:T(4,128)}', space=vmem, size = 0x2000, scoped, tag = 'scratch operand']
  #allocation3 [shape = 'f32[4,128]{1,0:T(4,128)}', space=vmem, size = 0x800, scoped, tag = 'scratch operand']
  #allocation4 [shape = 'f32[4,128]{1,0:T(4,128)}', space=vmem, size = 0x800, scoped, tag = 'scratch operand']
  #allocation5 [shape = 'f32[4,1]{1,0:T(4,128)}', space=vmem, size = 0x800, scoped, tag = 'scratch operand']
  #allocation6 [shape = 'f32[4,1]{1,0:T(4,128)}', space=vmem, size = 0x800, scoped, tag = 'scratch operand']
  %s0 = inlined_call_operand.vmem [shape: bf16[1,9,512], index: 0, kind: input, shape index: {}]
  %s1 = inlined_call_operand.vmem [shape: bf16[4,9], index: 1, kind: input, shape index: {}]
  %s2 = inlined_call_operand.vmem [shape: f32[4,1], index: 2, kind: input, shape index: {}]
  %s3 = inlined_call_operand.vmem [shape: f32[4,1], index: 3, kind: input, shape index: {}]
  %s4 = inlined_call_operand.vmem [shape: f32[4,128], index: 4, kind: output, shape index: {}]
  %s5 = sld [smem:[#allocation0]]
  $region65: #{depthnet_forward.4} parent=0
    _
  %s7 = ssub.s32 1, %s5
  %s8 = scalar_select 0, %s7, %s5
  loop: start=0, step=1, limit=4
  $region2: #{depthnet_forward.4} parent=0 // loop_pre_header
    _
  $region3: #{depthnet_forward.4} parent=0 // loop_header
    %s10 = sphi 0, %s14
    %p11 = scmp.ge.s32.totalorder %s10, 4
    %s17 = sphi 0, %s29
    %s18 = sphi 0, %s25
    %s19 = sphi 0, %s17
    %s20 = sphi 0, %s18
    %s21 = sphi 0, %s19
    %s22 = sphi 0, %s20
    %s36 = sphi 0, %s38
    %s39 = sphi 0, %s36
    %s40 = sphi 0, %s39
    %s56 = sphi 0, %s40
    %s60 = sphi 0, %s60
    %s62 = sphi 0, %s60
    %s63 = sphi 0, %s62
    %s77 = sphi 0, %s63
    %s81 = sphi 0, %s81
    %s83 = sphi 0, %s81
    %s84 = sphi 0, %s83
    %s98 = sphi 0, %s84
    %s102 = sphi 0, %s102
    %s104 = sphi 0, %s102
    %s105 = sphi 0, %s104
    %s119 = sphi 0, %s105
    %s127 = sphi 0, %s129
    %s130 = sphi 0, %s127
    %s131 = sphi 0, %s130
    %s147 = sphi 0, %s131
  $region4: #{depthnet_forward.4} parent=0 // loop_header_branch
    %13 = sbr.rel (%p11) target = $region8
  $region5: #{depthnet_forward.4} parent=0 // loop_body
    %s15 = ssub.s32 %s10, 1
    %s16 = ssub.s32 %s10, 2
    %s23 = sadd.s32 1, %s18
    %p24 = scmp.ge.s32.totalorder %s23, 1
    %s25 = scalar_select %p24, 0, %s23
    %s26 = sadd.s32 1, %s17
    %s27 = scalar_select %p24, %s26, %s17
    %p28 = scmp.ge.s32.totalorder %s27, 2
    %s29 = scalar_select %p28, 0, %s27
    %s30 = ssub.s32 1, %s17
    %s31 = smul.u32 %s18, %s30
    %s32 = ssub.s32 1, %s29
    %s33 = smul.u32 %s25, %s32
    %s34 = ssub.s32 %s31, %s33
    %p35 = scmp.eq.s32.totalorder %s34, 0
    %s37 = sadd.s32 %s36, 1
    %s38 = scalar_select %p35, %s36, %s37
    %p41 = pneg %p35
    %p42 = scmp.eq.s32.totalorder %s10, 1
    %p43 = por %p41, %p42
    %p44 = scmp.ne.s32.totalorder %s36, %s39
    %p45 = scmp.eq.s32.totalorder %s10, 0
    %p46 = por %p44, %p45
    %p47 = scmp.ne.s32.totalorder %s36, %s39
    %p48 = scmp.eq.s32.totalorder %s15, 1
    %p49 = por %p47, %p48
    %p50 = scmp.ne.s32.totalorder %s39, %s40
    %p51 = scmp.eq.s32.totalorder %s15, 0
    %p52 = por %p50, %p51
    %p53 = scmp.ne.s32.totalorder %s39, %s40
    %p54 = scmp.eq.s32.totalorder %s16, 1
    %p55 = por %p53, %p54
    %p57 = scmp.ne.s32.totalorder %s40, %s56
    %p58 = scmp.eq.s32.totalorder %s16, 0
    %p59 = por %p57, %p58
    %s61 = sadd.s32 %s60, 1
    %p64 = scmp.eq.s32.totalorder %s10, 1
    %p65 = scmp.ne.s32.totalorder %s60, %s62
    %p66 = scmp.eq.s32.totalorder %s10, 0
    %p67 = por %p65, %p66
    %p68 = scmp.ne.s32.totalorder %s60, %s62
    %p69 = scmp.eq.s32.totalorder %s15, 1
    %p70 = por %p68, %p69
    %p71 = scmp.ne.s32.totalorder %s62, %s63
    %p72 = scmp.eq.s32.totalorder %s15, 0
    %p73 = por %p71, %p72
    %p74 = scmp.ne.s32.totalorder %s62, %s63
    %p75 = scmp.eq.s32.totalorder %s16, 1
    %p76 = por %p74, %p75
    %p78 = scmp.ne.s32.totalorder %s63, %s77
    %p79 = scmp.eq.s32.totalorder %s16, 0
    %p80 = por %p78, %p79
    %s82 = sadd.s32 %s81, 1
    %p85 = scmp.eq.s32.totalorder %s10, 1
    %p86 = scmp.ne.s32.totalorder %s81, %s83
    %p87 = scmp.eq.s32.totalorder %s10, 0
    %p88 = por %p86, %p87
    %p89 = scmp.ne.s32.totalorder %s81, %s83
    %p90 = scmp.eq.s32.totalorder %s15, 1
    %p91 = por %p89, %p90
    %p92 = scmp.ne.s32.totalorder %s83, %s84
    %p93 = scmp.eq.s32.totalorder %s15, 0
    %p94 = por %p92, %p93
    %p95 = scmp.ne.s32.totalorder %s83, %s84
    %p96 = scmp.eq.s32.totalorder %s16, 1
    %p97 = por %p95, %p96
    %p99 = scmp.ne.s32.totalorder %s84, %s98
    %p100 = scmp.eq.s32.totalorder %s16, 0
    %p101 = por %p99, %p100
    %s103 = sadd.s32 %s102, 1
    %p106 = scmp.eq.s32.totalorder %s10, 1
    %p107 = scmp.ne.s32.totalorder %s102, %s104
    %p108 = scmp.eq.s32.totalorder %s10, 0
    %p109 = por %p107, %p108
    %p110 = scmp.ne.s32.totalorder %s102, %s104
    %p111 = scmp.eq.s32.totalorder %s15, 1
    %p112 = por %p110, %p111
    %p113 = scmp.ne.s32.totalorder %s104, %s105
    %p114 = scmp.eq.s32.totalorder %s15, 0
    %p115 = por %p113, %p114
    %p116 = scmp.ne.s32.totalorder %s104, %s105
    %p117 = scmp.eq.s32.totalorder %s16, 1
    %p118 = por %p116, %p117
    %p120 = scmp.ne.s32.totalorder %s105, %s119
    %p121 = scmp.eq.s32.totalorder %s16, 0
    %p122 = por %p120, %p121
    %s123 = smul.u32 %s17, %s18
    %s124 = smul.u32 %s29, %s25
    %s125 = ssub.s32 %s123, %s124
    %p126 = scmp.eq.s32.totalorder %s125, 0
    %s128 = sadd.s32 %s127, 1
    %s129 = scalar_select %p126, %s127, %s128
    %p132 = pneg %p126
    %p133 = scmp.eq.s32.totalorder %s10, 1
    %p134 = por %p132, %p133
    %p135 = scmp.ne.s32.totalorder %s127, %s130
    %p136 = scmp.eq.s32.totalorder %s10, 0
    %p137 = por %p135, %p136
    %p138 = scmp.ne.s32.totalorder %s127, %s130
    %p139 = scmp.eq.s32.totalorder %s15, 1
    %p140 = por %p138, %p139
    %p141 = scmp.ne.s32.totalorder %s130, %s131
    %p142 = scmp.eq.s32.totalorder %s15, 0
    %p143 = por %p141, %p142
    %p144 = scmp.ne.s32.totalorder %s130, %s131
    %p145 = scmp.eq.s32.totalorder %s16, 1
    %p146 = por %p144, %p145
    %p148 = scmp.ne.s32.totalorder %s131, %s147
    %p149 = scmp.eq.s32.totalorder %s16, 0
    %p150 = por %p148, %p149
    %p151 = scmp.le.s32.totalorder 1, %s10
    %p152 = scmp.lt.s32.totalorder %s10, 3
    %p153 = pnand %p151, %p152
    %p154 = pneg %p153
    // Predicated region
    $region9: #{depthnet_forward.4} parent=5 // pred_check
      _
    $region10: #{depthnet_forward.4} parent=5 // pred_check_branch
      %156 = sbr.rel (%p153) target = $region12
    $region11: #{depthnet_forward.4} parent=5 // pred_region
      %s157 = ssub.s32 %s10, 1
      // Predicated region
      $region13: #{depthnet_forward.4} parent=11 // pred_check
        %p158 = pneg %p73
      $region14: #{depthnet_forward.4} parent=11 // pred_check_branch
        %160 = sbr.rel (%p158) target = $region16
      $region15: #{depthnet_forward.4} parent=11 // pred_region
        _
      $region16: #{depthnet_forward.4} parent=11 // pred_fallthru
        _
      // Predicated region
      $region17: #{depthnet_forward.4} parent=11 // pred_check
        %p161 = pneg %p94
      $region18: #{depthnet_forward.4} parent=11 // pred_check_branch
        %163 = sbr.rel (%p161) target = $region20
      $region19: #{depthnet_forward.4} parent=11 // pred_region
        _
      $region20: #{depthnet_forward.4} parent=11 // pred_fallthru
        _
      // Predicated region
      $region21: #{depthnet_forward.4} parent=11 // pred_check
        %p164 = pneg %p115
      $region22: #{depthnet_forward.4} parent=11 // pred_check_branch
        %166 = sbr.rel (%p164) target = $region24
      $region23: #{depthnet_forward.4} parent=11 // pred_region
        _
      $region24: #{depthnet_forward.4} parent=11 // pred_fallthru
        _
    $region12: #{depthnet_forward.4} parent=5 // pred_fallthru
      _
    %p167 = scmp.lt.s32.totalorder %s10, 2
    // Predicated region
    $region25: #{depthnet_forward.4} parent=5 // pred_check
      %p168 = pneg %p167
    $region26: #{depthnet_forward.4} parent=5 // pred_check_branch
      %170 = sbr.rel (%p168) target = $region28
    $region27: #{depthnet_forward.4} parent=5 // pred_region
      // Predicated region
      $region29: #{depthnet_forward.4} parent=27 // pred_check
        %p171 = pneg %p46
      $region30: #{depthnet_forward.4} parent=27 // pred_check_branch
        %173 = sbr.rel (%p171) target = $region32
      $region31: #{depthnet_forward.4} parent=27 // pred_region
        %s174 = ssub.s32 1, %s17
        %s175 = smul.u32 %s18, %s174
        %p176 = scmp.lt.s32.totalorder %s175, 0
        %s177 = scalar_select %p176, %s175, 0
        %s178 = smul.addr %s177, 8
        %s179 = smul.addr %s178, 4
        %s180 = scalar_lea.vmem %s0, %s179
        %s181 = ssub.s32 1, %s17
        %s182 = smul.u32 %s18, %s181
      $region32: #{depthnet_forward.4} parent=27 // pred_fallthru
        _
    $region28: #{depthnet_forward.4} parent=5 // pred_fallthru
      _
    %p183 = scmp.le.s32.totalorder 1, %s10
    %p184 = scmp.lt.s32.totalorder %s10, 3
    %p185 = pnand %p183, %p184
    %p186 = pneg %p185
    // Predicated region
    $region33: #{depthnet_forward.4} parent=5 // pred_check
      _
    $region34: #{depthnet_forward.4} parent=5 // pred_check_branch
      %188 = sbr.rel (%p185) target = $region36
    $region35: #{depthnet_forward.4} parent=5 // pred_region
      %s189 = ssub.s32 %s10, 1
      %s190 = ssub.s32 1, %s19
      %s191 = smul.u32 %s20, %s190
      %p192 = scmp.lt.s32.totalorder %s191, 0
      %s193 = scalar_select %p192, %s191, 0
      %s194 = smul.addr %s193, 8
      %s195 = smul.addr %s194, 4
      %s196 = scalar_lea.vmem %s0, %s195
      %p197 = pneg %p52
      %p198 = pneg %p49
      %p199 = pneg %p73
      %p200 = pneg %p70
      %p201 = pneg %p94
      %p202 = pneg %p91
      %p203 = pneg %p115
      %p204 = pneg %p112
      %p205 = pneg %p143
      %p206 = pneg %p140
      %s207 = smul.u32 %s19, %s20
      %p208 = scmp.lt.s32.totalorder %s207, 0
      %s209 = scalar_select %p208, %s207, 0
      %s210 = smul.addr %s209, 4
      %s211 = scalar_lea.vmem %s4, %s210
      %s212 = ssub.s32 1, %s19
      %s213 = smul.u32 %s20, %s212
      %p214 = scmp.lt.s32.totalorder %s213, 0
      %s215 = scalar_select %p214, %s213, 0
      %s216 = smul.addr %s215, 8
      %s217 = smul.addr %s216, 4
      %s218 = scalar_lea.vmem %s0, %s217
      %s219 = ssub.s32 1, %s19
      %s220 = smul.u32 %s20, %s219
      %s221 = smul.u32 %s19, %s20
      %p222 = scmp.lt.s32.totalorder %s221, 0
      %s223 = scalar_select %p222, %s221, 0
      %s224 = smul.addr %s223, 4
      %s225 = scalar_lea.vmem %s4, %s224
      %s226 = smul.u32 %s19, %s20
      %p228 = scmp.eq.s32.totalorder %s19, 0
      %p229 = scmp.eq.s32.totalorder %s20, 0
      %p230 = pnand %p228, %p229
      %p231 = pneg %p230
      // Predicated region
      $region37: #{depthnet_forward.4} parent=35 // pred_check
        _
      $region38: #{depthnet_forward.4} parent=35 // pred_check_branch
        %233 = sbr.rel (%p230) target = $region40
      $region39: #{depthnet_forward.4} parent=35 // pred_region
        %234 = vst [vmem:[#allocation3] sm:$0xf] 0.0
        %235 = vst [vmem:[#allocation4] sm:$0xf] 0.0
      $region40: #{depthnet_forward.4} parent=35 // pred_fallthru
        _
      // Predicated region
      $region41: #{depthnet_forward.4} parent=35 // pred_check
        %p236 = pneg %p228
      $region42: #{depthnet_forward.4} parent=35 // pred_check_branch
        %238 = sbr.rel (%p236) target = $region44
      $region43: #{depthnet_forward.4} parent=35 // pred_region
        %v239 = vld [vmem:[%s1] sm:$0x3]
        %v240 = vld [vmem:[%s218] sm:$0xff]
        %v241 = vld [vmem:[%s218 + $0x8] sm:$0xff]
        %v242 = vld [vmem:[%s218 + $0x10] sm:$0x11]
        %v243 = vld [vmem:[%s218 + $0x18] sm:$0x11]
        %v248 = vunpack.c.l.b16 %v240
        %v249 = vunpack.c.h.b16 %v240
        %v250 = vunpack.c.l.b16 %v241
        %v251 = vunpack.c.h.b16 %v241
        %v252 = vunpack.c.l.b16 %v242
        %v253 = vunpack.c.h.b16 %v242
        %v254 = vunpack.c.l.b16 %v243
        %v255 = vunpack.c.h.b16 %v243
        %v256 = vpack.c.b16 %v252, %v248
        %v257 = vpack.c.b16 %v253, %v249
        %v258 = vpack.c.b16 %v254, %v250
        %v259 = vpack.c.b16 %v255, %v251
        %vm260 = vcmask 72704
        %v262 = vsel %vm260, %v239, 0
        %vm264 = vcmask 1043456
        %vm265 = vcmask 1044480
        %v266 = vsel %vm264, 4294967295, 65535
        %v267 = vsel %vm265, %v266, 0
        %v269 = vand.u32 %v256, %v267
        %v272 = vand.u32 %v257, %v267
        %v275 = vand.u32 %v258, %v267
        %v278 = vand.u32 %v259, %v267
        %280 = vmatpush.bf16.msra.mxu0 0
        %281 = vmatpush.bf16.msra.mxu0 0
        %282 = vmatpush.bf16.msra.mxu0 0
        %283 = vmatpush.bf16.msra.mxu0 0
        %284 = vmatpush.bf16.msra.mxu0 0
        %285 = vmatpush.bf16.msra.mxu0 0
        %286 = vmatpush.bf16.msra.mxu0 0
        %287 = vmatpush.bf16.msra.mxu0 %v269
        %288 = vmatmul.bf16.gmra.mxu0 %v262
        %v289 = vpop.f32.mrf.mxu0
        %v290 = vadd.f32 0.0, %v289
        %v291 = vpop.f32.mrf.mxu0
        %292 = vdwg.mxu0
        %293 = vmatpush.bf16.msra.mxu0 0
        %294 = vmatpush.bf16.msra.mxu0 0
        %295 = vmatpush.bf16.msra.mxu0 0
        %296 = vmatpush.bf16.msra.mxu0 0
        %297 = vmatpush.bf16.msra.mxu0 0
        %298 = vmatpush.bf16.msra.mxu0 0
        %299 = vmatpush.bf16.msra.mxu0 0
        %300 = vmatpush.bf16.msra.mxu0 %v272
        %301 = vmatmul.bf16.gmra.mxu0 %v262
        %v302 = vpop.f32.mrf.mxu0
        %v303 = vadd.f32 0.0, %v302
        %v304 = vpop.f32.mrf.mxu0
        %305 = vdwg.mxu0
        %306 = vmatpush.bf16.msra.mxu0 0
        %307 = vmatpush.bf16.msra.mxu0 0
        %308 = vmatpush.bf16.msra.mxu0 0
        %309 = vmatpush.bf16.msra.mxu0 0
        %310 = vmatpush.bf16.msra.mxu0 0
        %311 = vmatpush.bf16.msra.mxu0 0
        %312 = vmatpush.bf16.msra.mxu0 0
        %313 = vmatpush.bf16.msra.mxu0 %v275
        %314 = vmatmul.bf16.gmra.mxu0 %v262
        %v315 = vpop.f32.mrf.mxu0
        %v316 = vadd.f32 0.0, %v315
        %v317 = vpop.f32.mrf.mxu0
        %318 = vdwg.mxu0
        %319 = vmatpush.bf16.msra.mxu0 0
        %320 = vmatpush.bf16.msra.mxu0 0
        %321 = vmatpush.bf16.msra.mxu0 0
        %322 = vmatpush.bf16.msra.mxu0 0
        %323 = vmatpush.bf16.msra.mxu0 0
        %324 = vmatpush.bf16.msra.mxu0 0
        %325 = vmatpush.bf16.msra.mxu0 0
        %326 = vmatpush.bf16.msra.mxu0 %v278
        %327 = vmatmul.bf16.gmra.mxu0 %v262
        %v328 = vpop.f32.mrf.mxu0
        %v329 = vadd.f32 0.0, %v328
        %v330 = vpop.f32.mrf.mxu0
        %331 = vdwg.mxu0
        %v336 = vrot.slane %v303, 4
        %v337 = vrot.slane %v329, 4
        %v338 = vsel %vm264, %v290, %v336
        %v339 = vsel %vm264, %v316, %v337
        %s342 = smul.u32 %s20, 4
        %s343 = smul.addr %s342, 4
        %s344 = scalar_lea.vmem [#allocation2], %s343
        %345 = vst [vmem:[%s344] sm:$0xff] %v338
        %346 = vst [vmem:[%s344 + $0x8] sm:$0xff] %v339
        %v347 = vld [vmem:[#allocation3] sm:$0xf]
        %v348 = vld [vmem:[#allocation4] sm:$0xf]
        %v349 = vadd.f32 %v347, %v290
        %v350 = vmul.f32 %v290, %v290
        %v351 = vadd.f32 %v348, %v350
        %v352 = vadd.f32 %v349, %v303
        %v353 = vmul.f32 %v303, %v303
        %v354 = vadd.f32 %v351, %v353
        %v355 = vadd.f32 %v352, %v316
        %v356 = vmul.f32 %v316, %v316
        %v357 = vadd.f32 %v354, %v356
        %v358 = vadd.f32 %v355, %v329
        %v359 = vmul.f32 %v329, %v329
        %v360 = vadd.f32 %v357, %v359
        %361 = vst [vmem:[#allocation3] sm:$0xf] %v358
        %362 = vst [vmem:[#allocation4] sm:$0xf] %v360
      $region44: #{depthnet_forward.4} parent=35 // pred_fallthru
        _
      %p363 = scmp.eq.s32.totalorder %s19, 1
      %p364 = pnand %p363, %p229
      %p365 = pneg %p364
      // Predicated region
      $region45: #{depthnet_forward.4} parent=35 // pred_check
        _
      $region46: #{depthnet_forward.4} parent=35 // pred_check_branch
        %367 = sbr.rel (%p364) target = $region48
      $region47: #{depthnet_forward.4} parent=35 // pred_region
        %v368 = vld [vmem:[#allocation3] sm:$0xf]
        %vm369 = vcmask 1043456
        %v370 = vsel %vm369, %v368, 0.0
        %371 = vadd.xlane.f32.xlu0 %v370
        %v372 = vpop.xlane.xlu0 %371
        %v373 = vmul.f32 %v372, 0.001953125
        %v374 = vld [vmem:[#allocation4] sm:$0xf]
        %v375 = vsel %vm369, %v374, 0.0
        %376 = vadd.xlane.f32.xlu0 %v375
        %v377 = vpop.xlane.xlu0 %376
        %v378 = vmul.f32 %v377, 0.001953125
        %v379 = vmul.f32 %v373, %v373
        %v380 = vsub.f32 %v378, %v379
        %v381 = vmax.f32 %v380, 0.0
        %v382 = vld [vmem:[%s2] sm:$0xf]
        %v383 = vadd.f32 %v381, 1e-05
        %v384 = vrsqrt.pop %v383
        %v385 = vmul.f32 %v384, %v383
        %v386 = vmul.f32 %v385, %v384
        %v387 = vmul.f32 0.5, %v386
        %v388 = vsub.f32 1.5, %v387
        %v389 = vmul.f32 %v384, %v388
        %vm390 = vweird.f32 %v383
        %vm391 = vweird.f32 %v384
        %vm392 = vmor %vm390, %vm391
        %v393 = vsel %vm392, %v384, %v389
        %v394 = vmul.f32 %v382, %v393
        %vm395 = vcmask 3072
        %396 = vst.msk [vmem:[#allocation5] sm:$0xf] %vm395, %v394
        %v397 = vld [vmem:[%s3] sm:$0xf]
        %v398 = vmul.f32 %v373, %v394
        %v399 = vsub.f32 %v397, %v398
        %400 = vst.msk [vmem:[#allocation6] sm:$0xf] %vm395, %v399
      $region48: #{depthnet_forward.4} parent=35 // pred_fallthru
        _
      // Predicated region
      $region49: #{depthnet_forward.4} parent=35 // pred_check
        %p401 = pneg %p363
      $region50: #{depthnet_forward.4} parent=35 // pred_check_branch
        %403 = sbr.rel (%p401) target = $region52
      $region51: #{depthnet_forward.4} parent=35 // pred_region
        %s404 = smul.u32 %s20, 4
        %s405 = smul.addr %s404, 4
        %s406 = scalar_lea.vmem [#allocation2], %s405
        %v407 = vld [vmem:[%s406] sm:$0xff]
        %v408 = vld [vmem:[%s406 + $0x8] sm:$0xff]
        %v409 = vld [vmem:[#allocation5] sm:$0xf]
        %v410 = vld [vmem:[#allocation6] sm:$0xf]
        %412 = vset.pattern.permute.xlu0 0
        %413 = vperm.xlu0 %412, %v409
        %v414 = vpop.permute.xlu0 %413
        %v416 = vmul.f32 %v407, %v414
        %418 = vset.pattern.permute.xlu0 0
        %419 = vperm.xlu0 %418, %v410
        %v420 = vpop.permute.xlu0 %419
        %v422 = vadd.f32 %v416, %v420
        %v423 = vmax.f32 %v422, 0.0
        %v425 = vrot.slane %v407, 4
        %v427 = vmul.f32 %v425, %v414
        %v428 = vadd.f32 %v427, %v420
        %v429 = vmax.f32 %v428, 0.0
        %v430 = vmax.f32 %v423, %v429
        %v431 = vadd.f32 %v423, %v429
        %v432 = vmul.f32 %v408, %v414
        %v433 = vadd.f32 %v432, %v420
        %v434 = vmax.f32 %v433, 0.0
        %v435 = vmax.f32 %v430, %v434
        %v436 = vadd.f32 %v431, %v434
        %v438 = vrot.slane %v408, 4
        %v440 = vmul.f32 %v438, %v414
        %v441 = vadd.f32 %v440, %v420
        %v442 = vmax.f32 %v441, 0.0
        %v443 = vmax.f32 %v435, %v442
        %v444 = vadd.f32 %v436, %v442
        %v445 = vmul.f32 %v444, 0.25
        %v446 = vadd.f32 %v443, %v445
        %447 = vst [vmem:[%s225] sm:$0xf] %v446
      $region52: #{depthnet_forward.4} parent=35 // pred_fallthru
        _
      %s448 = smul.u32 %s19, %s20
      %p449 = scmp.lt.s32.totalorder %s448, 0
      %s450 = scalar_select %p449, %s448, 0
      %s451 = smul.addr %s450, 4
      %s452 = scalar_lea.vmem %s4, %s451
      // Predicated region
      $region53: #{depthnet_forward.4} parent=35 // pred_check
        %p453 = pneg %p140
      $region54: #{depthnet_forward.4} parent=35 // pred_check_branch
        %455 = sbr.rel (%p453) target = $region56
      $region55: #{depthnet_forward.4} parent=35 // pred_region
        %s456 = smul.u32 %s19, %s20
      $region56: #{depthnet_forward.4} parent=35 // pred_fallthru
        _
    $region36: #{depthnet_forward.4} parent=5 // pred_fallthru
      _
    %p457 = scmp.le.s32.totalorder 2, %s10
    // Predicated region
    $region57: #{depthnet_forward.4} parent=5 // pred_check
      %p458 = pneg %p457
    $region58: #{depthnet_forward.4} parent=5 // pred_check_branch
      %460 = sbr.rel (%p458) target = $region60
    $region59: #{depthnet_forward.4} parent=5 // pred_region
      %s461 = ssub.s32 %s10, 2
      // Predicated region
      $region61: #{depthnet_forward.4} parent=59 // pred_check
        %p462 = pneg %p146
      $region62: #{depthnet_forward.4} parent=59 // pred_check_branch
        %464 = sbr.rel (%p462) target = $region64
      $region63: #{depthnet_forward.4} parent=59 // pred_region
        %s465 = smul.u32 %s21, %s22
        %p466 = scmp.lt.s32.totalorder %s465, 0
        %s467 = scalar_select %p466, %s465, 0
        %s468 = smul.addr %s467, 4
        %s469 = scalar_lea.vmem %s4, %s468
      $region64: #{depthnet_forward.4} parent=59 // pred_fallthru
        _
    $region60: #{depthnet_forward.4} parent=5 // pred_fallthru
      _
  $region6: #{depthnet_forward.4} parent=0 // loop_footer
    %s14 = sadd.s32 1, %s10
  $region7: #{depthnet_forward.4} parent=0 // loop_footer_branch
    %9 = sbr.rel target = $region3
  $region8: #{depthnet_forward.4} parent=0 // loop_exit
    _

// kernel: depthnet_forward.5
$region0: #{depthnet_forward.5}
  #allocation0 [shape = 'u32[]', space=smem, size = 0x4, offset = 0x4, fixed_abs, tag = 'smem constant byte address 0x4 - core index']
  #allocation1 [shape = 'u32[72,128]{1,0:T(1,128)}', space=vmem, size = 0x9000, scoped, tag = 'internal scratch']
  #allocation2 [shape = 'f32[1,16,512]{2,1,0:T(8,128)}', space=vmem, size = 0x8000, scoped, tag = 'scratch operand']
  #allocation3 [shape = 'f32[16,128]{1,0:T(8,128)}', space=vmem, size = 0x2000, scoped, tag = 'scratch operand']
  #allocation4 [shape = 'f32[16,128]{1,0:T(8,128)}', space=vmem, size = 0x2000, scoped, tag = 'scratch operand']
  #allocation5 [shape = 'f32[16,1]{1,0:T(8,128)}', space=vmem, size = 0x2000, scoped, tag = 'scratch operand']
  #allocation6 [shape = 'f32[16,1]{1,0:T(8,128)}', space=vmem, size = 0x2000, scoped, tag = 'scratch operand']
  %s0 = inlined_call_operand.vmem [shape: bf16[1,36,512], index: 0, kind: input, shape index: {}]
  %s1 = inlined_call_operand.vmem [shape: bf16[16,36], index: 1, kind: input, shape index: {}]
  %s2 = inlined_call_operand.vmem [shape: f32[16,1], index: 2, kind: input, shape index: {}]
  %s3 = inlined_call_operand.vmem [shape: f32[16,1], index: 3, kind: input, shape index: {}]
  %s4 = inlined_call_operand.vmem [shape: f32[16,128], index: 4, kind: output, shape index: {}]
  %s5 = sld [smem:[#allocation0]]
  $region65: #{depthnet_forward.5} parent=0
    _
  %s7 = ssub.s32 1, %s5
  %s8 = scalar_select 0, %s7, %s5
  loop: start=0, step=1, limit=4
  $region2: #{depthnet_forward.5} parent=0 // loop_pre_header
    _
  $region3: #{depthnet_forward.5} parent=0 // loop_header
    %s10 = sphi 0, %s14
    %p11 = scmp.ge.s32.totalorder %s10, 4
    %s17 = sphi 0, %s29
    %s18 = sphi 0, %s25
    %s19 = sphi 0, %s17
    %s20 = sphi 0, %s18
    %s21 = sphi 0, %s19
    %s22 = sphi 0, %s20
    %s36 = sphi 0, %s38
    %s39 = sphi 0, %s36
    %s40 = sphi 0, %s39
    %s56 = sphi 0, %s40
    %s60 = sphi 0, %s60
    %s62 = sphi 0, %s60
    %s63 = sphi 0, %s62
    %s77 = sphi 0, %s63
    %s81 = sphi 0, %s81
    %s83 = sphi 0, %s81
    %s84 = sphi 0, %s83
    %s98 = sphi 0, %s84
    %s102 = sphi 0, %s102
    %s104 = sphi 0, %s102
    %s105 = sphi 0, %s104
    %s119 = sphi 0, %s105
    %s127 = sphi 0, %s129
    %s130 = sphi 0, %s127
    %s131 = sphi 0, %s130
    %s147 = sphi 0, %s131
  $region4: #{depthnet_forward.5} parent=0 // loop_header_branch
    %13 = sbr.rel (%p11) target = $region8
  $region5: #{depthnet_forward.5} parent=0 // loop_body
    %s15 = ssub.s32 %s10, 1
    %s16 = ssub.s32 %s10, 2
    %s23 = sadd.s32 1, %s18
    %p24 = scmp.ge.s32.totalorder %s23, 1
    %s25 = scalar_select %p24, 0, %s23
    %s26 = sadd.s32 1, %s17
    %s27 = scalar_select %p24, %s26, %s17
    %p28 = scmp.ge.s32.totalorder %s27, 2
    %s29 = scalar_select %p28, 0, %s27
    %s30 = ssub.s32 1, %s17
    %s31 = smul.u32 %s18, %s30
    %s32 = ssub.s32 1, %s29
    %s33 = smul.u32 %s25, %s32
    %s34 = ssub.s32 %s31, %s33
    %p35 = scmp.eq.s32.totalorder %s34, 0
    %s37 = sadd.s32 %s36, 1
    %s38 = scalar_select %p35, %s36, %s37
    %p41 = pneg %p35
    %p42 = scmp.eq.s32.totalorder %s10, 1
    %p43 = por %p41, %p42
    %p44 = scmp.ne.s32.totalorder %s36, %s39
    %p45 = scmp.eq.s32.totalorder %s10, 0
    %p46 = por %p44, %p45
    %p47 = scmp.ne.s32.totalorder %s36, %s39
    %p48 = scmp.eq.s32.totalorder %s15, 1
    %p49 = por %p47, %p48
    %p50 = scmp.ne.s32.totalorder %s39, %s40
    %p51 = scmp.eq.s32.totalorder %s15, 0
    %p52 = por %p50, %p51
    %p53 = scmp.ne.s32.totalorder %s39, %s40
    %p54 = scmp.eq.s32.totalorder %s16, 1
    %p55 = por %p53, %p54
    %p57 = scmp.ne.s32.totalorder %s40, %s56
    %p58 = scmp.eq.s32.totalorder %s16, 0
    %p59 = por %p57, %p58
    %s61 = sadd.s32 %s60, 1
    %p64 = scmp.eq.s32.totalorder %s10, 1
    %p65 = scmp.ne.s32.totalorder %s60, %s62
    %p66 = scmp.eq.s32.totalorder %s10, 0
    %p67 = por %p65, %p66
    %p68 = scmp.ne.s32.totalorder %s60, %s62
    %p69 = scmp.eq.s32.totalorder %s15, 1
    %p70 = por %p68, %p69
    %p71 = scmp.ne.s32.totalorder %s62, %s63
    %p72 = scmp.eq.s32.totalorder %s15, 0
    %p73 = por %p71, %p72
    %p74 = scmp.ne.s32.totalorder %s62, %s63
    %p75 = scmp.eq.s32.totalorder %s16, 1
    %p76 = por %p74, %p75
    %p78 = scmp.ne.s32.totalorder %s63, %s77
    %p79 = scmp.eq.s32.totalorder %s16, 0
    %p80 = por %p78, %p79
    %s82 = sadd.s32 %s81, 1
    %p85 = scmp.eq.s32.totalorder %s10, 1
    %p86 = scmp.ne.s32.totalorder %s81, %s83
    %p87 = scmp.eq.s32.totalorder %s10, 0
    %p88 = por %p86, %p87
    %p89 = scmp.ne.s32.totalorder %s81, %s83
    %p90 = scmp.eq.s32.totalorder %s15, 1
    %p91 = por %p89, %p90
    %p92 = scmp.ne.s32.totalorder %s83, %s84
    %p93 = scmp.eq.s32.totalorder %s15, 0
    %p94 = por %p92, %p93
    %p95 = scmp.ne.s32.totalorder %s83, %s84
    %p96 = scmp.eq.s32.totalorder %s16, 1
    %p97 = por %p95, %p96
    %p99 = scmp.ne.s32.totalorder %s84, %s98
    %p100 = scmp.eq.s32.totalorder %s16, 0
    %p101 = por %p99, %p100
    %s103 = sadd.s32 %s102, 1
    %p106 = scmp.eq.s32.totalorder %s10, 1
    %p107 = scmp.ne.s32.totalorder %s102, %s104
    %p108 = scmp.eq.s32.totalorder %s10, 0
    %p109 = por %p107, %p108
    %p110 = scmp.ne.s32.totalorder %s102, %s104
    %p111 = scmp.eq.s32.totalorder %s15, 1
    %p112 = por %p110, %p111
    %p113 = scmp.ne.s32.totalorder %s104, %s105
    %p114 = scmp.eq.s32.totalorder %s15, 0
    %p115 = por %p113, %p114
    %p116 = scmp.ne.s32.totalorder %s104, %s105
    %p117 = scmp.eq.s32.totalorder %s16, 1
    %p118 = por %p116, %p117
    %p120 = scmp.ne.s32.totalorder %s105, %s119
    %p121 = scmp.eq.s32.totalorder %s16, 0
    %p122 = por %p120, %p121
    %s123 = smul.u32 %s17, %s18
    %s124 = smul.u32 %s29, %s25
    %s125 = ssub.s32 %s123, %s124
    %p126 = scmp.eq.s32.totalorder %s125, 0
    %s128 = sadd.s32 %s127, 1
    %s129 = scalar_select %p126, %s127, %s128
    %p132 = pneg %p126
    %p133 = scmp.eq.s32.totalorder %s10, 1
    %p134 = por %p132, %p133
    %p135 = scmp.ne.s32.totalorder %s127, %s130
    %p136 = scmp.eq.s32.totalorder %s10, 0
    %p137 = por %p135, %p136
    %p138 = scmp.ne.s32.totalorder %s127, %s130
    %p139 = scmp.eq.s32.totalorder %s15, 1
    %p140 = por %p138, %p139
    %p141 = scmp.ne.s32.totalorder %s130, %s131
    %p142 = scmp.eq.s32.totalorder %s15, 0
    %p143 = por %p141, %p142
    %p144 = scmp.ne.s32.totalorder %s130, %s131
    %p145 = scmp.eq.s32.totalorder %s16, 1
    %p146 = por %p144, %p145
    %p148 = scmp.ne.s32.totalorder %s131, %s147
    %p149 = scmp.eq.s32.totalorder %s16, 0
    %p150 = por %p148, %p149
    %p151 = scmp.le.s32.totalorder 1, %s10
    %p152 = scmp.lt.s32.totalorder %s10, 3
    %p153 = pnand %p151, %p152
    %p154 = pneg %p153
    // Predicated region
    $region9: #{depthnet_forward.5} parent=5 // pred_check
      _
    $region10: #{depthnet_forward.5} parent=5 // pred_check_branch
      %156 = sbr.rel (%p153) target = $region12
    $region11: #{depthnet_forward.5} parent=5 // pred_region
      %s157 = ssub.s32 %s10, 1
      // Predicated region
      $region13: #{depthnet_forward.5} parent=11 // pred_check
        %p158 = pneg %p73
      $region14: #{depthnet_forward.5} parent=11 // pred_check_branch
        %160 = sbr.rel (%p158) target = $region16
      $region15: #{depthnet_forward.5} parent=11 // pred_region
        _
      $region16: #{depthnet_forward.5} parent=11 // pred_fallthru
        _
      // Predicated region
      $region17: #{depthnet_forward.5} parent=11 // pred_check
        %p161 = pneg %p94
      $region18: #{depthnet_forward.5} parent=11 // pred_check_branch
        %163 = sbr.rel (%p161) target = $region20
      $region19: #{depthnet_forward.5} parent=11 // pred_region
        _
      $region20: #{depthnet_forward.5} parent=11 // pred_fallthru
        _
      // Predicated region
      $region21: #{depthnet_forward.5} parent=11 // pred_check
        %p164 = pneg %p115
      $region22: #{depthnet_forward.5} parent=11 // pred_check_branch
        %166 = sbr.rel (%p164) target = $region24
      $region23: #{depthnet_forward.5} parent=11 // pred_region
        _
      $region24: #{depthnet_forward.5} parent=11 // pred_fallthru
        _
    $region12: #{depthnet_forward.5} parent=5 // pred_fallthru
      _
    %p167 = scmp.lt.s32.totalorder %s10, 2
    // Predicated region
    $region25: #{depthnet_forward.5} parent=5 // pred_check
      %p168 = pneg %p167
    $region26: #{depthnet_forward.5} parent=5 // pred_check_branch
      %170 = sbr.rel (%p168) target = $region28
    $region27: #{depthnet_forward.5} parent=5 // pred_region
      // Predicated region
      $region29: #{depthnet_forward.5} parent=27 // pred_check
        %p171 = pneg %p46
      $region30: #{depthnet_forward.5} parent=27 // pred_check_branch
        %173 = sbr.rel (%p171) target = $region32
      $region31: #{depthnet_forward.5} parent=27 // pred_region
        %s174 = ssub.s32 1, %s17
        %s175 = smul.u32 %s18, %s174
        %p176 = scmp.lt.s32.totalorder %s175, 0
        %s177 = scalar_select %p176, %s175, 0
        %s178 = smul.addr %s177, 20
        %s179 = smul.addr %s178, 4
        %s180 = scalar_lea.vmem %s0, %s179
        %s181 = ssub.s32 1, %s17
        %s182 = smul.u32 %s18, %s181
      $region32: #{depthnet_forward.5} parent=27 // pred_fallthru
        _
    $region28: #{depthnet_forward.5} parent=5 // pred_fallthru
      _
    %p183 = scmp.le.s32.totalorder 1, %s10
    %p184 = scmp.lt.s32.totalorder %s10, 3
    %p185 = pnand %p183, %p184
    %p186 = pneg %p185
    // Predicated region
    $region33: #{depthnet_forward.5} parent=5 // pred_check
      _
    $region34: #{depthnet_forward.5} parent=5 // pred_check_branch
      %188 = sbr.rel (%p185) target = $region36
    $region35: #{depthnet_forward.5} parent=5 // pred_region
      %s189 = ssub.s32 %s10, 1
      %s190 = ssub.s32 1, %s19
      %s191 = smul.u32 %s20, %s190
      %p192 = scmp.lt.s32.totalorder %s191, 0
      %s193 = scalar_select %p192, %s191, 0
      %s194 = smul.addr %s193, 20
      %s195 = smul.addr %s194, 4
      %s196 = scalar_lea.vmem %s0, %s195
      %p197 = pneg %p52
      %p198 = pneg %p49
      %p199 = pneg %p73
      %p200 = pneg %p70
      %p201 = pneg %p94
      %p202 = pneg %p91
      %p203 = pneg %p115
      %p204 = pneg %p112
      %p205 = pneg %p143
      %p206 = pneg %p140
      %s207 = smul.u32 %s19, %s20
      %p208 = scmp.lt.s32.totalorder %s207, 0
      %s209 = scalar_select %p208, %s207, 0
      %s210 = smul.addr %s209, 8
      %s211 = scalar_lea.vmem %s4, %s210
      %s212 = ssub.s32 1, %s19
      %s213 = smul.u32 %s20, %s212
      %p214 = scmp.lt.s32.totalorder %s213, 0
      %s215 = scalar_select %p214, %s213, 0
      %s216 = smul.addr %s215, 20
      %s217 = smul.addr %s216, 4
      %s218 = scalar_lea.vmem %s0, %s217
      %s219 = ssub.s32 1, %s19
      %s220 = smul.u32 %s20, %s219
      %s221 = smul.u32 %s19, %s20
      %p222 = scmp.lt.s32.totalorder %s221, 0
      %s223 = scalar_select %p222, %s221, 0
      %s224 = smul.addr %s223, 8
      %s225 = scalar_lea.vmem %s4, %s224
      %s226 = smul.u32 %s19, %s20
      %p228 = scmp.eq.s32.totalorder %s19, 0
      %p229 = scmp.eq.s32.totalorder %s20, 0
      %p230 = pnand %p228, %p229
      %p231 = pneg %p230
      // Predicated region
      $region37: #{depthnet_forward.5} parent=35 // pred_check
        _
      $region38: #{depthnet_forward.5} parent=35 // pred_check_branch
        %233 = sbr.rel (%p230) target = $region40
      $region39: #{depthnet_forward.5} parent=35 // pred_region
        %234 = vst [vmem:[#allocation3] sm:$0xff] 0.0
        %235 = vst [vmem:[#allocation3 + $0x8] sm:$0xff] 0.0
        %236 = vst [vmem:[#allocation4] sm:$0xff] 0.0
        %237 = vst [vmem:[#allocation4 + $0x8] sm:$0xff] 0.0
      $region40: #{depthnet_forward.5} parent=35 // pred_fallthru
        _
      // Predicated region
      $region41: #{depthnet_forward.5} parent=35 // pred_check
        %p238 = pneg %p228
      $region42: #{depthnet_forward.5} parent=35 // pred_check_branch
        %240 = sbr.rel (%p238) target = $region44
      $region43: #{depthnet_forward.5} parent=35 // pred_region
        %v241 = vld [vmem:[%s1] sm:$0xf]
        %v242 = vld [vmem:[%s1 + $0x4] sm:$0xf]
        %v243 = vld [vmem:[%s218] sm:$0xff]
        %v244 = vld [vmem:[%s218 + $0x8] sm:$0xff]
        %v245 = vld [vmem:[%s218 + $0x10] sm:$0xff]
        %v246 = vld [vmem:[%s218 + $0x18] sm:$0xff]
        %v247 = vld [vmem:[%s218 + $0x20] sm:$0xff]
        %v248 = vld [vmem:[%s218 + $0x28] sm:$0xff]
        %v249 = vld [vmem:[%s218 + $0x30] sm:$0xff]
        %v250 = vld [vmem:[%s218 + $0x38] sm:$0xff]
        %v251 = vld [vmem:[%s218 + $0x40] sm:$0x33]
        %v252 = vld [vmem:[%s218 + $0x48] sm:$0x33]
        %v255 = vunpack.c.l.b16 %v241
        %v256 = vunpack.c.l.b16 %v242
        %v257 = vpack.c.b16 %v256, %v255
        %v268 = vunpack.c.l.b16 %v243
        %v269 = vunpack.c.h.b16 %v243
        %v270 = vunpack.c.l.b16 %v244
        %v271 = vunpack.c.h.b16 %v244
        %v272 = vunpack.c.l.b16 %v245
        %v273 = vunpack.c.h.b16 %v245
        %v274 = vunpack.c.l.b16 %v246
        %v275 = vunpack.c.h.b16 %v246
        %v276 = vunpack.c.l.b16 %v247
        %v277 = vunpack.c.h.b16 %v247
        %v278 = vunpack.c.l.b16 %v248
        %v279 = vunpack.c.h.b16 %v248
        %v280 = vunpack.c.l.b16 %v249
        %v281 = vunpack.c.h.b16 %v249
        %v282 = vunpack.c.l.b16 %v250
        %v283 = vunpack.c.h.b16 %v250
        %v284 = vunpack.c.l.b16 %v251
        %v285 = vunpack.c.h.b16 %v251
        %v286 = vunpack.c.l.b16 %v252
        %v287 = vunpack.c.h.b16 %v252
        %v288 = vpack.c.b16 %v272, %v268
        %v289 = vpack.c.b16 %v273, %v269
        %v290 = vpack.c.b16 %v274, %v270
        %v291 = vpack.c.b16 %v275, %v271
        %v292 = vpack.c.b16 %v280, %v276
        %v293 = vpack.c.b16 %v281, %v277
        %v294 = vpack.c.b16 %v282, %v278
        %v295 = vpack.c.b16 %v283, %v279
        %v296 = vpack.c.b16 %v284, %v284
        %v297 = vpack.c.b16 %v285, %v285
        %v298 = vpack.c.b16 %v286, %v286
        %v299 = vpack.c.b16 %v287, %v287
        %vm308 = vcmask 293888
        %v310 = vsel %vm308, %v257, 0
        %vm312 = vcmask 1041408
        %v314 = vsel %vm312, %v296, 0
        %v317 = vsel %vm312, %v297, 0
        %v320 = vsel %vm312, %v298, 0
        %v323 = vsel %vm312, %v299, 0
        %325 = vmatpush.bf16.msra.mxu0 0
        %326 = vmatpush.bf16.msra.mxu0 0
        %327 = vmatpush.bf16.msra.mxu0 0
        %328 = vmatpush.bf16.msra.mxu0 0
        %329 = vmatpush.bf16.msra.mxu0 0
        %330 = vmatpush.bf16.msra.mxu0 %v314
        %331 = vmatpush.bf16.msra.mxu0 %v292
        %332 = vmatpush.bf16.msra.mxu0 %v288
        %333 = vmatmul.bf16.gmra.mxu0 %v310
        %v334 = vpop.f32.mrf.mxu0
        %v335 = vadd.f32 0.0, %v334
        %v336 = vpop.f32.mrf.mxu0
        %v337 = vadd.f32 0.0, %v336
        %338 = vdwg.mxu0
        %339 = vmatpush.bf16.msra.mxu0 0
        %340 = vmatpush.bf16.msra.mxu0 0
        %341 = vmatpush.bf16.msra.mxu0 0
        %342 = vmatpush.bf16.msra.mxu0 0
        %343 = vmatpush.bf16.msra.mxu0 0
        %344 = vmatpush.bf16.msra.mxu0 %v317
        %345 = vmatpush.bf16.msra.mxu0 %v293
        %346 = vmatpush.bf16.msra.mxu0 %v289
        %347 = vmatmul.bf16.gmra.mxu0 %v310
        %v348 = vpop.f32.mrf.mxu0
        %v349 = vadd.f32 0.0, %v348
        %v350 = vpop.f32.mrf.mxu0
        %v351 = vadd.f32 0.0, %v350
        %352 = vdwg.mxu0
        %353 = vmatpush.bf16.msra.mxu0 0
        %354 = vmatpush.bf16.msra.mxu0 0
        %355 = vmatpush.bf16.msra.mxu0 0
        %356 = vmatpush.bf16.msra.mxu0 0
        %357 = vmatpush.bf16.msra.mxu0 0
        %358 = vmatpush.bf16.msra.mxu0 %v320
        %359 = vmatpush.bf16.msra.mxu0 %v294
        %360 = vmatpush.bf16.msra.mxu0 %v290
        %361 = vmatmul.bf16.gmra.mxu0 %v310
        %v362 = vpop.f32.mrf.mxu0
        %v363 = vadd.f32 0.0, %v362
        %v364 = vpop.f32.mrf.mxu0
        %v365 = vadd.f32 0.0, %v364
        %366 = vdwg.mxu0
        %367 = vmatpush.bf16.msra.mxu0 0
        %368 = vmatpush.bf16.msra.mxu0 0
        %369 = vmatpush.bf16.msra.mxu0 0
        %370 = vmatpush.bf16.msra.mxu0 0
        %371 = vmatpush.bf16.msra.mxu0 0
        %372 = vmatpush.bf16.msra.mxu0 %v323
        %373 = vmatpush.bf16.msra.mxu0 %v295
        %374 = vmatpush.bf16.msra.mxu0 %v291
        %375 = vmatmul.bf16.gmra.mxu0 %v310
        %v376 = vpop.f32.mrf.mxu0
        %v377 = vadd.f32 0.0, %v376
        %v378 = vpop.f32.mrf.mxu0
        %v379 = vadd.f32 0.0, %v378
        %380 = vdwg.mxu0
        %s381 = smul.u32 %s20, 8
        %s382 = smul.addr %s381, 8
        %s383 = scalar_lea.vmem [#allocation2], %s382
        %384 = vst [vmem:[%s383] sm:$0xff] %v335
        %385 = vst [vmem:[%s383 + $0x8] sm:$0xff] %v349
        %386 = vst [vmem:[%s383 + $0x10] sm:$0xff] %v363
        %387 = vst [vmem:[%s383 + $0x18] sm:$0xff] %v377
        %388 = vst [vmem:[%s383 + $0x20] sm:$0xff] %v337
        %389 = vst [vmem:[%s383 + $0x28] sm:$0xff] %v351
        %390 = vst [vmem:[%s383 + $0x30] sm:$0xff] %v365
        %391 = vst [vmem:[%s383 + $0x38] sm:$0xff] %v379
        %v392 = vld [vmem:[#allocation3] sm:$0xff]
        %v393 = vld [vmem:[#allocation3 + $0x8] sm:$0xff]
        %v394 = vld [vmem:[#allocation4] sm:$0xff]
        %v395 = vld [vmem:[#allocation4 + $0x8] sm:$0xff]
        %v396 = vadd.f32 %v392, %v335
        %v397 = vadd.f32 %v393, %v337
        %v398 = vmul.f32 %v335, %v335
        %v399 = vmul.f32 %v337, %v337
        %v400 = vadd.f32 %v394, %v398
        %v401 = vadd.f32 %v395, %v399
        %v402 = vadd.f32 %v396, %v349
        %v403 = vadd.f32 %v397, %v351
        %v404 = vmul.f32 %v349, %v349
        %v405 = vmul.f32 %v351, %v351
        %v406 = vadd.f32 %v400, %v404
        %v407 = vadd.f32 %v401, %v405
        %v408 = vadd.f32 %v402, %v363
        %v409 = vadd.f32 %v403, %v365
        %v410 = vmul.f32 %v363, %v363
        %v411 = vmul.f32 %v365, %v365
        %v412 = vadd.f32 %v406, %v410
        %v413 = vadd.f32 %v407, %v411
        %v414 = vadd.f32 %v408, %v377
        %v415 = vadd.f32 %v409, %v379
        %v416 = vmul.f32 %v377, %v377
        %v417 = vmul.f32 %v379, %v379
        %v418 = vadd.f32 %v412, %v416
        %v419 = vadd.f32 %v413, %v417
        %420 = vst [vmem:[#allocation3] sm:$0xff] %v414
        %421 = vst [vmem:[#allocation3 + $0x8] sm:$0xff] %v415
        %422 = vst [vmem:[#allocation4] sm:$0xff] %v418
        %423 = vst [vmem:[#allocation4 + $0x8] sm:$0xff] %v419
      $region44: #{depthnet_forward.5} parent=35 // pred_fallthru
        _
      %p424 = scmp.eq.s32.totalorder %s19, 1
      %p425 = pnand %p424, %p229
      %p426 = pneg %p425
      // Predicated region
      $region45: #{depthnet_forward.5} parent=35 // pred_check
        _
      $region46: #{depthnet_forward.5} parent=35 // pred_check_branch
        %428 = sbr.rel (%p425) target = $region48
      $region47: #{depthnet_forward.5} parent=35 // pred_region
        %v429 = vld [vmem:[#allocation3] sm:$0xff]
        %v430 = vld [vmem:[#allocation3 + $0x8] sm:$0xff]
        %431 = vadd.xlane.f32.xlu0 %v429
        %v432 = vpop.xlane.xlu0 %431
        %433 = vadd.xlane.f32.xlu0 %v430
        %v434 = vpop.xlane.xlu0 %433
        %v435 = vmul.f32 %v432, 0.0078125
        %v436 = vmul.f32 %v434, 0.0078125
        %v437 = vld [vmem:[#allocation4] sm:$0xff]
        %v438 = vld [vmem:[#allocation4 + $0x8] sm:$0xff]
        %439 = vadd.xlane.f32.xlu0 %v437
        %v440 = vpop.xlane.xlu0 %439
        %441 = vadd.xlane.f32.xlu0 %v438
        %v442 = vpop.xlane.xlu0 %441
        %v443 = vmul.f32 %v440, 0.0078125
        %v444 = vmul.f32 %v442, 0.0078125
        %v445 = vmul.f32 %v435, %v435
        %v446 = vmul.f32 %v436, %v436
        %v447 = vsub.f32 %v443, %v445
        %v448 = vsub.f32 %v444, %v446
        %v449 = vmax.f32 %v447, 0.0
        %v450 = vmax.f32 %v448, 0.0
        %v451 = vld [vmem:[%s2] sm:$0xff]
        %v452 = vld [vmem:[%s2 + $0x8] sm:$0xff]
        %v453 = vadd.f32 %v449, 1e-05
        %v454 = vadd.f32 %v450, 1e-05
        %v455 = vrsqrt.pop %v453
        %v456 = vmul.f32 %v455, %v453
        %v457 = vmul.f32 %v456, %v455
        %v458 = vmul.f32 0.5, %v457
        %v459 = vsub.f32 1.5, %v458
        %v460 = vmul.f32 %v455, %v459
        %vm461 = vweird.f32 %v453
        %vm462 = vweird.f32 %v455
        %vm463 = vmor %vm461, %vm462
        %v464 = vsel %vm463, %v455, %v460
        %v465 = vrsqrt.pop %v454
        %v466 = vmul.f32 %v465, %v454
        %v467 = vmul.f32 %v466, %v465
        %v468 = vmul.f32 0.5, %v467
        %v469 = vsub.f32 1.5, %v468
        %v470 = vmul.f32 %v465, %v469
        %vm471 = vweird.f32 %v454
        %vm472 = vweird.f32 %v465
        %vm473 = vmor %vm471, %vm472
        %v474 = vsel %vm473, %v465, %v470
        %v475 = vmul.f32 %v451, %v464
        %v476 = vmul.f32 %v452, %v474
        %vm477 = vcmask 7168
        %478 = vst.msk [vmem:[#allocation5] sm:$0xff] %vm477, %v475
        %479 = vst.msk [vmem:[#allocation5 + $0x8] sm:$0xff] %vm477, %v476
        %v480 = vld [vmem:[%s3] sm:$0xff]
        %v481 = vld [vmem:[%s3 + $0x8] sm:$0xff]
        %v482 = vmul.f32 %v435, %v475
        %v483 = vmul.f32 %v436, %v476
        %v484 = vsub.f32 %v480, %v482
        %v485 = vsub.f32 %v481, %v483
        %486 = vst.msk [vmem:[#allocation6] sm:$0xff] %vm477, %v484
        %487 = vst.msk [vmem:[#allocation6 + $0x8] sm:$0xff] %vm477, %v485
      $region48: #{depthnet_forward.5} parent=35 // pred_fallthru
        _
      // Predicated region
      $region49: #{depthnet_forward.5} parent=35 // pred_check
        %p488 = pneg %p424
      $region50: #{depthnet_forward.5} parent=35 // pred_check_branch
        %490 = sbr.rel (%p488) target = $region52
      $region51: #{depthnet_forward.5} parent=35 // pred_region
        %s491 = smul.u32 %s20, 8
        %s492 = smul.addr %s491, 8
        %s493 = scalar_lea.vmem [#allocation2], %s492
        %v494 = vld [vmem:[%s493] sm:$0xff]
        %v495 = vld [vmem:[%s493 + $0x8] sm:$0xff]
        %v496 = vld [vmem:[%s493 + $0x10] sm:$0xff]
        %v497 = vld [vmem:[%s493 + $0x18] sm:$0xff]
        %v498 = vld [vmem:[%s493 + $0x20] sm:$0xff]
        %v499 = vld [vmem:[%s493 + $0x28] sm:$0xff]
        %v500 = vld [vmem:[%s493 + $0x30] sm:$0xff]
        %v501 = vld [vmem:[%s493 + $0x38] sm:$0xff]
        %v502 = vld [vmem:[#allocation5] sm:$0xff]
        %v503 = vld [vmem:[#allocation5 + $0x8] sm:$0xff]
        %v504 = vld [vmem:[#allocation6] sm:$0xff]
        %v505 = vld [vmem:[#allocation6 + $0x8] sm:$0xff]
        %507 = vset.pattern.permute.xlu0 0
        %508 = vperm.xlu0 %507, %v502
        %v509 = vpop.permute.xlu0 %508
        %512 = vset.pattern.permute.xlu0 0
        %513 = vperm.xlu0 %512, %v503
        %v514 = vpop.permute.xlu0 %513
        %v516 = vmul.f32 %v494, %v509
        %v517 = vmul.f32 %v498, %v514
        %519 = vset.pattern.permute.xlu0 0
        %520 = vperm.xlu0 %519, %v504
        %v521 = vpop.permute.xlu0 %520
        %524 = vset.pattern.permute.xlu0 0
        %525 = vperm.xlu0 %524, %v505
        %v526 = vpop.permute.xlu0 %525
        %v528 = vadd.f32 %v516, %v521
        %v529 = vadd.f32 %v517, %v526
        %v530 = vmax.f32 %v528, 0.0
        %v531 = vmax.f32 %v529, 0.0
        %v532 = vmul.f32 %v495, %v509
        %v533 = vmul.f32 %v499, %v514
        %v534 = vadd.f32 %v532, %v521
        %v535 = vadd.f32 %v533, %v526
        %v536 = vmax.f32 %v534, 0.0
        %v537 = vmax.f32 %v535, 0.0
        %v538 = vmax.f32 %v530, %v536
        %v539 = vmax.f32 %v531, %v537
        %v540 = vadd.f32 %v530, %v536
        %v541 = vadd.f32 %v531, %v537
        %v542 = vmul.f32 %v496, %v509
        %v543 = vmul.f32 %v500, %v514
        %v544 = vadd.f32 %v542, %v521
        %v545 = vadd.f32 %v543, %v526
        %v546 = vmax.f32 %v544, 0.0
        %v547 = vmax.f32 %v545, 0.0
        %v548 = vmax.f32 %v538, %v546
        %v549 = vmax.f32 %v539, %v547
        %v550 = vadd.f32 %v540, %v546
        %v551 = vadd.f32 %v541, %v547
        %v552 = vmul.f32 %v497, %v509
        %v553 = vmul.f32 %v501, %v514
        %v554 = vadd.f32 %v552, %v521
        %v555 = vadd.f32 %v553, %v526
        %v556 = vmax.f32 %v554, 0.0
        %v557 = vmax.f32 %v555, 0.0
        %v558 = vmax.f32 %v548, %v556
        %v559 = vmax.f32 %v549, %v557
        %v560 = vadd.f32 %v550, %v556
        %v561 = vadd.f32 %v551, %v557
        %v562 = vmul.f32 %v560, 0.25
        %v563 = vmul.f32 %v561, 0.25
        %v564 = vadd.f32 %v558, %v562
        %v565 = vadd.f32 %v559, %v563
        %566 = vst [vmem:[%s225] sm:$0xff] %v564
        %567 = vst [vmem:[%s225 + $0x8] sm:$0xff] %v565
      $region52: #{depthnet_forward.5} parent=35 // pred_fallthru
        _
      %s568 = smul.u32 %s19, %s20
      %p569 = scmp.lt.s32.totalorder %s568, 0
      %s570 = scalar_select %p569, %s568, 0
      %s571 = smul.addr %s570, 8
      %s572 = scalar_lea.vmem %s4, %s571
      // Predicated region
      $region53: #{depthnet_forward.5} parent=35 // pred_check
        %p573 = pneg %p140
      $region54: #{depthnet_forward.5} parent=35 // pred_check_branch
        %575 = sbr.rel (%p573) target = $region56
      $region55: #{depthnet_forward.5} parent=35 // pred_region
        %s576 = smul.u32 %s19, %s20
      $region56: #{depthnet_forward.5} parent=35 // pred_fallthru
        _
    $region36: #{depthnet_forward.5} parent=5 // pred_fallthru
      _
    %p577 = scmp.le.s32.totalorder 2, %s10
    // Predicated region
    $region57: #{depthnet_forward.5} parent=5 // pred_check
      %p578 = pneg %p577
    $region58: #{depthnet_forward.5} parent=5 // pred_check_branch
      %580 = sbr.rel (%p578) target = $region60
    $region59: #{depthnet_forward.5} parent=5 // pred_region
      %s581 = ssub.s32 %s10, 2
      // Predicated region
      $region61: #{depthnet_forward.5} parent=59 // pred_check
        %p582 = pneg %p146
      $region62: #{depthnet_forward.5} parent=59 // pred_check_branch
        %584 = sbr.rel (%p582) target = $region64
      $region63: #{depthnet_forward.5} parent=59 // pred_region
        %s585 = smul.u32 %s21, %s22
        %p586 = scmp.lt.s32.totalorder %s585, 0
        %s587 = scalar_select %p586, %s585, 0
        %s588 = smul.addr %s587, 8
        %s589 = scalar_lea.vmem %s4, %s588
      $region64: #{depthnet_forward.5} parent=59 // pred_fallthru
        _
    $region60: #{depthnet_forward.5} parent=5 // pred_fallthru
      _
  $region6: #{depthnet_forward.5} parent=0 // loop_footer
    %s14 = sadd.s32 1, %s10
  $region7: #{depthnet_forward.5} parent=0 // loop_footer_branch
    %9 = sbr.rel target = $region3
  $region8: #{depthnet_forward.5} parent=0 // loop_exit
    _

// kernel: depthnet_forward.6
$region0: #{depthnet_forward.6}
  #allocation0 [shape = 'u32[]', space=smem, size = 0x4, offset = 0x4, fixed_abs, tag = 'smem constant byte address 0x4 - core index']
  #allocation1 [shape = 'u32[72,128]{1,0:T(1,128)}', space=vmem, size = 0x9000, scoped, tag = 'internal scratch']
  #allocation2 [shape = 'f32[1,32,512]{2,1,0:T(8,128)}', space=vmem, size = 0x10000, scoped, tag = 'scratch operand']
  #allocation3 [shape = 'f32[32,128]{1,0:T(8,128)}', space=vmem, size = 0x4000, scoped, tag = 'scratch operand']
  #allocation4 [shape = 'f32[32,128]{1,0:T(8,128)}', space=vmem, size = 0x4000, scoped, tag = 'scratch operand']
  #allocation5 [shape = 'f32[32,1]{1,0:T(8,128)}', space=vmem, size = 0x4000, scoped, tag = 'scratch operand']
  #allocation6 [shape = 'f32[32,1]{1,0:T(8,128)}', space=vmem, size = 0x4000, scoped, tag = 'scratch operand']
  %s0 = inlined_call_operand.vmem [shape: bf16[1,144,512], index: 0, kind: input, shape index: {}]
  %s1 = inlined_call_operand.vmem [shape: bf16[32,144], index: 1, kind: input, shape index: {}]
  %s2 = inlined_call_operand.vmem [shape: f32[32,1], index: 2, kind: input, shape index: {}]
  %s3 = inlined_call_operand.vmem [shape: f32[32,1], index: 3, kind: input, shape index: {}]
  %s4 = inlined_call_operand.vmem [shape: f32[32,128], index: 4, kind: output, shape index: {}]
  %s5 = sld [smem:[#allocation0]]
  $region65: #{depthnet_forward.6} parent=0
    _
  %s7 = ssub.s32 1, %s5
  %s8 = scalar_select 0, %s7, %s5
  loop: start=0, step=1, limit=4
  $region2: #{depthnet_forward.6} parent=0 // loop_pre_header
    _
  $region3: #{depthnet_forward.6} parent=0 // loop_header
    %s10 = sphi 0, %s14
    %p11 = scmp.ge.s32.totalorder %s10, 4
    %s17 = sphi 0, %s29
    %s18 = sphi 0, %s25
    %s19 = sphi 0, %s17
    %s20 = sphi 0, %s18
    %s21 = sphi 0, %s19
    %s22 = sphi 0, %s20
    %s36 = sphi 0, %s38
    %s39 = sphi 0, %s36
    %s40 = sphi 0, %s39
    %s56 = sphi 0, %s40
    %s60 = sphi 0, %s60
    %s62 = sphi 0, %s60
    %s63 = sphi 0, %s62
    %s77 = sphi 0, %s63
    %s81 = sphi 0, %s81
    %s83 = sphi 0, %s81
    %s84 = sphi 0, %s83
    %s98 = sphi 0, %s84
    %s102 = sphi 0, %s102
    %s104 = sphi 0, %s102
    %s105 = sphi 0, %s104
    %s119 = sphi 0, %s105
    %s127 = sphi 0, %s129
    %s130 = sphi 0, %s127
    %s131 = sphi 0, %s130
    %s147 = sphi 0, %s131
  $region4: #{depthnet_forward.6} parent=0 // loop_header_branch
    %13 = sbr.rel (%p11) target = $region8
  $region5: #{depthnet_forward.6} parent=0 // loop_body
    %s15 = ssub.s32 %s10, 1
    %s16 = ssub.s32 %s10, 2
    %s23 = sadd.s32 1, %s18
    %p24 = scmp.ge.s32.totalorder %s23, 1
    %s25 = scalar_select %p24, 0, %s23
    %s26 = sadd.s32 1, %s17
    %s27 = scalar_select %p24, %s26, %s17
    %p28 = scmp.ge.s32.totalorder %s27, 2
    %s29 = scalar_select %p28, 0, %s27
    %s30 = ssub.s32 1, %s17
    %s31 = smul.u32 %s18, %s30
    %s32 = ssub.s32 1, %s29
    %s33 = smul.u32 %s25, %s32
    %s34 = ssub.s32 %s31, %s33
    %p35 = scmp.eq.s32.totalorder %s34, 0
    %s37 = sadd.s32 %s36, 1
    %s38 = scalar_select %p35, %s36, %s37
    %p41 = pneg %p35
    %p42 = scmp.eq.s32.totalorder %s10, 1
    %p43 = por %p41, %p42
    %p44 = scmp.ne.s32.totalorder %s36, %s39
    %p45 = scmp.eq.s32.totalorder %s10, 0
    %p46 = por %p44, %p45
    %p47 = scmp.ne.s32.totalorder %s36, %s39
    %p48 = scmp.eq.s32.totalorder %s15, 1
    %p49 = por %p47, %p48
    %p50 = scmp.ne.s32.totalorder %s39, %s40
    %p51 = scmp.eq.s32.totalorder %s15, 0
    %p52 = por %p50, %p51
    %p53 = scmp.ne.s32.totalorder %s39, %s40
    %p54 = scmp.eq.s32.totalorder %s16, 1
    %p55 = por %p53, %p54
    %p57 = scmp.ne.s32.totalorder %s40, %s56
    %p58 = scmp.eq.s32.totalorder %s16, 0
    %p59 = por %p57, %p58
    %s61 = sadd.s32 %s60, 1
    %p64 = scmp.eq.s32.totalorder %s10, 1
    %p65 = scmp.ne.s32.totalorder %s60, %s62
    %p66 = scmp.eq.s32.totalorder %s10, 0
    %p67 = por %p65, %p66
    %p68 = scmp.ne.s32.totalorder %s60, %s62
    %p69 = scmp.eq.s32.totalorder %s15, 1
    %p70 = por %p68, %p69
    %p71 = scmp.ne.s32.totalorder %s62, %s63
    %p72 = scmp.eq.s32.totalorder %s15, 0
    %p73 = por %p71, %p72
    %p74 = scmp.ne.s32.totalorder %s62, %s63
    %p75 = scmp.eq.s32.totalorder %s16, 1
    %p76 = por %p74, %p75
    %p78 = scmp.ne.s32.totalorder %s63, %s77
    %p79 = scmp.eq.s32.totalorder %s16, 0
    %p80 = por %p78, %p79
    %s82 = sadd.s32 %s81, 1
    %p85 = scmp.eq.s32.totalorder %s10, 1
    %p86 = scmp.ne.s32.totalorder %s81, %s83
    %p87 = scmp.eq.s32.totalorder %s10, 0
    %p88 = por %p86, %p87
    %p89 = scmp.ne.s32.totalorder %s81, %s83
    %p90 = scmp.eq.s32.totalorder %s15, 1
    %p91 = por %p89, %p90
    %p92 = scmp.ne.s32.totalorder %s83, %s84
    %p93 = scmp.eq.s32.totalorder %s15, 0
    %p94 = por %p92, %p93
    %p95 = scmp.ne.s32.totalorder %s83, %s84
    %p96 = scmp.eq.s32.totalorder %s16, 1
    %p97 = por %p95, %p96
    %p99 = scmp.ne.s32.totalorder %s84, %s98
    %p100 = scmp.eq.s32.totalorder %s16, 0
    %p101 = por %p99, %p100
    %s103 = sadd.s32 %s102, 1
    %p106 = scmp.eq.s32.totalorder %s10, 1
    %p107 = scmp.ne.s32.totalorder %s102, %s104
    %p108 = scmp.eq.s32.totalorder %s10, 0
    %p109 = por %p107, %p108
    %p110 = scmp.ne.s32.totalorder %s102, %s104
    %p111 = scmp.eq.s32.totalorder %s15, 1
    %p112 = por %p110, %p111
    %p113 = scmp.ne.s32.totalorder %s104, %s105
    %p114 = scmp.eq.s32.totalorder %s15, 0
    %p115 = por %p113, %p114
    %p116 = scmp.ne.s32.totalorder %s104, %s105
    %p117 = scmp.eq.s32.totalorder %s16, 1
    %p118 = por %p116, %p117
    %p120 = scmp.ne.s32.totalorder %s105, %s119
    %p121 = scmp.eq.s32.totalorder %s16, 0
    %p122 = por %p120, %p121
    %s123 = smul.u32 %s17, %s18
    %s124 = smul.u32 %s29, %s25
    %s125 = ssub.s32 %s123, %s124
    %p126 = scmp.eq.s32.totalorder %s125, 0
    %s128 = sadd.s32 %s127, 1
    %s129 = scalar_select %p126, %s127, %s128
    %p132 = pneg %p126
    %p133 = scmp.eq.s32.totalorder %s10, 1
    %p134 = por %p132, %p133
    %p135 = scmp.ne.s32.totalorder %s127, %s130
    %p136 = scmp.eq.s32.totalorder %s10, 0
    %p137 = por %p135, %p136
    %p138 = scmp.ne.s32.totalorder %s127, %s130
    %p139 = scmp.eq.s32.totalorder %s15, 1
    %p140 = por %p138, %p139
    %p141 = scmp.ne.s32.totalorder %s130, %s131
    %p142 = scmp.eq.s32.totalorder %s15, 0
    %p143 = por %p141, %p142
    %p144 = scmp.ne.s32.totalorder %s130, %s131
    %p145 = scmp.eq.s32.totalorder %s16, 1
    %p146 = por %p144, %p145
    %p148 = scmp.ne.s32.totalorder %s131, %s147
    %p149 = scmp.eq.s32.totalorder %s16, 0
    %p150 = por %p148, %p149
    %p151 = scmp.le.s32.totalorder 1, %s10
    %p152 = scmp.lt.s32.totalorder %s10, 3
    %p153 = pnand %p151, %p152
    %p154 = pneg %p153
    // Predicated region
    $region9: #{depthnet_forward.6} parent=5 // pred_check
      _
    $region10: #{depthnet_forward.6} parent=5 // pred_check_branch
      %156 = sbr.rel (%p153) target = $region12
    $region11: #{depthnet_forward.6} parent=5 // pred_region
      %s157 = ssub.s32 %s10, 1
      // Predicated region
      $region13: #{depthnet_forward.6} parent=11 // pred_check
        %p158 = pneg %p73
      $region14: #{depthnet_forward.6} parent=11 // pred_check_branch
        %160 = sbr.rel (%p158) target = $region16
      $region15: #{depthnet_forward.6} parent=11 // pred_region
        _
      $region16: #{depthnet_forward.6} parent=11 // pred_fallthru
        _
      // Predicated region
      $region17: #{depthnet_forward.6} parent=11 // pred_check
        %p161 = pneg %p94
      $region18: #{depthnet_forward.6} parent=11 // pred_check_branch
        %163 = sbr.rel (%p161) target = $region20
      $region19: #{depthnet_forward.6} parent=11 // pred_region
        _
      $region20: #{depthnet_forward.6} parent=11 // pred_fallthru
        _
      // Predicated region
      $region21: #{depthnet_forward.6} parent=11 // pred_check
        %p164 = pneg %p115
      $region22: #{depthnet_forward.6} parent=11 // pred_check_branch
        %166 = sbr.rel (%p164) target = $region24
      $region23: #{depthnet_forward.6} parent=11 // pred_region
        _
      $region24: #{depthnet_forward.6} parent=11 // pred_fallthru
        _
    $region12: #{depthnet_forward.6} parent=5 // pred_fallthru
      _
    %p167 = scmp.lt.s32.totalorder %s10, 2
    // Predicated region
    $region25: #{depthnet_forward.6} parent=5 // pred_check
      %p168 = pneg %p167
    $region26: #{depthnet_forward.6} parent=5 // pred_check_branch
      %170 = sbr.rel (%p168) target = $region28
    $region27: #{depthnet_forward.6} parent=5 // pred_region
      // Predicated region
      $region29: #{depthnet_forward.6} parent=27 // pred_check
        %p171 = pneg %p46
      $region30: #{depthnet_forward.6} parent=27 // pred_check_branch
        %173 = sbr.rel (%p171) target = $region32
      $region31: #{depthnet_forward.6} parent=27 // pred_region
        %s174 = ssub.s32 1, %s17
        %s175 = smul.u32 %s18, %s174
        %p176 = scmp.lt.s32.totalorder %s175, 0
        %s177 = scalar_select %p176, %s175, 0
        %s178 = smul.addr %s177, 72
        %s179 = smul.addr %s178, 4
        %s180 = scalar_lea.vmem %s0, %s179
        %s181 = ssub.s32 1, %s17
        %s182 = smul.u32 %s18, %s181
      $region32: #{depthnet_forward.6} parent=27 // pred_fallthru
        _
    $region28: #{depthnet_forward.6} parent=5 // pred_fallthru
      _
    %p183 = scmp.le.s32.totalorder 1, %s10
    %p184 = scmp.lt.s32.totalorder %s10, 3
    %p185 = pnand %p183, %p184
    %p186 = pneg %p185
    // Predicated region
    $region33: #{depthnet_forward.6} parent=5 // pred_check
      _
    $region34: #{depthnet_forward.6} parent=5 // pred_check_branch
      %188 = sbr.rel (%p185) target = $region36
    $region35: #{depthnet_forward.6} parent=5 // pred_region
      %s189 = ssub.s32 %s10, 1
      %s190 = ssub.s32 1, %s19
      %s191 = smul.u32 %s20, %s190
      %p192 = scmp.lt.s32.totalorder %s191, 0
      %s193 = scalar_select %p192, %s191, 0
      %s194 = smul.addr %s193, 72
      %s195 = smul.addr %s194, 4
      %s196 = scalar_lea.vmem %s0, %s195
      %p197 = pneg %p52
      %p198 = pneg %p49
      %p199 = pneg %p73
      %p200 = pneg %p70
      %p201 = pneg %p94
      %p202 = pneg %p91
      %p203 = pneg %p115
      %p204 = pneg %p112
      %p205 = pneg %p143
      %p206 = pneg %p140
      %s207 = smul.u32 %s19, %s20
      %p208 = scmp.lt.s32.totalorder %s207, 0
      %s209 = scalar_select %p208, %s207, 0
      %s210 = smul.addr %s209, 8
      %s211 = scalar_lea.vmem %s4, %s210
      %s212 = ssub.s32 1, %s19
      %s213 = smul.u32 %s20, %s212
      %p214 = scmp.lt.s32.totalorder %s213, 0
      %s215 = scalar_select %p214, %s213, 0
      %s216 = smul.addr %s215, 72
      %s217 = smul.addr %s216, 4
      %s218 = scalar_lea.vmem %s0, %s217
      %s219 = ssub.s32 1, %s19
      %s220 = smul.u32 %s20, %s219
      %s221 = smul.u32 %s19, %s20
      %p222 = scmp.lt.s32.totalorder %s221, 0
      %s223 = scalar_select %p222, %s221, 0
      %s224 = smul.addr %s223, 8
      %s225 = scalar_lea.vmem %s4, %s224
      %s226 = smul.u32 %s19, %s20
      %p228 = scmp.eq.s32.totalorder %s19, 0
      %p229 = scmp.eq.s32.totalorder %s20, 0
      %p230 = pnand %p228, %p229
      %p231 = pneg %p230
      // Predicated region
      $region37: #{depthnet_forward.6} parent=35 // pred_check
        _
      $region38: #{depthnet_forward.6} parent=35 // pred_check_branch
        %233 = sbr.rel (%p230) target = $region40
      $region39: #{depthnet_forward.6} parent=35 // pred_region
        %234 = vst [vmem:[#allocation3] sm:$0xff] 0.0
        %235 = vst [vmem:[#allocation3 + $0x8] sm:$0xff] 0.0
        %236 = vst [vmem:[#allocation3 + $0x10] sm:$0xff] 0.0
        %237 = vst [vmem:[#allocation3 + $0x18] sm:$0xff] 0.0
        %238 = vst [vmem:[#allocation4] sm:$0xff] 0.0
        %239 = vst [vmem:[#allocation4 + $0x8] sm:$0xff] 0.0
        %240 = vst [vmem:[#allocation4 + $0x10] sm:$0xff] 0.0
        %241 = vst [vmem:[#allocation4 + $0x18] sm:$0xff] 0.0
      $region40: #{depthnet_forward.6} parent=35 // pred_fallthru
        _
      // Predicated region
      $region41: #{depthnet_forward.6} parent=35 // pred_check
        %p242 = pneg %p228
      $region42: #{depthnet_forward.6} parent=35 // pred_check_branch
        %244 = sbr.rel (%p242) target = $region44
      $region43: #{depthnet_forward.6} parent=35 // pred_region
        %v245 = vld [vmem:[%s1] sm:$0xff]
        %v246 = vld [vmem:[%s1 + $0x8] sm:$0xff]
        %v247 = vld [vmem:[%s1 + $0x10] sm:$0xff]
        %v248 = vld [vmem:[%s1 + $0x18] sm:$0xff]
        %v249 = vld [vmem:[%s218] sm:$0xff]
        %v250 = vld [vmem:[%s218 + $0x8] sm:$0xff]
        %v251 = vld [vmem:[%s218 + $0x10] sm:$0xff]
        %v252 = vld [vmem:[%s218 + $0x18] sm:$0xff]
        %v253 = vld [vmem:[%s218 + $0x20] sm:$0xff]
        %v254 = vld [vmem:[%s218 + $0x28] sm:$0xff]
        %v255 = vld [vmem:[%s218 + $0x30] sm:$0xff]
        %v256 = vld [vmem:[%s218 + $0x38] sm:$0xff]
        %v257 = vld [vmem:[%s218 + $0x40] sm:$0xff]
        %v258 = vld [vmem:[%s218 + $0x48] sm:$0xff]
        %v259 = vld [vmem:[%s218 + $0x50] sm:$0xff]
        %v260 = vld [vmem:[%s218 + $0x58] sm:$0xff]
        %v261 = vld [vmem:[%s218 + $0x60] sm:$0xff]
        %v262 = vld [vmem:[%s218 + $0x68] sm:$0xff]
        %v263 = vld [vmem:[%s218 + $0x70] sm:$0xff]
        %v264 = vld [vmem:[%s218 + $0x78] sm:$0xff]
        %v265 = vld [vmem:[%s218 + $0x80] sm:$0xff]
        %v266 = vld [vmem:[%s218 + $0x88] sm:$0xff]
        %v267 = vld [vmem:[%s218 + $0x90] sm:$0xff]
        %v268 = vld [vmem:[%s218 + $0x98] sm:$0xff]
        %v269 = vld [vmem:[%s218 + $0xa0] sm:$0xff]
        %v270 = vld [vmem:[%s218 + $0xa8] sm:$0xff]
        %v271 = vld [vmem:[%s218 + $0xb0] sm:$0xff]
        %v272 = vld [vmem:[%s218 + $0xb8] sm:$0xff]
        %v273 = vld [vmem:[%s218 + $0xc0] sm:$0xff]
        %v274 = vld [vmem:[%s218 + $0xc8] sm:$0xff]
        %v275 = vld [vmem:[%s218 + $0xd0] sm:$0xff]
        %v276 = vld [vmem:[%s218 + $0xd8] sm:$0xff]
        %v277 = vld [vmem:[%s218 + $0xe0] sm:$0xff]
        %v278 = vld [vmem:[%s218 + $0xe8] sm:$0xff]
        %v279 = vld [vmem:[%s218 + $0xf0] sm:$0xff]
        %v280 = vld [vmem:[%s218 + $0xf8] sm:$0xff]
        %v281 = vld [vmem:[%s218 + $0x100] sm:$0xff]
        %v282 = vld [vmem:[%s218 + $0x108] sm:$0xff]
        %v283 = vld [vmem:[%s218 + $0x110] sm:$0xff]
        %v284 = vld [vmem:[%s218 + $0x118] sm:$0xff]
        %v289 = vunpack.c.l.b16 %v245
        %v290 = vunpack.c.h.b16 %v245
        %v291 = vunpack.c.l.b16 %v246
        %v292 = vunpack.c.h.b16 %v246
        %v293 = vunpack.c.l.b16 %v247
        %v294 = vunpack.c.h.b16 %v247
        %v295 = vunpack.c.l.b16 %v248
        %v296 = vunpack.c.h.b16 %v248
        %v297 = vpack.c.b16 %v291, %v289
        %v298 = vpack.c.b16 %v292, %v290
        %v299 = vpack.c.b16 %v295, %v293
        %v300 = vpack.c.b16 %v296, %v294
        %v339 = vunpack.c.l.b16 %v249
        %v340 = vunpack.c.h.b16 %v249
        %v341 = vunpack.c.l.b16 %v250
        %v342 = vunpack.c.h.b16 %v250
        %v343 = vunpack.c.l.b16 %v251
        %v344 = vunpack.c.h.b16 %v251
        %v345 = vunpack.c.l.b16 %v252
        %v346 = vunpack.c.h.b16 %v252
        %v347 = vunpack.c.l.b16 %v253
        %v348 = vunpack.c.h.b16 %v253
        %v349 = vunpack.c.l.b16 %v254
        %v350 = vunpack.c.h.b16 %v254
        %v351 = vunpack.c.l.b16 %v255
        %v352 = vunpack.c.h.b16 %v255
        %v353 = vunpack.c.l.b16 %v256
        %v354 = vunpack.c.h.b16 %v256
        %v355 = vunpack.c.l.b16 %v257
        %v356 = vunpack.c.h.b16 %v257
        %v357 = vunpack.c.l.b16 %v258
        %v358 = vunpack.c.h.b16 %v258
        %v359 = vunpack.c.l.b16 %v259
        %v360 = vunpack.c.h.b16 %v259
        %v361 = vunpack.c.l.b16 %v260
        %v362 = vunpack.c.h.b16 %v260
        %v363 = vunpack.c.l.b16 %v261
        %v364 = vunpack.c.h.b16 %v261
        %v365 = vunpack.c.l.b16 %v262
        %v366 = vunpack.c.h.b16 %v262
        %v367 = vunpack.c.l.b16 %v263
        %v368 = vunpack.c.h.b16 %v263
        %v369 = vunpack.c.l.b16 %v264
        %v370 = vunpack.c.h.b16 %v264
        %v371 = vunpack.c.l.b16 %v265
        %v372 = vunpack.c.h.b16 %v265
        %v373 = vunpack.c.l.b16 %v266
        %v374 = vunpack.c.h.b16 %v266
        %v375 = vunpack.c.l.b16 %v267
        %v376 = vunpack.c.h.b16 %v267
        %v377 = vunpack.c.l.b16 %v268
        %v378 = vunpack.c.h.b16 %v268
        %v379 = vunpack.c.l.b16 %v269
        %v380 = vunpack.c.h.b16 %v269
        %v381 = vunpack.c.l.b16 %v270
        %v382 = vunpack.c.h.b16 %v270
        %v383 = vunpack.c.l.b16 %v271
        %v384 = vunpack.c.h.b16 %v271
        %v385 = vunpack.c.l.b16 %v272
        %v386 = vunpack.c.h.b16 %v272
        %v387 = vunpack.c.l.b16 %v273
        %v388 = vunpack.c.h.b16 %v273
        %v389 = vunpack.c.l.b16 %v274
        %v390 = vunpack.c.h.b16 %v274
        %v391 = vunpack.c.l.b16 %v275
        %v392 = vunpack.c.h.b16 %v275
        %v393 = vunpack.c.l.b16 %v276
        %v394 = vunpack.c.h.b16 %v276
        %v395 = vunpack.c.l.b16 %v277
        %v396 = vunpack.c.h.b16 %v277
        %v397 = vunpack.c.l.b16 %v278
        %v398 = vunpack.c.h.b16 %v278
        %v399 = vunpack.c.l.b16 %v279
        %v400 = vunpack.c.h.b16 %v279
        %v401 = vunpack.c.l.b16 %v280
        %v402 = vunpack.c.h.b16 %v280
        %v403 = vunpack.c.l.b16 %v281
        %v404 = vunpack.c.h.b16 %v281
        %v405 = vunpack.c.l.b16 %v282
        %v406 = vunpack.c.h.b16 %v282
        %v407 = vunpack.c.l.b16 %v283
        %v408 = vunpack.c.h.b16 %v283
        %v409 = vunpack.c.l.b16 %v284
        %v410 = vunpack.c.h.b16 %v284
        %v411 = vpack.c.b16 %v343, %v339
        %v412 = vpack.c.b16 %v344, %v340
        %v413 = vpack.c.b16 %v345, %v341
        %v414 = vpack.c.b16 %v346, %v342
        %v415 = vpack.c.b16 %v351, %v347
        %v416 = vpack.c.b16 %v352, %v348
        %v417 = vpack.c.b16 %v353, %v349
        %v418 = vpack.c.b16 %v354, %v350
        %v419 = vpack.c.b16 %v359, %v355
        %v420 = vpack.c.b16 %v360, %v356
        %v421 = vpack.c.b16 %v361, %v357
        %v422 = vpack.c.b16 %v362, %v358
        %v423 = vpack.c.b16 %v367, %v363
        %v424 = vpack.c.b16 %v368, %v364
        %v425 = vpack.c.b16 %v369, %v365
        %v426 = vpack.c.b16 %v370, %v366
        %v427 = vpack.c.b16 %v375, %v371
        %v428 = vpack.c.b16 %v376, %v372
        %v429 = vpack.c.b16 %v377, %v373
        %v430 = vpack.c.b16 %v378, %v374
        %v431 = vpack.c.b16 %v383, %v379
        %v432 = vpack.c.b16 %v384, %v380
        %v433 = vpack.c.b16 %v385, %v381
        %v434 = vpack.c.b16 %v386, %v382
        %v435 = vpack.c.b16 %v391, %v387
        %v436 = vpack.c.b16 %v392, %v388
        %v437 = vpack.c.b16 %v393, %v389
        %v438 = vpack.c.b16 %v394, %v390
        %v439 = vpack.c.b16 %v399, %v395
        %v440 = vpack.c.b16 %v400, %v396
        %v441 = vpack.c.b16 %v401, %v397
        %v442 = vpack.c.b16 %v402, %v398
        %v443 = vpack.c.b16 %v407, %v403
        %v444 = vpack.c.b16 %v408, %v404
        %v445 = vpack.c.b16 %v409, %v405
        %v446 = vpack.c.b16 %v410, %v406
        %vm483 = vcmask 130048
        %v485 = vsel %vm483, %v298, 0
        %v488 = vsel %vm483, %v300, 0
        %490 = vmatpush.bf16.msra.mxu0 %v439
        %491 = vmatpush.bf16.msra.mxu0 %v435
        %492 = vmatpush.bf16.msra.mxu0 %v431
        %493 = vmatpush.bf16.msra.mxu0 %v427
        %494 = vmatpush.bf16.msra.mxu0 %v423
        %495 = vmatpush.bf16.msra.mxu0 %v419
        %496 = vmatpush.bf16.msra.mxu0 %v415
        %497 = vmatpush.bf16.msra.mxu0 %v411
        %498 = vmatmul.bf16.gmra.mxu0 %v297
        %v499 = vpop.f32.mrf.mxu0
        %v500 = vadd.f32 0.0, %v499
        %v501 = vpop.f32.mrf.mxu0
        %v502 = vadd.f32 0.0, %v501
        %503 = vmatmul.bf16.gmra.mxu0 %v299
        %v504 = vpop.f32.mrf.mxu0
        %v505 = vadd.f32 0.0, %v504
        %v506 = vpop.f32.mrf.mxu0
        %v507 = vadd.f32 0.0, %v506
        %508 = vdwg.mxu0
        %509 = vmatpush.bf16.msra.mxu0 0
        %510 = vmatpush.bf16.msra.mxu0 0
        %511 = vmatpush.bf16.msra.mxu0 0
        %512 = vmatpush.bf16.msra.mxu0 0
        %513 = vmatpush.bf16.msra.mxu0 0
        %514 = vmatpush.bf16.msra.mxu0 0
        %515 = vmatpush.bf16.msra.mxu0 0
        %516 = vmatpush.bf16.msra.mxu0 %v443
        %517 = vmatmul.bf16.gmra.mxu0 %v485
        %v518 = vpop.f32.mrf.mxu0
        %v519 = vadd.f32 %v500, %v518
        %v520 = vpop.f32.mrf.mxu0
        %v521 = vadd.f32 %v502, %v520
        %522 = vmatmul.bf16.gmra.mxu0 %v488
        %v523 = vpop.f32.mrf.mxu0
        %v524 = vadd.f32 %v505, %v523
        %v525 = vpop.f32.mrf.mxu0
        %v526 = vadd.f32 %v507, %v525
        %527 = vdwg.mxu0
        %528 = vmatpush.bf16.msra.mxu0 %v440
        %529 = vmatpush.bf16.msra.mxu0 %v436
        %530 = vmatpush.bf16.msra.mxu0 %v432
        %531 = vmatpush.bf16.msra.mxu0 %v428
        %532 = vmatpush.bf16.msra.mxu0 %v424
        %533 = vmatpush.bf16.msra.mxu0 %v420
        %534 = vmatpush.bf16.msra.mxu0 %v416
        %535 = vmatpush.bf16.msra.mxu0 %v412
        %536 = vmatmul.bf16.gmra.mxu0 %v297
        %v537 = vpop.f32.mrf.mxu0
        %v538 = vadd.f32 0.0, %v537
        %v539 = vpop.f32.mrf.mxu0
        %v540 = vadd.f32 0.0, %v539
        %541 = vmatmul.bf16.gmra.mxu0 %v299
        %v542 = vpop.f32.mrf.mxu0
        %v543 = vadd.f32 0.0, %v542
        %v544 = vpop.f32.mrf.mxu0
        %v545 = vadd.f32 0.0, %v544
        %546 = vdwg.mxu0
        %547 = vmatpush.bf16.msra.mxu0 0
        %548 = vmatpush.bf16.msra.mxu0 0
        %549 = vmatpush.bf16.msra.mxu0 0
        %550 = vmatpush.bf16.msra.mxu0 0
        %551 = vmatpush.bf16.msra.mxu0 0
        %552 = vmatpush.bf16.msra.mxu0 0
        %553 = vmatpush.bf16.msra.mxu0 0
        %554 = vmatpush.bf16.msra.mxu0 %v444
        %555 = vmatmul.bf16.gmra.mxu0 %v485
        %v556 = vpop.f32.mrf.mxu0
        %v557 = vadd.f32 %v538, %v556
        %v558 = vpop.f32.mrf.mxu0
        %v559 = vadd.f32 %v540, %v558
        %560 = vmatmul.bf16.gmra.mxu0 %v488
        %v561 = vpop.f32.mrf.mxu0
        %v562 = vadd.f32 %v543, %v561
        %v563 = vpop.f32.mrf.mxu0
        %v564 = vadd.f32 %v545, %v563
        %565 = vdwg.mxu0
        %566 = vmatpush.bf16.msra.mxu0 %v441
        %567 = vmatpush.bf16.msra.mxu0 %v437
        %568 = vmatpush.bf16.msra.mxu0 %v433
        %569 = vmatpush.bf16.msra.mxu0 %v429
        %570 = vmatpush.bf16.msra.mxu0 %v425
        %571 = vmatpush.bf16.msra.mxu0 %v421
        %572 = vmatpush.bf16.msra.mxu0 %v417
        %573 = vmatpush.bf16.msra.mxu0 %v413
        %574 = vmatmul.bf16.gmra.mxu0 %v297
        %v575 = vpop.f32.mrf.mxu0
        %v576 = vadd.f32 0.0, %v575
        %v577 = vpop.f32.mrf.mxu0
        %v578 = vadd.f32 0.0, %v577
        %579 = vmatmul.bf16.gmra.mxu0 %v299
        %v580 = vpop.f32.mrf.mxu0
        %v581 = vadd.f32 0.0, %v580
        %v582 = vpop.f32.mrf.mxu0
        %v583 = vadd.f32 0.0, %v582
        %584 = vdwg.mxu0
        %585 = vmatpush.bf16.msra.mxu0 0
        %586 = vmatpush.bf16.msra.mxu0 0
        %587 = vmatpush.bf16.msra.mxu0 0
        %588 = vmatpush.bf16.msra.mxu0 0
        %589 = vmatpush.bf16.msra.mxu0 0
        %590 = vmatpush.bf16.msra.mxu0 0
        %591 = vmatpush.bf16.msra.mxu0 0
        %592 = vmatpush.bf16.msra.mxu0 %v445
        %593 = vmatmul.bf16.gmra.mxu0 %v485
        %v594 = vpop.f32.mrf.mxu0
        %v595 = vadd.f32 %v576, %v594
        %v596 = vpop.f32.mrf.mxu0
        %v597 = vadd.f32 %v578, %v596
        %598 = vmatmul.bf16.gmra.mxu0 %v488
        %v599 = vpop.f32.mrf.mxu0
        %v600 = vadd.f32 %v581, %v599
        %v601 = vpop.f32.mrf.mxu0
        %v602 = vadd.f32 %v583, %v601
        %603 = vdwg.mxu0
        %604 = vmatpush.bf16.msra.mxu0 %v442
        %605 = vmatpush.bf16.msra.mxu0 %v438
        %606 = vmatpush.bf16.msra.mxu0 %v434
        %607 = vmatpush.bf16.msra.mxu0 %v430
        %608 = vmatpush.bf16.msra.mxu0 %v426
        %609 = vmatpush.bf16.msra.mxu0 %v422
        %610 = vmatpush.bf16.msra.mxu0 %v418
        %611 = vmatpush.bf16.msra.mxu0 %v414
        %612 = vmatmul.bf16.gmra.mxu0 %v297
        %v613 = vpop.f32.mrf.mxu0
        %v614 = vadd.f32 0.0, %v613
        %v615 = vpop.f32.mrf.mxu0
        %v616 = vadd.f32 0.0, %v615
        %617 = vmatmul.bf16.gmra.mxu0 %v299
        %v618 = vpop.f32.mrf.mxu0
        %v619 = vadd.f32 0.0, %v618
        %v620 = vpop.f32.mrf.mxu0
        %v621 = vadd.f32 0.0, %v620
        %622 = vdwg.mxu0
        %623 = vmatpush.bf16.msra.mxu0 0
        %624 = vmatpush.bf16.msra.mxu0 0
        %625 = vmatpush.bf16.msra.mxu0 0
        %626 = vmatpush.bf16.msra.mxu0 0
        %627 = vmatpush.bf16.msra.mxu0 0
        %628 = vmatpush.bf16.msra.mxu0 0
        %629 = vmatpush.bf16.msra.mxu0 0
        %630 = vmatpush.bf16.msra.mxu0 %v446
        %631 = vmatmul.bf16.gmra.mxu0 %v485
        %v632 = vpop.f32.mrf.mxu0
        %v633 = vadd.f32 %v614, %v632
        %v634 = vpop.f32.mrf.mxu0
        %v635 = vadd.f32 %v616, %v634
        %636 = vmatmul.bf16.gmra.mxu0 %v488
        %v637 = vpop.f32.mrf.mxu0
        %v638 = vadd.f32 %v619, %v637
        %v639 = vpop.f32.mrf.mxu0
        %v640 = vadd.f32 %v621, %v639
        %641 = vdwg.mxu0
        %s642 = smul.u32 %s20, 16
        %s643 = smul.addr %s642, 8
        %s644 = scalar_lea.vmem [#allocation2], %s643
        %645 = vst [vmem:[%s644] sm:$0xff] %v519
        %646 = vst [vmem:[%s644 + $0x8] sm:$0xff] %v557
        %647 = vst [vmem:[%s644 + $0x10] sm:$0xff] %v595
        %648 = vst [vmem:[%s644 + $0x18] sm:$0xff] %v633
        %649 = vst [vmem:[%s644 + $0x20] sm:$0xff] %v521
        %650 = vst [vmem:[%s644 + $0x28] sm:$0xff] %v559
        %651 = vst [vmem:[%s644 + $0x30] sm:$0xff] %v597
        %652 = vst [vmem:[%s644 + $0x38] sm:$0xff] %v635
        %653 = vst [vmem:[%s644 + $0x40] sm:$0xff] %v524
        %654 = vst [vmem:[%s644 + $0x48] sm:$0xff] %v562
        %655 = vst [vmem:[%s644 + $0x50] sm:$0xff] %v600
        %656 = vst [vmem:[%s644 + $0x58] sm:$0xff] %v638
        %657 = vst [vmem:[%s644 + $0x60] sm:$0xff] %v526
        %658 = vst [vmem:[%s644 + $0x68] sm:$0xff] %v564
        %659 = vst [vmem:[%s644 + $0x70] sm:$0xff] %v602
        %660 = vst [vmem:[%s644 + $0x78] sm:$0xff] %v640
        %v661 = vld [vmem:[#allocation3] sm:$0xff]
        %v662 = vld [vmem:[#allocation3 + $0x8] sm:$0xff]
        %v663 = vld [vmem:[#allocation3 + $0x10] sm:$0xff]
        %v664 = vld [vmem:[#allocation3 + $0x18] sm:$0xff]
        %v665 = vld [vmem:[#allocation4] sm:$0xff]
        %v666 = vld [vmem:[#allocation4 + $0x8] sm:$0xff]
        %v667 = vld [vmem:[#allocation4 + $0x10] sm:$0xff]
        %v668 = vld [vmem:[#allocation4 + $0x18] sm:$0xff]
        %v669 = vadd.f32 %v661, %v519
        %v670 = vadd.f32 %v662, %v521
        %v671 = vadd.f32 %v663, %v524
        %v672 = vadd.f32 %v664, %v526
        %v673 = vmul.f32 %v519, %v519
        %v674 = vmul.f32 %v521, %v521
        %v675 = vmul.f32 %v524, %v524
        %v676 = vmul.f32 %v526, %v526
        %v677 = vadd.f32 %v665, %v673
        %v678 = vadd.f32 %v666, %v674
        %v679 = vadd.f32 %v667, %v675
        %v680 = vadd.f32 %v668, %v676
        %v681 = vadd.f32 %v669, %v557
        %v682 = vadd.f32 %v670, %v559
        %v683 = vadd.f32 %v671, %v562
        %v684 = vadd.f32 %v672, %v564
        %v685 = vmul.f32 %v557, %v557
        %v686 = vmul.f32 %v559, %v559
        %v687 = vmul.f32 %v562, %v562
        %v688 = vmul.f32 %v564, %v564
        %v689 = vadd.f32 %v677, %v685
        %v690 = vadd.f32 %v678, %v686
        %v691 = vadd.f32 %v679, %v687
        %v692 = vadd.f32 %v680, %v688
        %v693 = vadd.f32 %v681, %v595
        %v694 = vadd.f32 %v682, %v597
        %v695 = vadd.f32 %v683, %v600
        %v696 = vadd.f32 %v684, %v602
        %v697 = vmul.f32 %v595, %v595
        %v698 = vmul.f32 %v597, %v597
        %v699 = vmul.f32 %v600, %v600
        %v700 = vmul.f32 %v602, %v602
        %v701 = vadd.f32 %v689, %v697
        %v702 = vadd.f32 %v690, %v698
        %v703 = vadd.f32 %v691, %v699
        %v704 = vadd.f32 %v692, %v700
        %v705 = vadd.f32 %v693, %v633
        %v706 = vadd.f32 %v694, %v635
        %v707 = vadd.f32 %v695, %v638
        %v708 = vadd.f32 %v696, %v640
        %v709 = vmul.f32 %v633, %v633
        %v710 = vmul.f32 %v635, %v635
        %v711 = vmul.f32 %v638, %v638
        %v712 = vmul.f32 %v640, %v640
        %v713 = vadd.f32 %v701, %v709
        %v714 = vadd.f32 %v702, %v710
        %v715 = vadd.f32 %v703, %v711
        %v716 = vadd.f32 %v704, %v712
        %717 = vst [vmem:[#allocation3] sm:$0xff] %v705
        %718 = vst [vmem:[#allocation3 + $0x8] sm:$0xff] %v706
        %719 = vst [vmem:[#allocation3 + $0x10] sm:$0xff] %v707
        %720 = vst [vmem:[#allocation3 + $0x18] sm:$0xff] %v708
        %721 = vst [vmem:[#allocation4] sm:$0xff] %v713
        %722 = vst [vmem:[#allocation4 + $0x8] sm:$0xff] %v714
        %723 = vst [vmem:[#allocation4 + $0x10] sm:$0xff] %v715
        %724 = vst [vmem:[#allocation4 + $0x18] sm:$0xff] %v716
      $region44: #{depthnet_forward.6} parent=35 // pred_fallthru
        _
      %p725 = scmp.eq.s32.totalorder %s19, 1
      %p726 = pnand %p725, %p229
      %p727 = pneg %p726
      // Predicated region
      $region45: #{depthnet_forward.6} parent=35 // pred_check
        _
      $region46: #{depthnet_forward.6} parent=35 // pred_check_branch
        %729 = sbr.rel (%p726) target = $region48
      $region47: #{depthnet_forward.6} parent=35 // pred_region
        %v730 = vld [vmem:[#allocation3] sm:$0xff]
        %v731 = vld [vmem:[#allocation3 + $0x8] sm:$0xff]
        %v732 = vld [vmem:[#allocation3 + $0x10] sm:$0xff]
        %v733 = vld [vmem:[#allocation3 + $0x18] sm:$0xff]
        %734 = vadd.xlane.f32.xlu0 %v730
        %v735 = vpop.xlane.xlu0 %734
        %736 = vadd.xlane.f32.xlu0 %v731
        %v737 = vpop.xlane.xlu0 %736
        %738 = vadd.xlane.f32.xlu0 %v732
        %v739 = vpop.xlane.xlu0 %738
        %740 = vadd.xlane.f32.xlu0 %v733
        %v741 = vpop.xlane.xlu0 %740
        %v742 = vmul.f32 %v735, 0.03125
        %v743 = vmul.f32 %v737, 0.03125
        %v744 = vmul.f32 %v739, 0.03125
        %v745 = vmul.f32 %v741, 0.03125
        %v746 = vld [vmem:[#allocation4] sm:$0xff]
        %v747 = vld [vmem:[#allocation4 + $0x8] sm:$0xff]
        %v748 = vld [vmem:[#allocation4 + $0x10] sm:$0xff]
        %v749 = vld [vmem:[#allocation4 + $0x18] sm:$0xff]
        %750 = vadd.xlane.f32.xlu0 %v746
        %v751 = vpop.xlane.xlu0 %750
        %752 = vadd.xlane.f32.xlu0 %v747
        %v753 = vpop.xlane.xlu0 %752
        %754 = vadd.xlane.f32.xlu0 %v748
        %v755 = vpop.xlane.xlu0 %754
        %756 = vadd.xlane.f32.xlu0 %v749
        %v757 = vpop.xlane.xlu0 %756
        %v758 = vmul.f32 %v751, 0.03125
        %v759 = vmul.f32 %v753, 0.03125
        %v760 = vmul.f32 %v755, 0.03125
        %v761 = vmul.f32 %v757, 0.03125
        %v762 = vmul.f32 %v742, %v742
        %v763 = vmul.f32 %v743, %v743
        %v764 = vmul.f32 %v744, %v744
        %v765 = vmul.f32 %v745, %v745
        %v766 = vsub.f32 %v758, %v762
        %v767 = vsub.f32 %v759, %v763
        %v768 = vsub.f32 %v760, %v764
        %v769 = vsub.f32 %v761, %v765
        %v770 = vmax.f32 %v766, 0.0
        %v771 = vmax.f32 %v767, 0.0
        %v772 = vmax.f32 %v768, 0.0
        %v773 = vmax.f32 %v769, 0.0
        %v774 = vld [vmem:[%s2] sm:$0xff]
        %v775 = vld [vmem:[%s2 + $0x8] sm:$0xff]
        %v776 = vld [vmem:[%s2 + $0x10] sm:$0xff]
        %v777 = vld [vmem:[%s2 + $0x18] sm:$0xff]
        %v778 = vadd.f32 %v770, 1e-05
        %v779 = vadd.f32 %v771, 1e-05
        %v780 = vadd.f32 %v772, 1e-05
        %v781 = vadd.f32 %v773, 1e-05
        %v782 = vrsqrt.pop %v778
        %v783 = vmul.f32 %v782, %v778
        %v784 = vmul.f32 %v783, %v782
        %v785 = vmul.f32 0.5, %v784
        %v786 = vsub.f32 1.5, %v785
        %v787 = vmul.f32 %v782, %v786
        %vm788 = vweird.f32 %v778
        %vm789 = vweird.f32 %v782
        %vm790 = vmor %vm788, %vm789
        %v791 = vsel %vm790, %v782, %v787
        %v792 = vrsqrt.pop %v779
        %v793 = vmul.f32 %v792, %v779
        %v794 = vmul.f32 %v793, %v792
        %v795 = vmul.f32 0.5, %v794
        %v796 = vsub.f32 1.5, %v795
        %v797 = vmul.f32 %v792, %v796
        %vm798 = vweird.f32 %v779
        %vm799 = vweird.f32 %v792
        %vm800 = vmor %vm798, %vm799
        %v801 = vsel %vm800, %v792, %v797
        %v802 = vrsqrt.pop %v780
        %v803 = vmul.f32 %v802, %v780
        %v804 = vmul.f32 %v803, %v802
        %v805 = vmul.f32 0.5, %v804
        %v806 = vsub.f32 1.5, %v805
        %v807 = vmul.f32 %v802, %v806
        %vm808 = vweird.f32 %v780
        %vm809 = vweird.f32 %v802
        %vm810 = vmor %vm808, %vm809
        %v811 = vsel %vm810, %v802, %v807
        %v812 = vrsqrt.pop %v781
        %v813 = vmul.f32 %v812, %v781
        %v814 = vmul.f32 %v813, %v812
        %v815 = vmul.f32 0.5, %v814
        %v816 = vsub.f32 1.5, %v815
        %v817 = vmul.f32 %v812, %v816
        %vm818 = vweird.f32 %v781
        %vm819 = vweird.f32 %v812
        %vm820 = vmor %vm818, %vm819
        %v821 = vsel %vm820, %v812, %v817
        %v822 = vmul.f32 %v774, %v791
        %v823 = vmul.f32 %v775, %v801
        %v824 = vmul.f32 %v776, %v811
        %v825 = vmul.f32 %v777, %v821
        %vm826 = vcmask 7168
        %827 = vst.msk [vmem:[#allocation5] sm:$0xff] %vm826, %v822
        %828 = vst.msk [vmem:[#allocation5 + $0x8] sm:$0xff] %vm826, %v823
        %829 = vst.msk [vmem:[#allocation5 + $0x10] sm:$0xff] %vm826, %v824
        %830 = vst.msk [vmem:[#allocation5 + $0x18] sm:$0xff] %vm826, %v825
        %v831 = vld [vmem:[%s3] sm:$0xff]
        %v832 = vld [vmem:[%s3 + $0x8] sm:$0xff]
        %v833 = vld [vmem:[%s3 + $0x10] sm:$0xff]
        %v834 = vld [vmem:[%s3 + $0x18] sm:$0xff]
        %v835 = vmul.f32 %v742, %v822
        %v836 = vmul.f32 %v743, %v823
        %v837 = vmul.f32 %v744, %v824
        %v838 = vmul.f32 %v745, %v825
        %v839 = vsub.f32 %v831, %v835
        %v840 = vsub.f32 %v832, %v836
        %v841 = vsub.f32 %v833, %v837
        %v842 = vsub.f32 %v834, %v838
        %843 = vst.msk [vmem:[#allocation6] sm:$0xff] %vm826, %v839
        %844 = vst.msk [vmem:[#allocation6 + $0x8] sm:$0xff] %vm826, %v840
        %845 = vst.msk [vmem:[#allocation6 + $0x10] sm:$0xff] %vm826, %v841
        %846 = vst.msk [vmem:[#allocation6 + $0x18] sm:$0xff] %vm826, %v842
      $region48: #{depthnet_forward.6} parent=35 // pred_fallthru
        _
      // Predicated region
      $region49: #{depthnet_forward.6} parent=35 // pred_check
        %p847 = pneg %p725
      $region50: #{depthnet_forward.6} parent=35 // pred_check_branch
        %849 = sbr.rel (%p847) target = $region52
      $region51: #{depthnet_forward.6} parent=35 // pred_region
        %s850 = smul.u32 %s20, 16
        %s851 = smul.addr %s850, 8
        %s852 = scalar_lea.vmem [#allocation2], %s851
        %v853 = vld [vmem:[%s852] sm:$0xff]
        %v854 = vld [vmem:[%s852 + $0x8] sm:$0xff]
        %v855 = vld [vmem:[%s852 + $0x10] sm:$0xff]
        %v856 = vld [vmem:[%s852 + $0x18] sm:$0xff]
        %v857 = vld [vmem:[%s852 + $0x20] sm:$0xff]
        %v858 = vld [vmem:[%s852 + $0x28] sm:$0xff]
        %v859 = vld [vmem:[%s852 + $0x30] sm:$0xff]
        %v860 = vld [vmem:[%s852 + $0x38] sm:$0xff]
        %v861 = vld [vmem:[%s852 + $0x40] sm:$0xff]
        %v862 = vld [vmem:[%s852 + $0x48] sm:$0xff]
        %v863 = vld [vmem:[%s852 + $0x50] sm:$0xff]
        %v864 = vld [vmem:[%s852 + $0x58] sm:$0xff]
        %v865 = vld [vmem:[%s852 + $0x60] sm:$0xff]
        %v866 = vld [vmem:[%s852 + $0x68] sm:$0xff]
        %v867 = vld [vmem:[%s852 + $0x70] sm:$0xff]
        %v868 = vld [vmem:[%s852 + $0x78] sm:$0xff]
        %v869 = vld [vmem:[#allocation5] sm:$0xff]
        %v870 = vld [vmem:[#allocation5 + $0x8] sm:$0xff]
        %v871 = vld [vmem:[#allocation5 + $0x10] sm:$0xff]
        %v872 = vld [vmem:[#allocation5 + $0x18] sm:$0xff]
        %v873 = vld [vmem:[#allocation6] sm:$0xff]
        %v874 = vld [vmem:[#allocation6 + $0x8] sm:$0xff]
        %v875 = vld [vmem:[#allocation6 + $0x10] sm:$0xff]
        %v876 = vld [vmem:[#allocation6 + $0x18] sm:$0xff]
        %878 = vset.pattern.permute.xlu0 0
        %879 = vperm.xlu0 %878, %v869
        %v880 = vpop.permute.xlu0 %879
        %883 = vset.pattern.permute.xlu0 0
        %884 = vperm.xlu0 %883, %v870
        %v885 = vpop.permute.xlu0 %884
        %888 = vset.pattern.permute.xlu0 0
        %889 = vperm.xlu0 %888, %v871
        %v890 = vpop.permute.xlu0 %889
        %893 = vset.pattern.permute.xlu0 0
        %894 = vperm.xlu0 %893, %v872
        %v895 = vpop.permute.xlu0 %894
        %v897 = vmul.f32 %v853, %v880
        %v898 = vmul.f32 %v857, %v885
        %v899 = vmul.f32 %v861, %v890
        %v900 = vmul.f32 %v865, %v895
        %902 = vset.pattern.permute.xlu0 0
        %903 = vperm.xlu0 %902, %v873
        %v904 = vpop.permute.xlu0 %903
        %907 = vset.pattern.permute.xlu0 0
        %908 = vperm.xlu0 %907, %v874
        %v909 = vpop.permute.xlu0 %908
        %912 = vset.pattern.permute.xlu0 0
        %913 = vperm.xlu0 %912, %v875
        %v914 = vpop.permute.xlu0 %913
        %917 = vset.pattern.permute.xlu0 0
        %918 = vperm.xlu0 %917, %v876
        %v919 = vpop.permute.xlu0 %918
        %v921 = vadd.f32 %v897, %v904
        %v922 = vadd.f32 %v898, %v909
        %v923 = vadd.f32 %v899, %v914
        %v924 = vadd.f32 %v900, %v919
        %v925 = vmax.f32 %v921, 0.0
        %v926 = vmax.f32 %v922, 0.0
        %v927 = vmax.f32 %v923, 0.0
        %v928 = vmax.f32 %v924, 0.0
        %v929 = vmul.f32 %v854, %v880
        %v930 = vmul.f32 %v858, %v885
        %v931 = vmul.f32 %v862, %v890
        %v932 = vmul.f32 %v866, %v895
        %v933 = vadd.f32 %v929, %v904
        %v934 = vadd.f32 %v930, %v909
        %v935 = vadd.f32 %v931, %v914
        %v936 = vadd.f32 %v932, %v919
        %v937 = vmax.f32 %v933, 0.0
        %v938 = vmax.f32 %v934, 0.0
        %v939 = vmax.f32 %v935, 0.0
        %v940 = vmax.f32 %v936, 0.0
        %v941 = vmax.f32 %v925, %v937
        %v942 = vmax.f32 %v926, %v938
        %v943 = vmax.f32 %v927, %v939
        %v944 = vmax.f32 %v928, %v940
        %v945 = vadd.f32 %v925, %v937
        %v946 = vadd.f32 %v926, %v938
        %v947 = vadd.f32 %v927, %v939
        %v948 = vadd.f32 %v928, %v940
        %v949 = vmul.f32 %v855, %v880
        %v950 = vmul.f32 %v859, %v885
        %v951 = vmul.f32 %v863, %v890
        %v952 = vmul.f32 %v867, %v895
        %v953 = vadd.f32 %v949, %v904
        %v954 = vadd.f32 %v950, %v909
        %v955 = vadd.f32 %v951, %v914
        %v956 = vadd.f32 %v952, %v919
        %v957 = vmax.f32 %v953, 0.0
        %v958 = vmax.f32 %v954, 0.0
        %v959 = vmax.f32 %v955, 0.0
        %v960 = vmax.f32 %v956, 0.0
        %v961 = vmax.f32 %v941, %v957
        %v962 = vmax.f32 %v942, %v958
        %v963 = vmax.f32 %v943, %v959
        %v964 = vmax.f32 %v944, %v960
        %v965 = vadd.f32 %v945, %v957
        %v966 = vadd.f32 %v946, %v958
        %v967 = vadd.f32 %v947, %v959
        %v968 = vadd.f32 %v948, %v960
        %v969 = vmul.f32 %v856, %v880
        %v970 = vmul.f32 %v860, %v885
        %v971 = vmul.f32 %v864, %v890
        %v972 = vmul.f32 %v868, %v895
        %v973 = vadd.f32 %v969, %v904
        %v974 = vadd.f32 %v970, %v909
        %v975 = vadd.f32 %v971, %v914
        %v976 = vadd.f32 %v972, %v919
        %v977 = vmax.f32 %v973, 0.0
        %v978 = vmax.f32 %v974, 0.0
        %v979 = vmax.f32 %v975, 0.0
        %v980 = vmax.f32 %v976, 0.0
        %v981 = vmax.f32 %v961, %v977
        %v982 = vmax.f32 %v962, %v978
        %v983 = vmax.f32 %v963, %v979
        %v984 = vmax.f32 %v964, %v980
        %v985 = vadd.f32 %v965, %v977
        %v986 = vadd.f32 %v966, %v978
        %v987 = vadd.f32 %v967, %v979
        %v988 = vadd.f32 %v968, %v980
        %v989 = vmul.f32 %v985, 0.25
        %v990 = vmul.f32 %v986, 0.25
        %v991 = vmul.f32 %v987, 0.25
        %v992 = vmul.f32 %v988, 0.25
        %v993 = vadd.f32 %v981, %v989
        %v994 = vadd.f32 %v982, %v990
        %v995 = vadd.f32 %v983, %v991
        %v996 = vadd.f32 %v984, %v992
        %997 = vst [vmem:[%s225] sm:$0xff] %v993
        %998 = vst [vmem:[%s225 + $0x8] sm:$0xff] %v994
        %999 = vst [vmem:[%s225 + $0x10] sm:$0xff] %v995
        %1000 = vst [vmem:[%s225 + $0x18] sm:$0xff] %v996
      $region52: #{depthnet_forward.6} parent=35 // pred_fallthru
        _
      %s1001 = smul.u32 %s19, %s20
      %p1002 = scmp.lt.s32.totalorder %s1001, 0
      %s1003 = scalar_select %p1002, %s1001, 0
      %s1004 = smul.addr %s1003, 8
      %s1005 = scalar_lea.vmem %s4, %s1004
      // Predicated region
      $region53: #{depthnet_forward.6} parent=35 // pred_check
        %p1006 = pneg %p140
      $region54: #{depthnet_forward.6} parent=35 // pred_check_branch
        %1008 = sbr.rel (%p1006) target = $region56
      $region55: #{depthnet_forward.6} parent=35 // pred_region
        %s1009 = smul.u32 %s19, %s20
      $region56: #{depthnet_forward.6} parent=35 // pred_fallthru
        _
    $region36: #{depthnet_forward.6} parent=5 // pred_fallthru
      _
    %p1010 = scmp.le.s32.totalorder 2, %s10
    // Predicated region
    $region57: #{depthnet_forward.6} parent=5 // pred_check
      %p1011 = pneg %p1010
    $region58: #{depthnet_forward.6} parent=5 // pred_check_branch
      %1013 = sbr.rel (%p1011) target = $region60
    $region59: #{depthnet_forward.6} parent=5 // pred_region
      %s1014 = ssub.s32 %s10, 2
      // Predicated region
      $region61: #{depthnet_forward.6} parent=59 // pred_check
        %p1015 = pneg %p146
      $region62: #{depthnet_forward.6} parent=59 // pred_check_branch
        %1017 = sbr.rel (%p1015) target = $region64
      $region63: #{depthnet_forward.6} parent=59 // pred_region
        %s1018 = smul.u32 %s21, %s22
        %p1019 = scmp.lt.s32.totalorder %s1018, 0
        %s1020 = scalar_select %p1019, %s1018, 0
        %s1021 = smul.addr %s1020, 8
        %s1022 = scalar_lea.vmem %s4, %s1021
      $region64: #{depthnet_forward.6} parent=59 // pred_fallthru
        _
    $region60: #{depthnet_forward.6} parent=5 // pred_fallthru
      _
  $region6: #{depthnet_forward.6} parent=0 // loop_footer
    %s14 = sadd.s32 1, %s10
  $region7: #{depthnet_forward.6} parent=0 // loop_footer_branch
    %9 = sbr.rel target = $region3
  $region8: #{depthnet_forward.6} parent=0 // loop_exit
    _

// kernel: depthnet_forward.7
$region0: #{depthnet_forward.7}
  #allocation0 [shape = 'u32[]', space=smem, size = 0x4, offset = 0x4, fixed_abs, tag = 'smem constant byte address 0x4 - core index']
  #allocation1 [shape = 'u32[72,128]{1,0:T(1,128)}', space=vmem, size = 0x9000, scoped, tag = 'internal scratch']
  #allocation2 [shape = 'f32[1,64,512]{2,1,0:T(8,128)}', space=vmem, size = 0x20000, scoped, tag = 'scratch operand']
  #allocation3 [shape = 'f32[64,128]{1,0:T(8,128)}', space=vmem, size = 0x8000, scoped, tag = 'scratch operand']
  #allocation4 [shape = 'f32[64,128]{1,0:T(8,128)}', space=vmem, size = 0x8000, scoped, tag = 'scratch operand']
  #allocation5 [shape = 'f32[64,1]{1,0:T(8,128)}', space=vmem, size = 0x8000, scoped, tag = 'scratch operand']
  #allocation6 [shape = 'f32[64,1]{1,0:T(8,128)}', space=vmem, size = 0x8000, scoped, tag = 'scratch operand']
  %s0 = inlined_call_operand.vmem [shape: bf16[1,288,512], index: 0, kind: input, shape index: {}]
  %s1 = inlined_call_operand.vmem [shape: bf16[64,288], index: 1, kind: input, shape index: {}]
  %s2 = inlined_call_operand.vmem [shape: f32[64,1], index: 2, kind: input, shape index: {}]
  %s3 = inlined_call_operand.vmem [shape: f32[64,1], index: 3, kind: input, shape index: {}]
  %s4 = inlined_call_operand.vmem [shape: f32[64,128], index: 4, kind: output, shape index: {}]
  %s5 = sld [smem:[#allocation0]]
  $region65: #{depthnet_forward.7} parent=0
    _
  %s7 = ssub.s32 1, %s5
  %s8 = scalar_select 0, %s7, %s5
  loop: start=0, step=1, limit=4
  $region2: #{depthnet_forward.7} parent=0 // loop_pre_header
    _
  $region3: #{depthnet_forward.7} parent=0 // loop_header
    %s10 = sphi 0, %s14
    %p11 = scmp.ge.s32.totalorder %s10, 4
    %s17 = sphi 0, %s29
    %s18 = sphi 0, %s25
    %s19 = sphi 0, %s17
    %s20 = sphi 0, %s18
    %s21 = sphi 0, %s19
    %s22 = sphi 0, %s20
    %s36 = sphi 0, %s38
    %s39 = sphi 0, %s36
    %s40 = sphi 0, %s39
    %s56 = sphi 0, %s40
    %s60 = sphi 0, %s60
    %s62 = sphi 0, %s60
    %s63 = sphi 0, %s62
    %s77 = sphi 0, %s63
    %s81 = sphi 0, %s81
    %s83 = sphi 0, %s81
    %s84 = sphi 0, %s83
    %s98 = sphi 0, %s84
    %s102 = sphi 0, %s102
    %s104 = sphi 0, %s102
    %s105 = sphi 0, %s104
    %s119 = sphi 0, %s105
    %s127 = sphi 0, %s129
    %s130 = sphi 0, %s127
    %s131 = sphi 0, %s130
    %s147 = sphi 0, %s131
  $region4: #{depthnet_forward.7} parent=0 // loop_header_branch
    %13 = sbr.rel (%p11) target = $region8
  $region5: #{depthnet_forward.7} parent=0 // loop_body
    %s15 = ssub.s32 %s10, 1
    %s16 = ssub.s32 %s10, 2
    %s23 = sadd.s32 1, %s18
    %p24 = scmp.ge.s32.totalorder %s23, 1
    %s25 = scalar_select %p24, 0, %s23
    %s26 = sadd.s32 1, %s17
    %s27 = scalar_select %p24, %s26, %s17
    %p28 = scmp.ge.s32.totalorder %s27, 2
    %s29 = scalar_select %p28, 0, %s27
    %s30 = ssub.s32 1, %s17
    %s31 = smul.u32 %s18, %s30
    %s32 = ssub.s32 1, %s29
    %s33 = smul.u32 %s25, %s32
    %s34 = ssub.s32 %s31, %s33
    %p35 = scmp.eq.s32.totalorder %s34, 0
    %s37 = sadd.s32 %s36, 1
    %s38 = scalar_select %p35, %s36, %s37
    %p41 = pneg %p35
    %p42 = scmp.eq.s32.totalorder %s10, 1
    %p43 = por %p41, %p42
    %p44 = scmp.ne.s32.totalorder %s36, %s39
    %p45 = scmp.eq.s32.totalorder %s10, 0
    %p46 = por %p44, %p45
    %p47 = scmp.ne.s32.totalorder %s36, %s39
    %p48 = scmp.eq.s32.totalorder %s15, 1
    %p49 = por %p47, %p48
    %p50 = scmp.ne.s32.totalorder %s39, %s40
    %p51 = scmp.eq.s32.totalorder %s15, 0
    %p52 = por %p50, %p51
    %p53 = scmp.ne.s32.totalorder %s39, %s40
    %p54 = scmp.eq.s32.totalorder %s16, 1
    %p55 = por %p53, %p54
    %p57 = scmp.ne.s32.totalorder %s40, %s56
    %p58 = scmp.eq.s32.totalorder %s16, 0
    %p59 = por %p57, %p58
    %s61 = sadd.s32 %s60, 1
    %p64 = scmp.eq.s32.totalorder %s10, 1
    %p65 = scmp.ne.s32.totalorder %s60, %s62
    %p66 = scmp.eq.s32.totalorder %s10, 0
    %p67 = por %p65, %p66
    %p68 = scmp.ne.s32.totalorder %s60, %s62
    %p69 = scmp.eq.s32.totalorder %s15, 1
    %p70 = por %p68, %p69
    %p71 = scmp.ne.s32.totalorder %s62, %s63
    %p72 = scmp.eq.s32.totalorder %s15, 0
    %p73 = por %p71, %p72
    %p74 = scmp.ne.s32.totalorder %s62, %s63
    %p75 = scmp.eq.s32.totalorder %s16, 1
    %p76 = por %p74, %p75
    %p78 = scmp.ne.s32.totalorder %s63, %s77
    %p79 = scmp.eq.s32.totalorder %s16, 0
    %p80 = por %p78, %p79
    %s82 = sadd.s32 %s81, 1
    %p85 = scmp.eq.s32.totalorder %s10, 1
    %p86 = scmp.ne.s32.totalorder %s81, %s83
    %p87 = scmp.eq.s32.totalorder %s10, 0
    %p88 = por %p86, %p87
    %p89 = scmp.ne.s32.totalorder %s81, %s83
    %p90 = scmp.eq.s32.totalorder %s15, 1
    %p91 = por %p89, %p90
    %p92 = scmp.ne.s32.totalorder %s83, %s84
    %p93 = scmp.eq.s32.totalorder %s15, 0
    %p94 = por %p92, %p93
    %p95 = scmp.ne.s32.totalorder %s83, %s84
    %p96 = scmp.eq.s32.totalorder %s16, 1
    %p97 = por %p95, %p96
    %p99 = scmp.ne.s32.totalorder %s84, %s98
    %p100 = scmp.eq.s32.totalorder %s16, 0
    %p101 = por %p99, %p100
    %s103 = sadd.s32 %s102, 1
    %p106 = scmp.eq.s32.totalorder %s10, 1
    %p107 = scmp.ne.s32.totalorder %s102, %s104
    %p108 = scmp.eq.s32.totalorder %s10, 0
    %p109 = por %p107, %p108
    %p110 = scmp.ne.s32.totalorder %s102, %s104
    %p111 = scmp.eq.s32.totalorder %s15, 1
    %p112 = por %p110, %p111
    %p113 = scmp.ne.s32.totalorder %s104, %s105
    %p114 = scmp.eq.s32.totalorder %s15, 0
    %p115 = por %p113, %p114
    %p116 = scmp.ne.s32.totalorder %s104, %s105
    %p117 = scmp.eq.s32.totalorder %s16, 1
    %p118 = por %p116, %p117
    %p120 = scmp.ne.s32.totalorder %s105, %s119
    %p121 = scmp.eq.s32.totalorder %s16, 0
    %p122 = por %p120, %p121
    %s123 = smul.u32 %s17, %s18
    %s124 = smul.u32 %s29, %s25
    %s125 = ssub.s32 %s123, %s124
    %p126 = scmp.eq.s32.totalorder %s125, 0
    %s128 = sadd.s32 %s127, 1
    %s129 = scalar_select %p126, %s127, %s128
    %p132 = pneg %p126
    %p133 = scmp.eq.s32.totalorder %s10, 1
    %p134 = por %p132, %p133
    %p135 = scmp.ne.s32.totalorder %s127, %s130
    %p136 = scmp.eq.s32.totalorder %s10, 0
    %p137 = por %p135, %p136
    %p138 = scmp.ne.s32.totalorder %s127, %s130
    %p139 = scmp.eq.s32.totalorder %s15, 1
    %p140 = por %p138, %p139
    %p141 = scmp.ne.s32.totalorder %s130, %s131
    %p142 = scmp.eq.s32.totalorder %s15, 0
    %p143 = por %p141, %p142
    %p144 = scmp.ne.s32.totalorder %s130, %s131
    %p145 = scmp.eq.s32.totalorder %s16, 1
    %p146 = por %p144, %p145
    %p148 = scmp.ne.s32.totalorder %s131, %s147
    %p149 = scmp.eq.s32.totalorder %s16, 0
    %p150 = por %p148, %p149
    %p151 = scmp.le.s32.totalorder 1, %s10
    %p152 = scmp.lt.s32.totalorder %s10, 3
    %p153 = pnand %p151, %p152
    %p154 = pneg %p153
    // Predicated region
    $region9: #{depthnet_forward.7} parent=5 // pred_check
      _
    $region10: #{depthnet_forward.7} parent=5 // pred_check_branch
      %156 = sbr.rel (%p153) target = $region12
    $region11: #{depthnet_forward.7} parent=5 // pred_region
      %s157 = ssub.s32 %s10, 1
      // Predicated region
      $region13: #{depthnet_forward.7} parent=11 // pred_check
        %p158 = pneg %p73
      $region14: #{depthnet_forward.7} parent=11 // pred_check_branch
        %160 = sbr.rel (%p158) target = $region16
      $region15: #{depthnet_forward.7} parent=11 // pred_region
        _
      $region16: #{depthnet_forward.7} parent=11 // pred_fallthru
        _
      // Predicated region
      $region17: #{depthnet_forward.7} parent=11 // pred_check
        %p161 = pneg %p94
      $region18: #{depthnet_forward.7} parent=11 // pred_check_branch
        %163 = sbr.rel (%p161) target = $region20
      $region19: #{depthnet_forward.7} parent=11 // pred_region
        _
      $region20: #{depthnet_forward.7} parent=11 // pred_fallthru
        _
      // Predicated region
      $region21: #{depthnet_forward.7} parent=11 // pred_check
        %p164 = pneg %p115
      $region22: #{depthnet_forward.7} parent=11 // pred_check_branch
        %166 = sbr.rel (%p164) target = $region24
      $region23: #{depthnet_forward.7} parent=11 // pred_region
        _
      $region24: #{depthnet_forward.7} parent=11 // pred_fallthru
        _
    $region12: #{depthnet_forward.7} parent=5 // pred_fallthru
      _
    %p167 = scmp.lt.s32.totalorder %s10, 2
    // Predicated region
    $region25: #{depthnet_forward.7} parent=5 // pred_check
      %p168 = pneg %p167
    $region26: #{depthnet_forward.7} parent=5 // pred_check_branch
      %170 = sbr.rel (%p168) target = $region28
    $region27: #{depthnet_forward.7} parent=5 // pred_region
      // Predicated region
      $region29: #{depthnet_forward.7} parent=27 // pred_check
        %p171 = pneg %p46
      $region30: #{depthnet_forward.7} parent=27 // pred_check_branch
        %173 = sbr.rel (%p171) target = $region32
      $region31: #{depthnet_forward.7} parent=27 // pred_region
        %s174 = ssub.s32 1, %s17
        %s175 = smul.u32 %s18, %s174
        %p176 = scmp.lt.s32.totalorder %s175, 0
        %s177 = scalar_select %p176, %s175, 0
        %s178 = smul.addr %s177, 144
        %s179 = smul.addr %s178, 4
        %s180 = scalar_lea.vmem %s0, %s179
        %s181 = ssub.s32 1, %s17
        %s182 = smul.u32 %s18, %s181
      $region32: #{depthnet_forward.7} parent=27 // pred_fallthru
        _
    $region28: #{depthnet_forward.7} parent=5 // pred_fallthru
      _
    %p183 = scmp.le.s32.totalorder 1, %s10
    %p184 = scmp.lt.s32.totalorder %s10, 3
    %p185 = pnand %p183, %p184
    %p186 = pneg %p185
    // Predicated region
    $region33: #{depthnet_forward.7} parent=5 // pred_check
      _
    $region34: #{depthnet_forward.7} parent=5 // pred_check_branch
      %188 = sbr.rel (%p185) target = $region36
    $region35: #{depthnet_forward.7} parent=5 // pred_region
      %s189 = ssub.s32 %s10, 1
      %s190 = ssub.s32 1, %s19
      %s191 = smul.u32 %s20, %s190
      %p192 = scmp.lt.s32.totalorder %s191, 0
      %s193 = scalar_select %p192, %s191, 0
      %s194 = smul.addr %s193, 144
      %s195 = smul.addr %s194, 4
      %s196 = scalar_lea.vmem %s0, %s195
      %p197 = pneg %p52
      %p198 = pneg %p49
      %p199 = pneg %p73
      %p200 = pneg %p70
      %p201 = pneg %p94
      %p202 = pneg %p91
      %p203 = pneg %p115
      %p204 = pneg %p112
      %p205 = pneg %p143
      %p206 = pneg %p140
      %s207 = smul.u32 %s19, %s20
      %p208 = scmp.lt.s32.totalorder %s207, 0
      %s209 = scalar_select %p208, %s207, 0
      %s210 = smul.addr %s209, 8
      %s211 = scalar_lea.vmem %s4, %s210
      %s212 = ssub.s32 1, %s19
      %s213 = smul.u32 %s20, %s212
      %p214 = scmp.lt.s32.totalorder %s213, 0
      %s215 = scalar_select %p214, %s213, 0
      %s216 = smul.addr %s215, 144
      %s217 = smul.addr %s216, 4
      %s218 = scalar_lea.vmem %s0, %s217
      %s219 = ssub.s32 1, %s19
      %s220 = smul.u32 %s20, %s219
      %s221 = smul.u32 %s19, %s20
      %p222 = scmp.lt.s32.totalorder %s221, 0
      %s223 = scalar_select %p222, %s221, 0
      %s224 = smul.addr %s223, 8
      %s225 = scalar_lea.vmem %s4, %s224
      %s226 = smul.u32 %s19, %s20
      %p228 = scmp.eq.s32.totalorder %s19, 0
      %p229 = scmp.eq.s32.totalorder %s20, 0
      %p230 = pnand %p228, %p229
      %p231 = pneg %p230
      // Predicated region
      $region37: #{depthnet_forward.7} parent=35 // pred_check
        _
      $region38: #{depthnet_forward.7} parent=35 // pred_check_branch
        %233 = sbr.rel (%p230) target = $region40
      $region39: #{depthnet_forward.7} parent=35 // pred_region
        %234 = vst [vmem:[#allocation3] sm:$0xff] 0.0
        %235 = vst [vmem:[#allocation3 + $0x8] sm:$0xff] 0.0
        %236 = vst [vmem:[#allocation3 + $0x10] sm:$0xff] 0.0
        %237 = vst [vmem:[#allocation3 + $0x18] sm:$0xff] 0.0
        %238 = vst [vmem:[#allocation3 + $0x20] sm:$0xff] 0.0
        %239 = vst [vmem:[#allocation3 + $0x28] sm:$0xff] 0.0
        %240 = vst [vmem:[#allocation3 + $0x30] sm:$0xff] 0.0
        %241 = vst [vmem:[#allocation3 + $0x38] sm:$0xff] 0.0
        %242 = vst [vmem:[#allocation4] sm:$0xff] 0.0
        %243 = vst [vmem:[#allocation4 + $0x8] sm:$0xff] 0.0
        %244 = vst [vmem:[#allocation4 + $0x10] sm:$0xff] 0.0
        %245 = vst [vmem:[#allocation4 + $0x18] sm:$0xff] 0.0
        %246 = vst [vmem:[#allocation4 + $0x20] sm:$0xff] 0.0
        %247 = vst [vmem:[#allocation4 + $0x28] sm:$0xff] 0.0
        %248 = vst [vmem:[#allocation4 + $0x30] sm:$0xff] 0.0
        %249 = vst [vmem:[#allocation4 + $0x38] sm:$0xff] 0.0
      $region40: #{depthnet_forward.7} parent=35 // pred_fallthru
        _
      // Predicated region
      $region41: #{depthnet_forward.7} parent=35 // pred_check
        %p250 = pneg %p228
      $region42: #{depthnet_forward.7} parent=35 // pred_check_branch
        %252 = sbr.rel (%p250) target = $region44
      $region43: #{depthnet_forward.7} parent=35 // pred_region
        %v253 = vld [vmem:[%s1] sm:$0xff]
        %v254 = vld [vmem:[%s1 + $0x8] sm:$0xf]
        %v255 = vld [vmem:[%s1 + $0xc] sm:$0xff]
        %v256 = vld [vmem:[%s1 + $0x14] sm:$0xf]
        %v257 = vld [vmem:[%s1 + $0x18] sm:$0xff]
        %v258 = vld [vmem:[%s1 + $0x20] sm:$0xf]
        %v259 = vld [vmem:[%s1 + $0x24] sm:$0xff]
        %v260 = vld [vmem:[%s1 + $0x2c] sm:$0xf]
        %v261 = vld [vmem:[%s1 + $0x30] sm:$0xff]
        %v262 = vld [vmem:[%s1 + $0x38] sm:$0xf]
        %v263 = vld [vmem:[%s1 + $0x3c] sm:$0xff]
        %v264 = vld [vmem:[%s1 + $0x44] sm:$0xf]
        %v265 = vld [vmem:[%s1 + $0x48] sm:$0xff]
        %v266 = vld [vmem:[%s1 + $0x50] sm:$0xf]
        %v267 = vld [vmem:[%s1 + $0x54] sm:$0xff]
        %v268 = vld [vmem:[%s1 + $0x5c] sm:$0xf]
        %v269 = vld [vmem:[%s218] sm:$0xff]
        %v270 = vld [vmem:[%s218 + $0x8] sm:$0xff]
        %v271 = vld [vmem:[%s218 + $0x10] sm:$0xff]
        %v272 = vld [vmem:[%s218 + $0x18] sm:$0xff]
        %v273 = vld [vmem:[%s218 + $0x20] sm:$0xff]
        %v274 = vld [vmem:[%s218 + $0x28] sm:$0xff]
        %v275 = vld [vmem:[%s218 + $0x30] sm:$0xff]
        %v276 = vld [vmem:[%s218 + $0x38] sm:$0xff]
        %v277 = vld [vmem:[%s218 + $0x40] sm:$0xff]
        %v278 = vld [vmem:[%s218 + $0x48] sm:$0xff]
        %v279 = vld [vmem:[%s218 + $0x50] sm:$0xff]
        %v280 = vld [vmem:[%s218 + $0x58] sm:$0xff]
        %v281 = vld [vmem:[%s218 + $0x60] sm:$0xff]
        %v282 = vld [vmem:[%s218 + $0x68] sm:$0xff]
        %v283 = vld [vmem:[%s218 + $0x70] sm:$0xff]
        %v284 = vld [vmem:[%s218 + $0x78] sm:$0xff]
        %v285 = vld [vmem:[%s218 + $0x80] sm:$0xff]
        %v286 = vld [vmem:[%s218 + $0x88] sm:$0xff]
        %v287 = vld [vmem:[%s218 + $0x90] sm:$0xff]
        %v288 = vld [vmem:[%s218 + $0x98] sm:$0xff]
        %v289 = vld [vmem:[%s218 + $0xa0] sm:$0xff]
        %v290 = vld [vmem:[%s218 + $0xa8] sm:$0xff]
        %v291 = vld [vmem:[%s218 + $0xb0] sm:$0xff]
        %v292 = vld [vmem:[%s218 + $0xb8] sm:$0xff]
        %v293 = vld [vmem:[%s218 + $0xc0] sm:$0xff]
        %v294 = vld [vmem:[%s218 + $0xc8] sm:$0xff]
        %v295 = vld [vmem:[%s218 + $0xd0] sm:$0xff]
        %v296 = vld [vmem:[%s218 + $0xd8] sm:$0xff]
        %v297 = vld [vmem:[%s218 + $0xe0] sm:$0xff]
        %v298 = vld [vmem:[%s218 + $0xe8] sm:$0xff]
        %v299 = vld [vmem:[%s218 + $0xf0] sm:$0xff]
        %v300 = vld [vmem:[%s218 + $0xf8] sm:$0xff]
        %v301 = vld [vmem:[%s218 + $0x100] sm:$0xff]
        %v302 = vld [vmem:[%s218 + $0x108] sm:$0xff]
        %v303 = vld [vmem:[%s218 + $0x110] sm:$0xff]
        %v304 = vld [vmem:[%s218 + $0x118] sm:$0xff]
        %v305 = vld [vmem:[%s218 + $0x120] sm:$0xff]
        %v306 = vld [vmem:[%s218 + $0x128] sm:$0xff]
        %v307 = vld [vmem:[%s218 + $0x130] sm:$0xff]
        %v308 = vld [vmem:[%s218 + $0x138] sm:$0xff]
        %v309 = vld [vmem:[%s218 + $0x140] sm:$0xff]
        %v310 = vld [vmem:[%s218 + $0x148] sm:$0xff]
        %v311 = vld [vmem:[%s218 + $0x150] sm:$0xff]
        %v312 = vld [vmem:[%s218 + $0x158] sm:$0xff]
        %v313 = vld [vmem:[%s218 + $0x160] sm:$0xff]
        %v314 = vld [vmem:[%s218 + $0x168] sm:$0xff]
        %v315 = vld [vmem:[%s218 + $0x170] sm:$0xff]
        %v316 = vld [vmem:[%s218 + $0x178] sm:$0xff]
        %v317 = vld [vmem:[%s218 + $0x180] sm:$0xff]
        %v318 = vld [vmem:[%s218 + $0x188] sm:$0xff]
        %v319 = vld [vmem:[%s218 + $0x190] sm:$0xff]
        %v320 = vld [vmem:[%s218 + $0x198] sm:$0xff]
        %v321 = vld [vmem:[%s218 + $0x1a0] sm:$0xff]
        %v322 = vld [vmem:[%s218 + $0x1a8] sm:$0xff]
        %v323 = vld [vmem:[%s218 + $0x1b0] sm:$0xff]
        %v324 = vld [vmem:[%s218 + $0x1b8] sm:$0xff]
        %v325 = vld [vmem:[%s218 + $0x1c0] sm:$0xff]
        %v326 = vld [vmem:[%s218 + $0x1c8] sm:$0xff]
        %v327 = vld [vmem:[%s218 + $0x1d0] sm:$0xff]
        %v328 = vld [vmem:[%s218 + $0x1d8] sm:$0xff]
        %v329 = vld [vmem:[%s218 + $0x1e0] sm:$0xff]
        %v330 = vld [vmem:[%s218 + $0x1e8] sm:$0xff]
        %v331 = vld [vmem:[%s218 + $0x1f0] sm:$0xff]
        %v332 = vld [vmem:[%s218 + $0x1f8] sm:$0xff]
        %v333 = vld [vmem:[%s218 + $0x200] sm:$0xff]
        %v334 = vld [vmem:[%s218 + $0x208] sm:$0xff]
        %v335 = vld [vmem:[%s218 + $0x210] sm:$0xff]
        %v336 = vld [vmem:[%s218 + $0x218] sm:$0xff]
        %v337 = vld [vmem:[%s218 + $0x220] sm:$0xff]
        %v338 = vld [vmem:[%s218 + $0x228] sm:$0xff]
        %v339 = vld [vmem:[%s218 + $0x230] sm:$0xff]
        %v340 = vld [vmem:[%s218 + $0x238] sm:$0xff]
        %v357 = vunpack.c.l.b16 %v253
        %v358 = vunpack.c.h.b16 %v253
        %v359 = vunpack.c.l.b16 %v254
        %v360 = vunpack.c.l.b16 %v255
        %v361 = vunpack.c.h.b16 %v255
        %v362 = vunpack.c.l.b16 %v256
        %v363 = vunpack.c.l.b16 %v257
        %v364 = vunpack.c.h.b16 %v257
        %v365 = vunpack.c.l.b16 %v258
        %v366 = vunpack.c.l.b16 %v259
        %v367 = vunpack.c.h.b16 %v259
        %v368 = vunpack.c.l.b16 %v260
        %v369 = vunpack.c.l.b16 %v261
        %v370 = vunpack.c.h.b16 %v261
        %v371 = vunpack.c.l.b16 %v262
        %v372 = vunpack.c.l.b16 %v263
        %v373 = vunpack.c.h.b16 %v263
        %v374 = vunpack.c.l.b16 %v264
        %v375 = vunpack.c.l.b16 %v265
        %v376 = vunpack.c.h.b16 %v265
        %v377 = vunpack.c.l.b16 %v266
        %v378 = vunpack.c.l.b16 %v267
        %v379 = vunpack.c.h.b16 %v267
        %v380 = vunpack.c.l.b16 %v268
        %v381 = vpack.c.b16 %v360, %v357
        %v382 = vpack.c.b16 %v361, %v358
        %v383 = vpack.c.b16 %v362, %v359
        %v384 = vpack.c.b16 %v366, %v363
        %v385 = vpack.c.b16 %v367, %v364
        %v386 = vpack.c.b16 %v368, %v365
        %v387 = vpack.c.b16 %v372, %v369
        %v388 = vpack.c.b16 %v373, %v370
        %v389 = vpack.c.b16 %v374, %v371
        %v390 = vpack.c.b16 %v378, %v375
        %v391 = vpack.c.b16 %v379, %v376
        %v392 = vpack.c.b16 %v380, %v377
        %v473 = vunpack.c.l.b16 %v269
        %v474 = vunpack.c.h.b16 %v269
        %v475 = vunpack.c.l.b16 %v270
        %v476 = vunpack.c.h.b16 %v270
        %v477 = vunpack.c.l.b16 %v271
        %v478 = vunpack.c.h.b16 %v271
        %v479 = vunpack.c.l.b16 %v272
        %v480 = vunpack.c.h.b16 %v272
        %v481 = vunpack.c.l.b16 %v273
        %v482 = vunpack.c.h.b16 %v273
        %v483 = vunpack.c.l.b16 %v274
        %v484 = vunpack.c.h.b16 %v274
        %v485 = vunpack.c.l.b16 %v275
        %v486 = vunpack.c.h.b16 %v275
        %v487 = vunpack.c.l.b16 %v276
        %v488 = vunpack.c.h.b16 %v276
        %v489 = vunpack.c.l.b16 %v277
        %v490 = vunpack.c.h.b16 %v277
        %v491 = vunpack.c.l.b16 %v278
        %v492 = vunpack.c.h.b16 %v278
        %v493 = vunpack.c.l.b16 %v279
        %v494 = vunpack.c.h.b16 %v279
        %v495 = vunpack.c.l.b16 %v280
        %v496 = vunpack.c.h.b16 %v280
        %v497 = vunpack.c.l.b16 %v281
        %v498 = vunpack.c.h.b16 %v281
        %v499 = vunpack.c.l.b16 %v282
        %v500 = vunpack.c.h.b16 %v282
        %v501 = vunpack.c.l.b16 %v283
        %v502 = vunpack.c.h.b16 %v283
        %v503 = vunpack.c.l.b16 %v284
        %v504 = vunpack.c.h.b16 %v284
        %v505 = vunpack.c.l.b16 %v285
        %v506 = vunpack.c.h.b16 %v285
        %v507 = vunpack.c.l.b16 %v286
        %v508 = vunpack.c.h.b16 %v286
        %v509 = vunpack.c.l.b16 %v287
        %v510 = vunpack.c.h.b16 %v287
        %v511 = vunpack.c.l.b16 %v288
        %v512 = vunpack.c.h.b16 %v288
        %v513 = vunpack.c.l.b16 %v289
        %v514 = vunpack.c.h.b16 %v289
        %v515 = vunpack.c.l.b16 %v290
        %v516 = vunpack.c.h.b16 %v290
        %v517 = vunpack.c.l.b16 %v291
        %v518 = vunpack.c.h.b16 %v291
        %v519 = vunpack.c.l.b16 %v292
        %v520 = vunpack.c.h.b16 %v292
        %v521 = vunpack.c.l.b16 %v293
        %v522 = vunpack.c.h.b16 %v293
        %v523 = vunpack.c.l.b16 %v294
        %v524 = vunpack.c.h.b16 %v294
        %v525 = vunpack.c.l.b16 %v295
        %v526 = vunpack.c.h.b16 %v295
        %v527 = vunpack.c.l.b16 %v296
        %v528 = vunpack.c.h.b16 %v296
        %v529 = vunpack.c.l.b16 %v297
        %v530 = vunpack.c.h.b16 %v297
        %v531 = vunpack.c.l.b16 %v298
        %v532 = vunpack.c.h.b16 %v298
        %v533 = vunpack.c.l.b16 %v299
        %v534 = vunpack.c.h.b16 %v299
        %v535 = vunpack.c.l.b16 %v300
        %v536 = vunpack.c.h.b16 %v300
        %v537 = vunpack.c.l.b16 %v301
        %v538 = vunpack.c.h.b16 %v301
        %v539 = vunpack.c.l.b16 %v302
        %v540 = vunpack.c.h.b16 %v302
        %v541 = vunpack.c.l.b16 %v303
        %v542 = vunpack.c.h.b16 %v303
        %v543 = vunpack.c.l.b16 %v304
        %v544 = vunpack.c.h.b16 %v304
        %v545 = vunpack.c.l.b16 %v305
        %v546 = vunpack.c.h.b16 %v305
        %v547 = vunpack.c.l.b16 %v306
        %v548 = vunpack.c.h.b16 %v306
        %v549 = vunpack.c.l.b16 %v307
        %v550 = vunpack.c.h.b16 %v307
        %v551 = vunpack.c.l.b16 %v308
        %v552 = vunpack.c.h.b16 %v308
        %v553 = vunpack.c.l.b16 %v309
        %v554 = vunpack.c.h.b16 %v309
        %v555 = vunpack.c.l.b16 %v310
        %v556 = vunpack.c.h.b16 %v310
        %v557 = vunpack.c.l.b16 %v311
        %v558 = vunpack.c.h.b16 %v311
        %v559 = vunpack.c.l.b16 %v312
        %v560 = vunpack.c.h.b16 %v312
        %v561 = vunpack.c.l.b16 %v313
        %v562 = vunpack.c.h.b16 %v313
        %v563 = vunpack.c.l.b16 %v314
        %v564 = vunpack.c.h.b16 %v314
        %v565 = vunpack.c.l.b16 %v315
        %v566 = vunpack.c.h.b16 %v315
        %v567 = vunpack.c.l.b16 %v316
        %v568 = vunpack.c.h.b16 %v316
        %v569 = vunpack.c.l.b16 %v317
        %v570 = vunpack.c.h.b16 %v317
        %v571 = vunpack.c.l.b16 %v318
        %v572 = vunpack.c.h.b16 %v318
        %v573 = vunpack.c.l.b16 %v319
        %v574 = vunpack.c.h.b16 %v319
        %v575 = vunpack.c.l.b16 %v320
        %v576 = vunpack.c.h.b16 %v320
        %v577 = vunpack.c.l.b16 %v321
        %v578 = vunpack.c.h.b16 %v321
        %v579 = vunpack.c.l.b16 %v322
        %v580 = vunpack.c.h.b16 %v322
        %v581 = vunpack.c.l.b16 %v323
        %v582 = vunpack.c.h.b16 %v323
        %v583 = vunpack.c.l.b16 %v324
        %v584 = vunpack.c.h.b16 %v324
        %v585 = vunpack.c.l.b16 %v325
        %v586 = vunpack.c.h.b16 %v325
        %v587 = vunpack.c.l.b16 %v326
        %v588 = vunpack.c.h.b16 %v326
        %v589 = vunpack.c.l.b16 %v327
        %v590 = vunpack.c.h.b16 %v327
        %v591 = vunpack.c.l.b16 %v328
        %v592 = vunpack.c.h.b16 %v328
        %v593 = vunpack.c.l.b16 %v329
        %v594 = vunpack.c.h.b16 %v329
        %v595 = vunpack.c.l.b16 %v330
        %v596 = vunpack.c.h.b16 %v330
        %v597 = vunpack.c.l.b16 %v331
        %v598 = vunpack.c.h.b16 %v331
        %v599 = vunpack.c.l.b16 %v332
        %v600 = vunpack.c.h.b16 %v332
        %v601 = vunpack.c.l.b16 %v333
        %v602 = vunpack.c.h.b16 %v333
        %v603 = vunpack.c.l.b16 %v334
        %v604 = vunpack.c.h.b16 %v334
        %v605 = vunpack.c.l.b16 %v335
        %v606 = vunpack.c.h.b16 %v335
        %v607 = vunpack.c.l.b16 %v336
        %v608 = vunpack.c.h.b16 %v336
        %v609 = vunpack.c.l.b16 %v337
        %v610 = vunpack.c.h.b16 %v337
        %v611 = vunpack.c.l.b16 %v338
        %v612 = vunpack.c.h.b16 %v338
        %v613 = vunpack.c.l.b16 %v339
        %v614 = vunpack.c.h.b16 %v339
        %v615 = vunpack.c.l.b16 %v340
        %v616 = vunpack.c.h.b16 %v340
        %v617 = vpack.c.b16 %v477, %v473
        %v618 = vpack.c.b16 %v478, %v474
        %v619 = vpack.c.b16 %v479, %v475
        %v620 = vpack.c.b16 %v480, %v476
        %v621 = vpack.c.b16 %v485, %v481
        %v622 = vpack.c.b16 %v486, %v482
        %v623 = vpack.c.b16 %v487, %v483
        %v624 = vpack.c.b16 %v488, %v484
        %v625 = vpack.c.b16 %v493, %v489
        %v626 = vpack.c.b16 %v494, %v490
        %v627 = vpack.c.b16 %v495, %v491
        %v628 = vpack.c.b16 %v496, %v492
        %v629 = vpack.c.b16 %v501, %v497
        %v630 = vpack.c.b16 %v502, %v498
        %v631 = vpack.c.b16 %v503, %v499
        %v632 = vpack.c.b16 %v504, %v500
        %v633 = vpack.c.b16 %v509, %v505
        %v634 = vpack.c.b16 %v510, %v506
        %v635 = vpack.c.b16 %v511, %v507
        %v636 = vpack.c.b16 %v512, %v508
        %v637 = vpack.c.b16 %v517, %v513
        %v638 = vpack.c.b16 %v518, %v514
        %v639 = vpack.c.b16 %v519, %v515
        %v640 = vpack.c.b16 %v520, %v516
        %v641 = vpack.c.b16 %v525, %v521
        %v642 = vpack.c.b16 %v526, %v522
        %v643 = vpack.c.b16 %v527, %v523
        %v644 = vpack.c.b16 %v528, %v524
        %v645 = vpack.c.b16 %v533, %v529
        %v646 = vpack.c.b16 %v534, %v530
        %v647 = vpack.c.b16 %v535, %v531
        %v648 = vpack.c.b16 %v536, %v532
        %v649 = vpack.c.b16 %v541, %v537
        %v650 = vpack.c.b16 %v542, %v538
        %v651 = vpack.c.b16 %v543, %v539
        %v652 = vpack.c.b16 %v544, %v540
        %v653 = vpack.c.b16 %v549, %v545
        %v654 = vpack.c.b16 %v550, %v546
        %v655 = vpack.c.b16 %v551, %v547
        %v656 = vpack.c.b16 %v552, %v548
        %v657 = vpack.c.b16 %v557, %v553
        %v658 = vpack.c.b16 %v558, %v554
        %v659 = vpack.c.b16 %v559, %v555
        %v660 = vpack.c.b16 %v560, %v556
        %v661 = vpack.c.b16 %v565, %v561
        %v662 = vpack.c.b16 %v566, %v562
        %v663 = vpack.c.b16 %v567, %v563
        %v664 = vpack.c.b16 %v568, %v564
        %v665 = vpack.c.b16 %v573, %v569
        %v666 = vpack.c.b16 %v574, %v570
        %v667 = vpack.c.b16 %v575, %v571
        %v668 = vpack.c.b16 %v576, %v572
        %v669 = vpack.c.b16 %v581, %v577
        %v670 = vpack.c.b16 %v582, %v578
        %v671 = vpack.c.b16 %v583, %v579
        %v672 = vpack.c.b16 %v584, %v580
        %v673 = vpack.c.b16 %v589, %v585
        %v674 = vpack.c.b16 %v590, %v586
        %v675 = vpack.c.b16 %v591, %v587
        %v676 = vpack.c.b16 %v592, %v588
        %v677 = vpack.c.b16 %v597, %v593
        %v678 = vpack.c.b16 %v598, %v594
        %v679 = vpack.c.b16 %v599, %v595
        %v680 = vpack.c.b16 %v600, %v596
        %v681 = vpack.c.b16 %v605, %v601
        %v682 = vpack.c.b16 %v606, %v602
        %v683 = vpack.c.b16 %v607, %v603
        %v684 = vpack.c.b16 %v608, %v604
        %v685 = vpack.c.b16 %v613, %v609
        %v686 = vpack.c.b16 %v614, %v610
        %v687 = vpack.c.b16 %v615, %v611
        %v688 = vpack.c.b16 %v616, %v612
        %vm761 = vcmask 261120
        %v763 = vsel %vm761, %v383, 0
        %v766 = vsel %vm761, %v386, 0
        %v769 = vsel %vm761, %v389, 0
        %v772 = vsel %vm761, %v392, 0
        %774 = vmatpush.bf16.msra.mxu0 %v645
        %775 = vmatpush.bf16.msra.mxu0 %v641
        %776 = vmatpush.bf16.msra.mxu0 %v637
        %777 = vmatpush.bf16.msra.mxu0 %v633
        %778 = vmatpush.bf16.msra.mxu0 %v629
        %779 = vmatpush.bf16.msra.mxu0 %v625
        %780 = vmatpush.bf16.msra.mxu0 %v621
        %781 = vmatpush.bf16.msra.mxu0 %v617
        %782 = vmatmul.bf16.gmra.mxu0 %v381
        %v783 = vpop.f32.mrf.mxu0
        %v784 = vadd.f32 0.0, %v783
        %v785 = vpop.f32.mrf.mxu0
        %v786 = vadd.f32 0.0, %v785
        %787 = vmatmul.bf16.gmra.mxu0 %v384
        %v788 = vpop.f32.mrf.mxu0
        %v789 = vadd.f32 0.0, %v788
        %v790 = vpop.f32.mrf.mxu0
        %v791 = vadd.f32 0.0, %v790
        %792 = vmatmul.bf16.gmra.mxu0 %v387
        %v793 = vpop.f32.mrf.mxu0
        %v794 = vadd.f32 0.0, %v793
        %v795 = vpop.f32.mrf.mxu0
        %v796 = vadd.f32 0.0, %v795
        %797 = vmatmul.bf16.gmra.mxu0 %v390
        %v798 = vpop.f32.mrf.mxu0
        %v799 = vadd.f32 0.0, %v798
        %v800 = vpop.f32.mrf.mxu0
        %v801 = vadd.f32 0.0, %v800
        %802 = vdwg.mxu0
        %803 = vmatpush.bf16.msra.mxu0 %v677
        %804 = vmatpush.bf16.msra.mxu0 %v673
        %805 = vmatpush.bf16.msra.mxu0 %v669
        %806 = vmatpush.bf16.msra.mxu0 %v665
        %807 = vmatpush.bf16.msra.mxu0 %v661
        %808 = vmatpush.bf16.msra.mxu0 %v657
        %809 = vmatpush.bf16.msra.mxu0 %v653
        %810 = vmatpush.bf16.msra.mxu0 %v649
        %811 = vmatmul.bf16.gmra.mxu0 %v382
        %v812 = vpop.f32.mrf.mxu0
        %v813 = vadd.f32 %v784, %v812
        %v814 = vpop.f32.mrf.mxu0
        %v815 = vadd.f32 %v786, %v814
        %816 = vmatmul.bf16.gmra.mxu0 %v385
        %v817 = vpop.f32.mrf.mxu0
        %v818 = vadd.f32 %v789, %v817
        %v819 = vpop.f32.mrf.mxu0
        %v820 = vadd.f32 %v791, %v819
        %821 = vmatmul.bf16.gmra.mxu0 %v388
        %v822 = vpop.f32.mrf.mxu0
        %v823 = vadd.f32 %v794, %v822
        %v824 = vpop.f32.mrf.mxu0
        %v825 = vadd.f32 %v796, %v824
        %826 = vmatmul.bf16.gmra.mxu0 %v391
        %v827 = vpop.f32.mrf.mxu0
        %v828 = vadd.f32 %v799, %v827
        %v829 = vpop.f32.mrf.mxu0
        %v830 = vadd.f32 %v801, %v829
        %831 = vdwg.mxu0
        %832 = vmatpush.bf16.msra.mxu0 0
        %833 = vmatpush.bf16.msra.mxu0 0
        %834 = vmatpush.bf16.msra.mxu0 0
        %835 = vmatpush.bf16.msra.mxu0 0
        %836 = vmatpush.bf16.msra.mxu0 0
        %837 = vmatpush.bf16.msra.mxu0 0
        %838 = vmatpush.bf16.msra.mxu0 %v685
        %839 = vmatpush.bf16.msra.mxu0 %v681
        %840 = vmatmul.bf16.gmra.mxu0 %v763
        %v841 = vpop.f32.mrf.mxu0
        %v842 = vadd.f32 %v813, %v841
        %v843 = vpop.f32.mrf.mxu0
        %v844 = vadd.f32 %v815, %v843
        %845 = vmatmul.bf16.gmra.mxu0 %v766
        %v846 = vpop.f32.mrf.mxu0
        %v847 = vadd.f32 %v818, %v846
        %v848 = vpop.f32.mrf.mxu0
        %v849 = vadd.f32 %v820, %v848
        %850 = vmatmul.bf16.gmra.mxu0 %v769
        %v851 = vpop.f32.mrf.mxu0
        %v852 = vadd.f32 %v823, %v851
        %v853 = vpop.f32.mrf.mxu0
        %v854 = vadd.f32 %v825, %v853
        %855 = vmatmul.bf16.gmra.mxu0 %v772
        %v856 = vpop.f32.mrf.mxu0
        %v857 = vadd.f32 %v828, %v856
        %v858 = vpop.f32.mrf.mxu0
        %v859 = vadd.f32 %v830, %v858
        %860 = vdwg.mxu0
        %861 = vmatpush.bf16.msra.mxu0 %v646
        %862 = vmatpush.bf16.msra.mxu0 %v642
        %863 = vmatpush.bf16.msra.mxu0 %v638
        %864 = vmatpush.bf16.msra.mxu0 %v634
        %865 = vmatpush.bf16.msra.mxu0 %v630
        %866 = vmatpush.bf16.msra.mxu0 %v626
        %867 = vmatpush.bf16.msra.mxu0 %v622
        %868 = vmatpush.bf16.msra.mxu0 %v618
        %869 = vmatmul.bf16.gmra.mxu0 %v381
        %v870 = vpop.f32.mrf.mxu0
        %v871 = vadd.f32 0.0, %v870
        %v872 = vpop.f32.mrf.mxu0
        %v873 = vadd.f32 0.0, %v872
        %874 = vmatmul.bf16.gmra.mxu0 %v384
        %v875 = vpop.f32.mrf.mxu0
        %v876 = vadd.f32 0.0, %v875
        %v877 = vpop.f32.mrf.mxu0
        %v878 = vadd.f32 0.0, %v877
        %879 = vmatmul.bf16.gmra.mxu0 %v387
        %v880 = vpop.f32.mrf.mxu0
        %v881 = vadd.f32 0.0, %v880
        %v882 = vpop.f32.mrf.mxu0
        %v883 = vadd.f32 0.0, %v882
        %884 = vmatmul.bf16.gmra.mxu0 %v390
        %v885 = vpop.f32.mrf.mxu0
        %v886 = vadd.f32 0.0, %v885
        %v887 = vpop.f32.mrf.mxu0
        %v888 = vadd.f32 0.0, %v887
        %889 = vdwg.mxu0
        %890 = vmatpush.bf16.msra.mxu0 %v678
        %891 = vmatpush.bf16.msra.mxu0 %v674
        %892 = vmatpush.bf16.msra.mxu0 %v670
        %893 = vmatpush.bf16.msra.mxu0 %v666
        %894 = vmatpush.bf16.msra.mxu0 %v662
        %895 = vmatpush.bf16.msra.mxu0 %v658
        %896 = vmatpush.bf16.msra.mxu0 %v654
        %897 = vmatpush.bf16.msra.mxu0 %v650
        %898 = vmatmul.bf16.gmra.mxu0 %v382
        %v899 = vpop.f32.mrf.mxu0
        %v900 = vadd.f32 %v871, %v899
        %v901 = vpop.f32.mrf.mxu0
        %v902 = vadd.f32 %v873, %v901
        %903 = vmatmul.bf16.gmra.mxu0 %v385
        %v904 = vpop.f32.mrf.mxu0
        %v905 = vadd.f32 %v876, %v904
        %v906 = vpop.f32.mrf.mxu0
        %v907 = vadd.f32 %v878, %v906
        %908 = vmatmul.bf16.gmra.mxu0 %v388
        %v909 = vpop.f32.mrf.mxu0
        %v910 = vadd.f32 %v881, %v909
        %v911 = vpop.f32.mrf.mxu0
        %v912 = vadd.f32 %v883, %v911
        %913 = vmatmul.bf16.gmra.mxu0 %v391
        %v914 = vpop.f32.mrf.mxu0
        %v915 = vadd.f32 %v886, %v914
        %v916 = vpop.f32.mrf.mxu0
        %v917 = vadd.f32 %v888, %v916
        %918 = vdwg.mxu0
        %919 = vmatpush.bf16.msra.mxu0 0
        %920 = vmatpush.bf16.msra.mxu0 0
        %921 = vmatpush.bf16.msra.mxu0 0
        %922 = vmatpush.bf16.msra.mxu0 0
        %923 = vmatpush.bf16.msra.mxu0 0
        %924 = vmatpush.bf16.msra.mxu0 0
        %925 = vmatpush.bf16.msra.mxu0 %v686
        %926 = vmatpush.bf16.msra.mxu0 %v682
        %927 = vmatmul.bf16.gmra.mxu0 %v763
        %v928 = vpop.f32.mrf.mxu0
        %v929 = vadd.f32 %v900, %v928
        %v930 = vpop.f32.mrf.mxu0
        %v931 = vadd.f32 %v902, %v930
        %932 = vmatmul.bf16.gmra.mxu0 %v766
        %v933 = vpop.f32.mrf.mxu0
        %v934 = vadd.f32 %v905, %v933
        %v935 = vpop.f32.mrf.mxu0
        %v936 = vadd.f32 %v907, %v935
        %937 = vmatmul.bf16.gmra.mxu0 %v769
        %v938 = vpop.f32.mrf.mxu0
        %v939 = vadd.f32 %v910, %v938
        %v940 = vpop.f32.mrf.mxu0
        %v941 = vadd.f32 %v912, %v940
        %942 = vmatmul.bf16.gmra.mxu0 %v772
        %v943 = vpop.f32.mrf.mxu0
        %v944 = vadd.f32 %v915, %v943
        %v945 = vpop.f32.mrf.mxu0
        %v946 = vadd.f32 %v917, %v945
        %947 = vdwg.mxu0
        %948 = vmatpush.bf16.msra.mxu0 %v647
        %949 = vmatpush.bf16.msra.mxu0 %v643
        %950 = vmatpush.bf16.msra.mxu0 %v639
        %951 = vmatpush.bf16.msra.mxu0 %v635
        %952 = vmatpush.bf16.msra.mxu0 %v631
        %953 = vmatpush.bf16.msra.mxu0 %v627
        %954 = vmatpush.bf16.msra.mxu0 %v623
        %955 = vmatpush.bf16.msra.mxu0 %v619
        %956 = vmatmul.bf16.gmra.mxu0 %v381
        %v957 = vpop.f32.mrf.mxu0
        %v958 = vadd.f32 0.0, %v957
        %v959 = vpop.f32.mrf.mxu0
        %v960 = vadd.f32 0.0, %v959
        %961 = vmatmul.bf16.gmra.mxu0 %v384
        %v962 = vpop.f32.mrf.mxu0
        %v963 = vadd.f32 0.0, %v962
        %v964 = vpop.f32.mrf.mxu0
        %v965 = vadd.f32 0.0, %v964
        %966 = vmatmul.bf16.gmra.mxu0 %v387
        %v967 = vpop.f32.mrf.mxu0
        %v968 = vadd.f32 0.0, %v967
        %v969 = vpop.f32.mrf.mxu0
        %v970 = vadd.f32 0.0, %v969
        %971 = vmatmul.bf16.gmra.mxu0 %v390
        %v972 = vpop.f32.mrf.mxu0
        %v973 = vadd.f32 0.0, %v972
        %v974 = vpop.f32.mrf.mxu0
        %v975 = vadd.f32 0.0, %v974
        %976 = vdwg.mxu0
        %977 = vmatpush.bf16.msra.mxu0 %v679
        %978 = vmatpush.bf16.msra.mxu0 %v675
        %979 = vmatpush.bf16.msra.mxu0 %v671
        %980 = vmatpush.bf16.msra.mxu0 %v667
        %981 = vmatpush.bf16.msra.mxu0 %v663
        %982 = vmatpush.bf16.msra.mxu0 %v659
        %983 = vmatpush.bf16.msra.mxu0 %v655
        %984 = vmatpush.bf16.msra.mxu0 %v651
        %985 = vmatmul.bf16.gmra.mxu0 %v382
        %v986 = vpop.f32.mrf.mxu0
        %v987 = vadd.f32 %v958, %v986
        %v988 = vpop.f32.mrf.mxu0
        %v989 = vadd.f32 %v960, %v988
        %990 = vmatmul.bf16.gmra.mxu0 %v385
        %v991 = vpop.f32.mrf.mxu0
        %v992 = vadd.f32 %v963, %v991
        %v993 = vpop.f32.mrf.mxu0
        %v994 = vadd.f32 %v965, %v993
        %995 = vmatmul.bf16.gmra.mxu0 %v388
        %v996 = vpop.f32.mrf.mxu0
        %v997 = vadd.f32 %v968, %v996
        %v998 = vpop.f32.mrf.mxu0
        %v999 = vadd.f32 %v970, %v998
        %1000 = vmatmul.bf16.gmra.mxu0 %v391
        %v1001 = vpop.f32.mrf.mxu0
        %v1002 = vadd.f32 %v973, %v1001
        %v1003 = vpop.f32.mrf.mxu0
        %v1004 = vadd.f32 %v975, %v1003
        %1005 = vdwg.mxu0
        %1006 = vmatpush.bf16.msra.mxu0 0
        %1007 = vmatpush.bf16.msra.mxu0 0
        %1008 = vmatpush.bf16.msra.mxu0 0
        %1009 = vmatpush.bf16.msra.mxu0 0
        %1010 = vmatpush.bf16.msra.mxu0 0
        %1011 = vmatpush.bf16.msra.mxu0 0
        %1012 = vmatpush.bf16.msra.mxu0 %v687
        %1013 = vmatpush.bf16.msra.mxu0 %v683
        %1014 = vmatmul.bf16.gmra.mxu0 %v763
        %v1015 = vpop.f32.mrf.mxu0
        %v1016 = vadd.f32 %v987, %v1015
        %v1017 = vpop.f32.mrf.mxu0
        %v1018 = vadd.f32 %v989, %v1017
        %1019 = vmatmul.bf16.gmra.mxu0 %v766
        %v1020 = vpop.f32.mrf.mxu0
        %v1021 = vadd.f32 %v992, %v1020
        %v1022 = vpop.f32.mrf.mxu0
        %v1023 = vadd.f32 %v994, %v1022
        %1024 = vmatmul.bf16.gmra.mxu0 %v769
        %v1025 = vpop.f32.mrf.mxu0
        %v1026 = vadd.f32 %v997, %v1025
        %v1027 = vpop.f32.mrf.mxu0
        %v1028 = vadd.f32 %v999, %v1027
        %1029 = vmatmul.bf16.gmra.mxu0 %v772
        %v1030 = vpop.f32.mrf.mxu0
        %v1031 = vadd.f32 %v1002, %v1030
        %v1032 = vpop.f32.mrf.mxu0
        %v1033 = vadd.f32 %v1004, %v1032
        %1034 = vdwg.mxu0
        %1035 = vmatpush.bf16.msra.mxu0 %v648
        %1036 = vmatpush.bf16.msra.mxu0 %v644
        %1037 = vmatpush.bf16.msra.mxu0 %v640
        %1038 = vmatpush.bf16.msra.mxu0 %v636
        %1039 = vmatpush.bf16.msra.mxu0 %v632
        %1040 = vmatpush.bf16.msra.mxu0 %v628
        %1041 = vmatpush.bf16.msra.mxu0 %v624
        %1042 = vmatpush.bf16.msra.mxu0 %v620
        %1043 = vmatmul.bf16.gmra.mxu0 %v381
        %v1044 = vpop.f32.mrf.mxu0
        %v1045 = vadd.f32 0.0, %v1044
        %v1046 = vpop.f32.mrf.mxu0
        %v1047 = vadd.f32 0.0, %v1046
        %1048 = vmatmul.bf16.gmra.mxu0 %v384
        %v1049 = vpop.f32.mrf.mxu0
        %v1050 = vadd.f32 0.0, %v1049
        %v1051 = vpop.f32.mrf.mxu0
        %v1052 = vadd.f32 0.0, %v1051
        %1053 = vmatmul.bf16.gmra.mxu0 %v387
        %v1054 = vpop.f32.mrf.mxu0
        %v1055 = vadd.f32 0.0, %v1054
        %v1056 = vpop.f32.mrf.mxu0
        %v1057 = vadd.f32 0.0, %v1056
        %1058 = vmatmul.bf16.gmra.mxu0 %v390
        %v1059 = vpop.f32.mrf.mxu0
        %v1060 = vadd.f32 0.0, %v1059
        %v1061 = vpop.f32.mrf.mxu0
        %v1062 = vadd.f32 0.0, %v1061
        %1063 = vdwg.mxu0
        %1064 = vmatpush.bf16.msra.mxu0 %v680
        %1065 = vmatpush.bf16.msra.mxu0 %v676
        %1066 = vmatpush.bf16.msra.mxu0 %v672
        %1067 = vmatpush.bf16.msra.mxu0 %v668
        %1068 = vmatpush.bf16.msra.mxu0 %v664
        %1069 = vmatpush.bf16.msra.mxu0 %v660
        %1070 = vmatpush.bf16.msra.mxu0 %v656
        %1071 = vmatpush.bf16.msra.mxu0 %v652
        %1072 = vmatmul.bf16.gmra.mxu0 %v382
        %v1073 = vpop.f32.mrf.mxu0
        %v1074 = vadd.f32 %v1045, %v1073
        %v1075 = vpop.f32.mrf.mxu0
        %v1076 = vadd.f32 %v1047, %v1075
        %1077 = vmatmul.bf16.gmra.mxu0 %v385
        %v1078 = vpop.f32.mrf.mxu0
        %v1079 = vadd.f32 %v1050, %v1078
        %v1080 = vpop.f32.mrf.mxu0
        %v1081 = vadd.f32 %v1052, %v1080
        %1082 = vmatmul.bf16.gmra.mxu0 %v388
        %v1083 = vpop.f32.mrf.mxu0
        %v1084 = vadd.f32 %v1055, %v1083
        %v1085 = vpop.f32.mrf.mxu0
        %v1086 = vadd.f32 %v1057, %v1085
        %1087 = vmatmul.bf16.gmra.mxu0 %v391
        %v1088 = vpop.f32.mrf.mxu0
        %v1089 = vadd.f32 %v1060, %v1088
        %v1090 = vpop.f32.mrf.mxu0
        %v1091 = vadd.f32 %v1062, %v1090
        %1092 = vdwg.mxu0
        %1093 = vmatpush.bf16.msra.mxu0 0
        %1094 = vmatpush.bf16.msra.mxu0 0
        %1095 = vmatpush.bf16.msra.mxu0 0
        %1096 = vmatpush.bf16.msra.mxu0 0
        %1097 = vmatpush.bf16.msra.mxu0 0
        %1098 = vmatpush.bf16.msra.mxu0 0
        %1099 = vmatpush.bf16.msra.mxu0 %v688
        %1100 = vmatpush.bf16.msra.mxu0 %v684
        %1101 = vmatmul.bf16.gmra.mxu0 %v763
        %v1102 = vpop.f32.mrf.mxu0
        %v1103 = vadd.f32 %v1074, %v1102
        %v1104 = vpop.f32.mrf.mxu0
        %v1105 = vadd.f32 %v1076, %v1104
        %1106 = vmatmul.bf16.gmra.mxu0 %v766
        %v1107 = vpop.f32.mrf.mxu0
        %v1108 = vadd.f32 %v1079, %v1107
        %v1109 = vpop.f32.mrf.mxu0
        %v1110 = vadd.f32 %v1081, %v1109
        %1111 = vmatmul.bf16.gmra.mxu0 %v769
        %v1112 = vpop.f32.mrf.mxu0
        %v1113 = vadd.f32 %v1084, %v1112
        %v1114 = vpop.f32.mrf.mxu0
        %v1115 = vadd.f32 %v1086, %v1114
        %1116 = vmatmul.bf16.gmra.mxu0 %v772
        %v1117 = vpop.f32.mrf.mxu0
        %v1118 = vadd.f32 %v1089, %v1117
        %v1119 = vpop.f32.mrf.mxu0
        %v1120 = vadd.f32 %v1091, %v1119
        %1121 = vdwg.mxu0
        %s1122 = smul.u32 %s20, 32
        %s1123 = smul.addr %s1122, 8
        %s1124 = scalar_lea.vmem [#allocation2], %s1123
        %1125 = vst [vmem:[%s1124] sm:$0xff] %v842
        %1126 = vst [vmem:[%s1124 + $0x8] sm:$0xff] %v929
        %1127 = vst [vmem:[%s1124 + $0x10] sm:$0xff] %v1016
        %1128 = vst [vmem:[%s1124 + $0x18] sm:$0xff] %v1103
        %1129 = vst [vmem:[%s1124 + $0x20] sm:$0xff] %v844
        %1130 = vst [vmem:[%s1124 + $0x28] sm:$0xff] %v931
        %1131 = vst [vmem:[%s1124 + $0x30] sm:$0xff] %v1018
        %1132 = vst [vmem:[%s1124 + $0x38] sm:$0xff] %v1105
        %1133 = vst [vmem:[%s1124 + $0x40] sm:$0xff] %v847
        %1134 = vst [vmem:[%s1124 + $0x48] sm:$0xff] %v934
        %1135 = vst [vmem:[%s1124 + $0x50] sm:$0xff] %v1021
        %1136 = vst [vmem:[%s1124 + $0x58] sm:$0xff] %v1108
        %1137 = vst [vmem:[%s1124 + $0x60] sm:$0xff] %v849
        %1138 = vst [vmem:[%s1124 + $0x68] sm:$0xff] %v936
        %1139 = vst [vmem:[%s1124 + $0x70] sm:$0xff] %v1023
        %1140 = vst [vmem:[%s1124 + $0x78] sm:$0xff] %v1110
        %1141 = vst [vmem:[%s1124 + $0x80] sm:$0xff] %v852
        %1142 = vst [vmem:[%s1124 + $0x88] sm:$0xff] %v939
        %1143 = vst [vmem:[%s1124 + $0x90] sm:$0xff] %v1026
        %1144 = vst [vmem:[%s1124 + $0x98] sm:$0xff] %v1113
        %1145 = vst [vmem:[%s1124 + $0xa0] sm:$0xff] %v854
        %1146 = vst [vmem:[%s1124 + $0xa8] sm:$0xff] %v941
        %1147 = vst [vmem:[%s1124 + $0xb0] sm:$0xff] %v1028
        %1148 = vst [vmem:[%s1124 + $0xb8] sm:$0xff] %v1115
        %1149 = vst [vmem:[%s1124 + $0xc0] sm:$0xff] %v857
        %1150 = vst [vmem:[%s1124 + $0xc8] sm:$0xff] %v944
        %1151 = vst [vmem:[%s1124 + $0xd0] sm:$0xff] %v1031
        %1152 = vst [vmem:[%s1124 + $0xd8] sm:$0xff] %v1118
        %1153 = vst [vmem:[%s1124 + $0xe0] sm:$0xff] %v859
        %1154 = vst [vmem:[%s1124 + $0xe8] sm:$0xff] %v946
        %1155 = vst [vmem:[%s1124 + $0xf0] sm:$0xff] %v1033
        %1156 = vst [vmem:[%s1124 + $0xf8] sm:$0xff] %v1120
        %v1157 = vld [vmem:[#allocation3] sm:$0xff]
        %v1158 = vld [vmem:[#allocation3 + $0x8] sm:$0xff]
        %v1159 = vld [vmem:[#allocation3 + $0x10] sm:$0xff]
        %v1160 = vld [vmem:[#allocation3 + $0x18] sm:$0xff]
        %v1161 = vld [vmem:[#allocation3 + $0x20] sm:$0xff]
        %v1162 = vld [vmem:[#allocation3 + $0x28] sm:$0xff]
        %v1163 = vld [vmem:[#allocation3 + $0x30] sm:$0xff]
        %v1164 = vld [vmem:[#allocation3 + $0x38] sm:$0xff]
        %v1165 = vld [vmem:[#allocation4] sm:$0xff]
        %v1166 = vld [vmem:[#allocation4 + $0x8] sm:$0xff]
        %v1167 = vld [vmem:[#allocation4 + $0x10] sm:$0xff]
        %v1168 = vld [vmem:[#allocation4 + $0x18] sm:$0xff]
        %v1169 = vld [vmem:[#allocation4 + $0x20] sm:$0xff]
        %v1170 = vld [vmem:[#allocation4 + $0x28] sm:$0xff]
        %v1171 = vld [vmem:[#allocation4 + $0x30] sm:$0xff]
        %v1172 = vld [vmem:[#allocation4 + $0x38] sm:$0xff]
        %v1173 = vadd.f32 %v1157, %v842
        %v1174 = vadd.f32 %v1158, %v844
        %v1175 = vadd.f32 %v1159, %v847
        %v1176 = vadd.f32 %v1160, %v849
        %v1177 = vadd.f32 %v1161, %v852
        %v1178 = vadd.f32 %v1162, %v854
        %v1179 = vadd.f32 %v1163, %v857
        %v1180 = vadd.f32 %v1164, %v859
        %v1181 = vmul.f32 %v842, %v842
        %v1182 = vmul.f32 %v844, %v844
        %v1183 = vmul.f32 %v847, %v847
        %v1184 = vmul.f32 %v849, %v849
        %v1185 = vmul.f32 %v852, %v852
        %v1186 = vmul.f32 %v854, %v854
        %v1187 = vmul.f32 %v857, %v857
        %v1188 = vmul.f32 %v859, %v859
        %v1189 = vadd.f32 %v1165, %v1181
        %v1190 = vadd.f32 %v1166, %v1182
        %v1191 = vadd.f32 %v1167, %v1183
        %v1192 = vadd.f32 %v1168, %v1184
        %v1193 = vadd.f32 %v1169, %v1185
        %v1194 = vadd.f32 %v1170, %v1186
        %v1195 = vadd.f32 %v1171, %v1187
        %v1196 = vadd.f32 %v1172, %v1188
        %v1197 = vadd.f32 %v1173, %v929
        %v1198 = vadd.f32 %v1174, %v931
        %v1199 = vadd.f32 %v1175, %v934
        %v1200 = vadd.f32 %v1176, %v936
        %v1201 = vadd.f32 %v1177, %v939
        %v1202 = vadd.f32 %v1178, %v941
        %v1203 = vadd.f32 %v1179, %v944
        %v1204 = vadd.f32 %v1180, %v946
        %v1205 = vmul.f32 %v929, %v929
        %v1206 = vmul.f32 %v931, %v931
        %v1207 = vmul.f32 %v934, %v934
        %v1208 = vmul.f32 %v936, %v936
        %v1209 = vmul.f32 %v939, %v939
        %v1210 = vmul.f32 %v941, %v941
        %v1211 = vmul.f32 %v944, %v944
        %v1212 = vmul.f32 %v946, %v946
        %v1213 = vadd.f32 %v1189, %v1205
        %v1214 = vadd.f32 %v1190, %v1206
        %v1215 = vadd.f32 %v1191, %v1207
        %v1216 = vadd.f32 %v1192, %v1208
        %v1217 = vadd.f32 %v1193, %v1209
        %v1218 = vadd.f32 %v1194, %v1210
        %v1219 = vadd.f32 %v1195, %v1211
        %v1220 = vadd.f32 %v1196, %v1212
        %v1221 = vadd.f32 %v1197, %v1016
        %v1222 = vadd.f32 %v1198, %v1018
        %v1223 = vadd.f32 %v1199, %v1021
        %v1224 = vadd.f32 %v1200, %v1023
        %v1225 = vadd.f32 %v1201, %v1026
        %v1226 = vadd.f32 %v1202, %v1028
        %v1227 = vadd.f32 %v1203, %v1031
        %v1228 = vadd.f32 %v1204, %v1033
        %v1229 = vmul.f32 %v1016, %v1016
        %v1230 = vmul.f32 %v1018, %v1018
        %v1231 = vmul.f32 %v1021, %v1021
        %v1232 = vmul.f32 %v1023, %v1023
        %v1233 = vmul.f32 %v1026, %v1026
        %v1234 = vmul.f32 %v1028, %v1028
        %v1235 = vmul.f32 %v1031, %v1031
        %v1236 = vmul.f32 %v1033, %v1033
        %v1237 = vadd.f32 %v1213, %v1229
        %v1238 = vadd.f32 %v1214, %v1230
        %v1239 = vadd.f32 %v1215, %v1231
        %v1240 = vadd.f32 %v1216, %v1232
        %v1241 = vadd.f32 %v1217, %v1233
        %v1242 = vadd.f32 %v1218, %v1234
        %v1243 = vadd.f32 %v1219, %v1235
        %v1244 = vadd.f32 %v1220, %v1236
        %v1245 = vadd.f32 %v1221, %v1103
        %v1246 = vadd.f32 %v1222, %v1105
        %v1247 = vadd.f32 %v1223, %v1108
        %v1248 = vadd.f32 %v1224, %v1110
        %v1249 = vadd.f32 %v1225, %v1113
        %v1250 = vadd.f32 %v1226, %v1115
        %v1251 = vadd.f32 %v1227, %v1118
        %v1252 = vadd.f32 %v1228, %v1120
        %v1253 = vmul.f32 %v1103, %v1103
        %v1254 = vmul.f32 %v1105, %v1105
        %v1255 = vmul.f32 %v1108, %v1108
        %v1256 = vmul.f32 %v1110, %v1110
        %v1257 = vmul.f32 %v1113, %v1113
        %v1258 = vmul.f32 %v1115, %v1115
        %v1259 = vmul.f32 %v1118, %v1118
        %v1260 = vmul.f32 %v1120, %v1120
        %v1261 = vadd.f32 %v1237, %v1253
        %v1262 = vadd.f32 %v1238, %v1254
        %v1263 = vadd.f32 %v1239, %v1255
        %v1264 = vadd.f32 %v1240, %v1256
        %v1265 = vadd.f32 %v1241, %v1257
        %v1266 = vadd.f32 %v1242, %v1258
        %v1267 = vadd.f32 %v1243, %v1259
        %v1268 = vadd.f32 %v1244, %v1260
        %1269 = vst [vmem:[#allocation3] sm:$0xff] %v1245
        %1270 = vst [vmem:[#allocation3 + $0x8] sm:$0xff] %v1246
        %1271 = vst [vmem:[#allocation3 + $0x10] sm:$0xff] %v1247
        %1272 = vst [vmem:[#allocation3 + $0x18] sm:$0xff] %v1248
        %1273 = vst [vmem:[#allocation3 + $0x20] sm:$0xff] %v1249
        %1274 = vst [vmem:[#allocation3 + $0x28] sm:$0xff] %v1250
        %1275 = vst [vmem:[#allocation3 + $0x30] sm:$0xff] %v1251
        %1276 = vst [vmem:[#allocation3 + $0x38] sm:$0xff] %v1252
        %1277 = vst [vmem:[#allocation4] sm:$0xff] %v1261
        %1278 = vst [vmem:[#allocation4 + $0x8] sm:$0xff] %v1262
        %1279 = vst [vmem:[#allocation4 + $0x10] sm:$0xff] %v1263
        %1280 = vst [vmem:[#allocation4 + $0x18] sm:$0xff] %v1264
        %1281 = vst [vmem:[#allocation4 + $0x20] sm:$0xff] %v1265
        %1282 = vst [vmem:[#allocation4 + $0x28] sm:$0xff] %v1266
        %1283 = vst [vmem:[#allocation4 + $0x30] sm:$0xff] %v1267
        %1284 = vst [vmem:[#allocation4 + $0x38] sm:$0xff] %v1268
      $region44: #{depthnet_forward.7} parent=35 // pred_fallthru
        _
      %p1285 = scmp.eq.s32.totalorder %s19, 1
      %p1286 = pnand %p1285, %p229
      %p1287 = pneg %p1286
      // Predicated region
      $region45: #{depthnet_forward.7} parent=35 // pred_check
        _
      $region46: #{depthnet_forward.7} parent=35 // pred_check_branch
        %1289 = sbr.rel (%p1286) target = $region48
      $region47: #{depthnet_forward.7} parent=35 // pred_region
        %v1290 = vld [vmem:[#allocation3] sm:$0xff]
        %v1291 = vld [vmem:[#allocation3 + $0x8] sm:$0xff]
        %v1292 = vld [vmem:[#allocation3 + $0x10] sm:$0xff]
        %v1293 = vld [vmem:[#allocation3 + $0x18] sm:$0xff]
        %v1294 = vld [vmem:[#allocation3 + $0x20] sm:$0xff]
        %v1295 = vld [vmem:[#allocation3 + $0x28] sm:$0xff]
        %v1296 = vld [vmem:[#allocation3 + $0x30] sm:$0xff]
        %v1297 = vld [vmem:[#allocation3 + $0x38] sm:$0xff]
        %1298 = vadd.xlane.f32.xlu0 %v1290
        %v1299 = vpop.xlane.xlu0 %1298
        %1300 = vadd.xlane.f32.xlu0 %v1291
        %v1301 = vpop.xlane.xlu0 %1300
        %1302 = vadd.xlane.f32.xlu0 %v1292
        %v1303 = vpop.xlane.xlu0 %1302
        %1304 = vadd.xlane.f32.xlu0 %v1293
        %v1305 = vpop.xlane.xlu0 %1304
        %1306 = vadd.xlane.f32.xlu0 %v1294
        %v1307 = vpop.xlane.xlu0 %1306
        %1308 = vadd.xlane.f32.xlu0 %v1295
        %v1309 = vpop.xlane.xlu0 %1308
        %1310 = vadd.xlane.f32.xlu0 %v1296
        %v1311 = vpop.xlane.xlu0 %1310
        %1312 = vadd.xlane.f32.xlu0 %v1297
        %v1313 = vpop.xlane.xlu0 %1312
        %v1314 = vmul.f32 %v1299, 0.125
        %v1315 = vmul.f32 %v1301, 0.125
        %v1316 = vmul.f32 %v1303, 0.125
        %v1317 = vmul.f32 %v1305, 0.125
        %v1318 = vmul.f32 %v1307, 0.125
        %v1319 = vmul.f32 %v1309, 0.125
        %v1320 = vmul.f32 %v1311, 0.125
        %v1321 = vmul.f32 %v1313, 0.125
        %v1322 = vld [vmem:[#allocation4] sm:$0xff]
        %v1323 = vld [vmem:[#allocation4 + $0x8] sm:$0xff]
        %v1324 = vld [vmem:[#allocation4 + $0x10] sm:$0xff]
        %v1325 = vld [vmem:[#allocation4 + $0x18] sm:$0xff]
        %v1326 = vld [vmem:[#allocation4 + $0x20] sm:$0xff]
        %v1327 = vld [vmem:[#allocation4 + $0x28] sm:$0xff]
        %v1328 = vld [vmem:[#allocation4 + $0x30] sm:$0xff]
        %v1329 = vld [vmem:[#allocation4 + $0x38] sm:$0xff]
        %1330 = vadd.xlane.f32.xlu0 %v1322
        %v1331 = vpop.xlane.xlu0 %1330
        %1332 = vadd.xlane.f32.xlu0 %v1323
        %v1333 = vpop.xlane.xlu0 %1332
        %1334 = vadd.xlane.f32.xlu0 %v1324
        %v1335 = vpop.xlane.xlu0 %1334
        %1336 = vadd.xlane.f32.xlu0 %v1325
        %v1337 = vpop.xlane.xlu0 %1336
        %1338 = vadd.xlane.f32.xlu0 %v1326
        %v1339 = vpop.xlane.xlu0 %1338
        %1340 = vadd.xlane.f32.xlu0 %v1327
        %v1341 = vpop.xlane.xlu0 %1340
        %1342 = vadd.xlane.f32.xlu0 %v1328
        %v1343 = vpop.xlane.xlu0 %1342
        %1344 = vadd.xlane.f32.xlu0 %v1329
        %v1345 = vpop.xlane.xlu0 %1344
        %v1346 = vmul.f32 %v1331, 0.125
        %v1347 = vmul.f32 %v1333, 0.125
        %v1348 = vmul.f32 %v1335, 0.125
        %v1349 = vmul.f32 %v1337, 0.125
        %v1350 = vmul.f32 %v1339, 0.125
        %v1351 = vmul.f32 %v1341, 0.125
        %v1352 = vmul.f32 %v1343, 0.125
        %v1353 = vmul.f32 %v1345, 0.125
        %v1354 = vmul.f32 %v1314, %v1314
        %v1355 = vmul.f32 %v1315, %v1315
        %v1356 = vmul.f32 %v1316, %v1316
        %v1357 = vmul.f32 %v1317, %v1317
        %v1358 = vmul.f32 %v1318, %v1318
        %v1359 = vmul.f32 %v1319, %v1319
        %v1360 = vmul.f32 %v1320, %v1320
        %v1361 = vmul.f32 %v1321, %v1321
        %v1362 = vsub.f32 %v1346, %v1354
        %v1363 = vsub.f32 %v1347, %v1355
        %v1364 = vsub.f32 %v1348, %v1356
        %v1365 = vsub.f32 %v1349, %v1357
        %v1366 = vsub.f32 %v1350, %v1358
        %v1367 = vsub.f32 %v1351, %v1359
        %v1368 = vsub.f32 %v1352, %v1360
        %v1369 = vsub.f32 %v1353, %v1361
        %v1370 = vmax.f32 %v1362, 0.0
        %v1371 = vmax.f32 %v1363, 0.0
        %v1372 = vmax.f32 %v1364, 0.0
        %v1373 = vmax.f32 %v1365, 0.0
        %v1374 = vmax.f32 %v1366, 0.0
        %v1375 = vmax.f32 %v1367, 0.0
        %v1376 = vmax.f32 %v1368, 0.0
        %v1377 = vmax.f32 %v1369, 0.0
        %v1378 = vld [vmem:[%s2] sm:$0xff]
        %v1379 = vld [vmem:[%s2 + $0x8] sm:$0xff]
        %v1380 = vld [vmem:[%s2 + $0x10] sm:$0xff]
        %v1381 = vld [vmem:[%s2 + $0x18] sm:$0xff]
        %v1382 = vld [vmem:[%s2 + $0x20] sm:$0xff]
        %v1383 = vld [vmem:[%s2 + $0x28] sm:$0xff]
        %v1384 = vld [vmem:[%s2 + $0x30] sm:$0xff]
        %v1385 = vld [vmem:[%s2 + $0x38] sm:$0xff]
        %v1386 = vadd.f32 %v1370, 1e-05
        %v1387 = vadd.f32 %v1371, 1e-05
        %v1388 = vadd.f32 %v1372, 1e-05
        %v1389 = vadd.f32 %v1373, 1e-05
        %v1390 = vadd.f32 %v1374, 1e-05
        %v1391 = vadd.f32 %v1375, 1e-05
        %v1392 = vadd.f32 %v1376, 1e-05
        %v1393 = vadd.f32 %v1377, 1e-05
        %v1394 = vrsqrt.pop %v1386
        %v1395 = vmul.f32 %v1394, %v1386
        %v1396 = vmul.f32 %v1395, %v1394
        %v1397 = vmul.f32 0.5, %v1396
        %v1398 = vsub.f32 1.5, %v1397
        %v1399 = vmul.f32 %v1394, %v1398
        %vm1400 = vweird.f32 %v1386
        %vm1401 = vweird.f32 %v1394
        %vm1402 = vmor %vm1400, %vm1401
        %v1403 = vsel %vm1402, %v1394, %v1399
        %v1404 = vrsqrt.pop %v1387
        %v1405 = vmul.f32 %v1404, %v1387
        %v1406 = vmul.f32 %v1405, %v1404
        %v1407 = vmul.f32 0.5, %v1406
        %v1408 = vsub.f32 1.5, %v1407
        %v1409 = vmul.f32 %v1404, %v1408
        %vm1410 = vweird.f32 %v1387
        %vm1411 = vweird.f32 %v1404
        %vm1412 = vmor %vm1410, %vm1411
        %v1413 = vsel %vm1412, %v1404, %v1409
        %v1414 = vrsqrt.pop %v1388
        %v1415 = vmul.f32 %v1414, %v1388
        %v1416 = vmul.f32 %v1415, %v1414
        %v1417 = vmul.f32 0.5, %v1416
        %v1418 = vsub.f32 1.5, %v1417
        %v1419 = vmul.f32 %v1414, %v1418
        %vm1420 = vweird.f32 %v1388
        %vm1421 = vweird.f32 %v1414
        %vm1422 = vmor %vm1420, %vm1421
        %v1423 = vsel %vm1422, %v1414, %v1419
        %v1424 = vrsqrt.pop %v1389
        %v1425 = vmul.f32 %v1424, %v1389
        %v1426 = vmul.f32 %v1425, %v1424
        %v1427 = vmul.f32 0.5, %v1426
        %v1428 = vsub.f32 1.5, %v1427
        %v1429 = vmul.f32 %v1424, %v1428
        %vm1430 = vweird.f32 %v1389
        %vm1431 = vweird.f32 %v1424
        %vm1432 = vmor %vm1430, %vm1431
        %v1433 = vsel %vm1432, %v1424, %v1429
        %v1434 = vrsqrt.pop %v1390
        %v1435 = vmul.f32 %v1434, %v1390
        %v1436 = vmul.f32 %v1435, %v1434
        %v1437 = vmul.f32 0.5, %v1436
        %v1438 = vsub.f32 1.5, %v1437
        %v1439 = vmul.f32 %v1434, %v1438
        %vm1440 = vweird.f32 %v1390
        %vm1441 = vweird.f32 %v1434
        %vm1442 = vmor %vm1440, %vm1441
        %v1443 = vsel %vm1442, %v1434, %v1439
        %v1444 = vrsqrt.pop %v1391
        %v1445 = vmul.f32 %v1444, %v1391
        %v1446 = vmul.f32 %v1445, %v1444
        %v1447 = vmul.f32 0.5, %v1446
        %v1448 = vsub.f32 1.5, %v1447
        %v1449 = vmul.f32 %v1444, %v1448
        %vm1450 = vweird.f32 %v1391
        %vm1451 = vweird.f32 %v1444
        %vm1452 = vmor %vm1450, %vm1451
        %v1453 = vsel %vm1452, %v1444, %v1449
        %v1454 = vrsqrt.pop %v1392
        %v1455 = vmul.f32 %v1454, %v1392
        %v1456 = vmul.f32 %v1455, %v1454
        %v1457 = vmul.f32 0.5, %v1456
        %v1458 = vsub.f32 1.5, %v1457
        %v1459 = vmul.f32 %v1454, %v1458
        %vm1460 = vweird.f32 %v1392
        %vm1461 = vweird.f32 %v1454
        %vm1462 = vmor %vm1460, %vm1461
        %v1463 = vsel %vm1462, %v1454, %v1459
        %v1464 = vrsqrt.pop %v1393
        %v1465 = vmul.f32 %v1464, %v1393
        %v1466 = vmul.f32 %v1465, %v1464
        %v1467 = vmul.f32 0.5, %v1466
        %v1468 = vsub.f32 1.5, %v1467
        %v1469 = vmul.f32 %v1464, %v1468
        %vm1470 = vweird.f32 %v1393
        %vm1471 = vweird.f32 %v1464
        %vm1472 = vmor %vm1470, %vm1471
        %v1473 = vsel %vm1472, %v1464, %v1469
        %v1474 = vmul.f32 %v1378, %v1403
        %v1475 = vmul.f32 %v1379, %v1413
        %v1476 = vmul.f32 %v1380, %v1423
        %v1477 = vmul.f32 %v1381, %v1433
        %v1478 = vmul.f32 %v1382, %v1443
        %v1479 = vmul.f32 %v1383, %v1453
        %v1480 = vmul.f32 %v1384, %v1463
        %v1481 = vmul.f32 %v1385, %v1473
        %vm1482 = vcmask 7168
        %1483 = vst.msk [vmem:[#allocation5] sm:$0xff] %vm1482, %v1474
        %1484 = vst.msk [vmem:[#allocation5 + $0x8] sm:$0xff] %vm1482, %v1475
        %1485 = vst.msk [vmem:[#allocation5 + $0x10] sm:$0xff] %vm1482, %v1476
        %1486 = vst.msk [vmem:[#allocation5 + $0x18] sm:$0xff] %vm1482, %v1477
        %1487 = vst.msk [vmem:[#allocation5 + $0x20] sm:$0xff] %vm1482, %v1478
        %1488 = vst.msk [vmem:[#allocation5 + $0x28] sm:$0xff] %vm1482, %v1479
        %1489 = vst.msk [vmem:[#allocation5 + $0x30] sm:$0xff] %vm1482, %v1480
        %1490 = vst.msk [vmem:[#allocation5 + $0x38] sm:$0xff] %vm1482, %v1481
        %v1491 = vld [vmem:[%s3] sm:$0xff]
        %v1492 = vld [vmem:[%s3 + $0x8] sm:$0xff]
        %v1493 = vld [vmem:[%s3 + $0x10] sm:$0xff]
        %v1494 = vld [vmem:[%s3 + $0x18] sm:$0xff]
        %v1495 = vld [vmem:[%s3 + $0x20] sm:$0xff]
        %v1496 = vld [vmem:[%s3 + $0x28] sm:$0xff]
        %v1497 = vld [vmem:[%s3 + $0x30] sm:$0xff]
        %v1498 = vld [vmem:[%s3 + $0x38] sm:$0xff]
        %v1499 = vmul.f32 %v1314, %v1474
        %v1500 = vmul.f32 %v1315, %v1475
        %v1501 = vmul.f32 %v1316, %v1476
        %v1502 = vmul.f32 %v1317, %v1477
        %v1503 = vmul.f32 %v1318, %v1478
        %v1504 = vmul.f32 %v1319, %v1479
        %v1505 = vmul.f32 %v1320, %v1480
        %v1506 = vmul.f32 %v1321, %v1481
        %v1507 = vsub.f32 %v1491, %v1499
        %v1508 = vsub.f32 %v1492, %v1500
        %v1509 = vsub.f32 %v1493, %v1501
        %v1510 = vsub.f32 %v1494, %v1502
        %v1511 = vsub.f32 %v1495, %v1503
        %v1512 = vsub.f32 %v1496, %v1504
        %v1513 = vsub.f32 %v1497, %v1505
        %v1514 = vsub.f32 %v1498, %v1506
        %1515 = vst.msk [vmem:[#allocation6] sm:$0xff] %vm1482, %v1507
        %1516 = vst.msk [vmem:[#allocation6 + $0x8] sm:$0xff] %vm1482, %v1508
        %1517 = vst.msk [vmem:[#allocation6 + $0x10] sm:$0xff] %vm1482, %v1509
        %1518 = vst.msk [vmem:[#allocation6 + $0x18] sm:$0xff] %vm1482, %v1510
        %1519 = vst.msk [vmem:[#allocation6 + $0x20] sm:$0xff] %vm1482, %v1511
        %1520 = vst.msk [vmem:[#allocation6 + $0x28] sm:$0xff] %vm1482, %v1512
        %1521 = vst.msk [vmem:[#allocation6 + $0x30] sm:$0xff] %vm1482, %v1513
        %1522 = vst.msk [vmem:[#allocation6 + $0x38] sm:$0xff] %vm1482, %v1514
      $region48: #{depthnet_forward.7} parent=35 // pred_fallthru
        _
      // Predicated region
      $region49: #{depthnet_forward.7} parent=35 // pred_check
        %p1523 = pneg %p1285
      $region50: #{depthnet_forward.7} parent=35 // pred_check_branch
        %1525 = sbr.rel (%p1523) target = $region52
      $region51: #{depthnet_forward.7} parent=35 // pred_region
        %s1526 = smul.u32 %s20, 32
        %s1527 = smul.addr %s1526, 8
        %s1528 = scalar_lea.vmem [#allocation2], %s1527
        %v1529 = vld [vmem:[%s1528] sm:$0xff]
        %v1530 = vld [vmem:[%s1528 + $0x8] sm:$0xff]
        %v1531 = vld [vmem:[%s1528 + $0x10] sm:$0xff]
        %v1532 = vld [vmem:[%s1528 + $0x18] sm:$0xff]
        %v1533 = vld [vmem:[%s1528 + $0x20] sm:$0xff]
        %v1534 = vld [vmem:[%s1528 + $0x28] sm:$0xff]
        %v1535 = vld [vmem:[%s1528 + $0x30] sm:$0xff]
        %v1536 = vld [vmem:[%s1528 + $0x38] sm:$0xff]
        %v1537 = vld [vmem:[%s1528 + $0x40] sm:$0xff]
        %v1538 = vld [vmem:[%s1528 + $0x48] sm:$0xff]
        %v1539 = vld [vmem:[%s1528 + $0x50] sm:$0xff]
        %v1540 = vld [vmem:[%s1528 + $0x58] sm:$0xff]
        %v1541 = vld [vmem:[%s1528 + $0x60] sm:$0xff]
        %v1542 = vld [vmem:[%s1528 + $0x68] sm:$0xff]
        %v1543 = vld [vmem:[%s1528 + $0x70] sm:$0xff]
        %v1544 = vld [vmem:[%s1528 + $0x78] sm:$0xff]
        %v1545 = vld [vmem:[%s1528 + $0x80] sm:$0xff]
        %v1546 = vld [vmem:[%s1528 + $0x88] sm:$0xff]
        %v1547 = vld [vmem:[%s1528 + $0x90] sm:$0xff]
        %v1548 = vld [vmem:[%s1528 + $0x98] sm:$0xff]
        %v1549 = vld [vmem:[%s1528 + $0xa0] sm:$0xff]
        %v1550 = vld [vmem:[%s1528 + $0xa8] sm:$0xff]
        %v1551 = vld [vmem:[%s1528 + $0xb0] sm:$0xff]
        %v1552 = vld [vmem:[%s1528 + $0xb8] sm:$0xff]
        %v1553 = vld [vmem:[%s1528 + $0xc0] sm:$0xff]
        %v1554 = vld [vmem:[%s1528 + $0xc8] sm:$0xff]
        %v1555 = vld [vmem:[%s1528 + $0xd0] sm:$0xff]
        %v1556 = vld [vmem:[%s1528 + $0xd8] sm:$0xff]
        %v1557 = vld [vmem:[%s1528 + $0xe0] sm:$0xff]
        %v1558 = vld [vmem:[%s1528 + $0xe8] sm:$0xff]
        %v1559 = vld [vmem:[%s1528 + $0xf0] sm:$0xff]
        %v1560 = vld [vmem:[%s1528 + $0xf8] sm:$0xff]
        %v1561 = vld [vmem:[#allocation5] sm:$0xff]
        %v1562 = vld [vmem:[#allocation5 + $0x8] sm:$0xff]
        %v1563 = vld [vmem:[#allocation5 + $0x10] sm:$0xff]
        %v1564 = vld [vmem:[#allocation5 + $0x18] sm:$0xff]
        %v1565 = vld [vmem:[#allocation5 + $0x20] sm:$0xff]
        %v1566 = vld [vmem:[#allocation5 + $0x28] sm:$0xff]
        %v1567 = vld [vmem:[#allocation5 + $0x30] sm:$0xff]
        %v1568 = vld [vmem:[#allocation5 + $0x38] sm:$0xff]
        %v1569 = vld [vmem:[#allocation6] sm:$0xff]
        %v1570 = vld [vmem:[#allocation6 + $0x8] sm:$0xff]
        %v1571 = vld [vmem:[#allocation6 + $0x10] sm:$0xff]
        %v1572 = vld [vmem:[#allocation6 + $0x18] sm:$0xff]
        %v1573 = vld [vmem:[#allocation6 + $0x20] sm:$0xff]
        %v1574 = vld [vmem:[#allocation6 + $0x28] sm:$0xff]
        %v1575 = vld [vmem:[#allocation6 + $0x30] sm:$0xff]
        %v1576 = vld [vmem:[#allocation6 + $0x38] sm:$0xff]
        %1578 = vset.pattern.permute.xlu0 0
        %1579 = vperm.xlu0 %1578, %v1561
        %v1580 = vpop.permute.xlu0 %1579
        %1583 = vset.pattern.permute.xlu0 0
        %1584 = vperm.xlu0 %1583, %v1562
        %v1585 = vpop.permute.xlu0 %1584
        %1588 = vset.pattern.permute.xlu0 0
        %1589 = vperm.xlu0 %1588, %v1563
        %v1590 = vpop.permute.xlu0 %1589
        %1593 = vset.pattern.permute.xlu0 0
        %1594 = vperm.xlu0 %1593, %v1564
        %v1595 = vpop.permute.xlu0 %1594
        %1598 = vset.pattern.permute.xlu0 0
        %1599 = vperm.xlu0 %1598, %v1565
        %v1600 = vpop.permute.xlu0 %1599
        %1603 = vset.pattern.permute.xlu0 0
        %1604 = vperm.xlu0 %1603, %v1566
        %v1605 = vpop.permute.xlu0 %1604
        %1608 = vset.pattern.permute.xlu0 0
        %1609 = vperm.xlu0 %1608, %v1567
        %v1610 = vpop.permute.xlu0 %1609
        %1613 = vset.pattern.permute.xlu0 0
        %1614 = vperm.xlu0 %1613, %v1568
        %v1615 = vpop.permute.xlu0 %1614
        %v1617 = vmul.f32 %v1529, %v1580
        %v1618 = vmul.f32 %v1533, %v1585
        %v1619 = vmul.f32 %v1537, %v1590
        %v1620 = vmul.f32 %v1541, %v1595
        %v1621 = vmul.f32 %v1545, %v1600
        %v1622 = vmul.f32 %v1549, %v1605
        %v1623 = vmul.f32 %v1553, %v1610
        %v1624 = vmul.f32 %v1557, %v1615
        %1626 = vset.pattern.permute.xlu0 0
        %1627 = vperm.xlu0 %1626, %v1569
        %v1628 = vpop.permute.xlu0 %1627
        %1631 = vset.pattern.permute.xlu0 0
        %1632 = vperm.xlu0 %1631, %v1570
        %v1633 = vpop.permute.xlu0 %1632
        %1636 = vset.pattern.permute.xlu0 0
        %1637 = vperm.xlu0 %1636, %v1571
        %v1638 = vpop.permute.xlu0 %1637
        %1641 = vset.pattern.permute.xlu0 0
        %1642 = vperm.xlu0 %1641, %v1572
        %v1643 = vpop.permute.xlu0 %1642
        %1646 = vset.pattern.permute.xlu0 0
        %1647 = vperm.xlu0 %1646, %v1573
        %v1648 = vpop.permute.xlu0 %1647
        %1651 = vset.pattern.permute.xlu0 0
        %1652 = vperm.xlu0 %1651, %v1574
        %v1653 = vpop.permute.xlu0 %1652
        %1656 = vset.pattern.permute.xlu0 0
        %1657 = vperm.xlu0 %1656, %v1575
        %v1658 = vpop.permute.xlu0 %1657
        %1661 = vset.pattern.permute.xlu0 0
        %1662 = vperm.xlu0 %1661, %v1576
        %v1663 = vpop.permute.xlu0 %1662
        %v1665 = vadd.f32 %v1617, %v1628
        %v1666 = vadd.f32 %v1618, %v1633
        %v1667 = vadd.f32 %v1619, %v1638
        %v1668 = vadd.f32 %v1620, %v1643
        %v1669 = vadd.f32 %v1621, %v1648
        %v1670 = vadd.f32 %v1622, %v1653
        %v1671 = vadd.f32 %v1623, %v1658
        %v1672 = vadd.f32 %v1624, %v1663
        %v1673 = vmax.f32 %v1665, 0.0
        %v1674 = vmax.f32 %v1666, 0.0
        %v1675 = vmax.f32 %v1667, 0.0
        %v1676 = vmax.f32 %v1668, 0.0
        %v1677 = vmax.f32 %v1669, 0.0
        %v1678 = vmax.f32 %v1670, 0.0
        %v1679 = vmax.f32 %v1671, 0.0
        %v1680 = vmax.f32 %v1672, 0.0
        %v1681 = vmul.f32 %v1530, %v1580
        %v1682 = vmul.f32 %v1534, %v1585
        %v1683 = vmul.f32 %v1538, %v1590
        %v1684 = vmul.f32 %v1542, %v1595
        %v1685 = vmul.f32 %v1546, %v1600
        %v1686 = vmul.f32 %v1550, %v1605
        %v1687 = vmul.f32 %v1554, %v1610
        %v1688 = vmul.f32 %v1558, %v1615
        %v1689 = vadd.f32 %v1681, %v1628
        %v1690 = vadd.f32 %v1682, %v1633
        %v1691 = vadd.f32 %v1683, %v1638
        %v1692 = vadd.f32 %v1684, %v1643
        %v1693 = vadd.f32 %v1685, %v1648
        %v1694 = vadd.f32 %v1686, %v1653
        %v1695 = vadd.f32 %v1687, %v1658
        %v1696 = vadd.f32 %v1688, %v1663
        %v1697 = vmax.f32 %v1689, 0.0
        %v1698 = vmax.f32 %v1690, 0.0
        %v1699 = vmax.f32 %v1691, 0.0
        %v1700 = vmax.f32 %v1692, 0.0
        %v1701 = vmax.f32 %v1693, 0.0
        %v1702 = vmax.f32 %v1694, 0.0
        %v1703 = vmax.f32 %v1695, 0.0
        %v1704 = vmax.f32 %v1696, 0.0
        %v1705 = vmax.f32 %v1673, %v1697
        %v1706 = vmax.f32 %v1674, %v1698
        %v1707 = vmax.f32 %v1675, %v1699
        %v1708 = vmax.f32 %v1676, %v1700
        %v1709 = vmax.f32 %v1677, %v1701
        %v1710 = vmax.f32 %v1678, %v1702
        %v1711 = vmax.f32 %v1679, %v1703
        %v1712 = vmax.f32 %v1680, %v1704
        %v1713 = vadd.f32 %v1673, %v1697
        %v1714 = vadd.f32 %v1674, %v1698
        %v1715 = vadd.f32 %v1675, %v1699
        %v1716 = vadd.f32 %v1676, %v1700
        %v1717 = vadd.f32 %v1677, %v1701
        %v1718 = vadd.f32 %v1678, %v1702
        %v1719 = vadd.f32 %v1679, %v1703
        %v1720 = vadd.f32 %v1680, %v1704
        %v1721 = vmul.f32 %v1531, %v1580
        %v1722 = vmul.f32 %v1535, %v1585
        %v1723 = vmul.f32 %v1539, %v1590
        %v1724 = vmul.f32 %v1543, %v1595
        %v1725 = vmul.f32 %v1547, %v1600
        %v1726 = vmul.f32 %v1551, %v1605
        %v1727 = vmul.f32 %v1555, %v1610
        %v1728 = vmul.f32 %v1559, %v1615
        %v1729 = vadd.f32 %v1721, %v1628
        %v1730 = vadd.f32 %v1722, %v1633
        %v1731 = vadd.f32 %v1723, %v1638
        %v1732 = vadd.f32 %v1724, %v1643
        %v1733 = vadd.f32 %v1725, %v1648
        %v1734 = vadd.f32 %v1726, %v1653
        %v1735 = vadd.f32 %v1727, %v1658
        %v1736 = vadd.f32 %v1728, %v1663
        %v1737 = vmax.f32 %v1729, 0.0
        %v1738 = vmax.f32 %v1730, 0.0
        %v1739 = vmax.f32 %v1731, 0.0
        %v1740 = vmax.f32 %v1732, 0.0
        %v1741 = vmax.f32 %v1733, 0.0
        %v1742 = vmax.f32 %v1734, 0.0
        %v1743 = vmax.f32 %v1735, 0.0
        %v1744 = vmax.f32 %v1736, 0.0
        %v1745 = vmax.f32 %v1705, %v1737
        %v1746 = vmax.f32 %v1706, %v1738
        %v1747 = vmax.f32 %v1707, %v1739
        %v1748 = vmax.f32 %v1708, %v1740
        %v1749 = vmax.f32 %v1709, %v1741
        %v1750 = vmax.f32 %v1710, %v1742
        %v1751 = vmax.f32 %v1711, %v1743
        %v1752 = vmax.f32 %v1712, %v1744
        %v1753 = vadd.f32 %v1713, %v1737
        %v1754 = vadd.f32 %v1714, %v1738
        %v1755 = vadd.f32 %v1715, %v1739
        %v1756 = vadd.f32 %v1716, %v1740
        %v1757 = vadd.f32 %v1717, %v1741
        %v1758 = vadd.f32 %v1718, %v1742
        %v1759 = vadd.f32 %v1719, %v1743
        %v1760 = vadd.f32 %v1720, %v1744
        %v1761 = vmul.f32 %v1532, %v1580
        %v1762 = vmul.f32 %v1536, %v1585
        %v1763 = vmul.f32 %v1540, %v1590
        %v1764 = vmul.f32 %v1544, %v1595
        %v1765 = vmul.f32 %v1548, %v1600
        %v1766 = vmul.f32 %v1552, %v1605
        %v1767 = vmul.f32 %v1556, %v1610
        %v1768 = vmul.f32 %v1560, %v1615
        %v1769 = vadd.f32 %v1761, %v1628
        %v1770 = vadd.f32 %v1762, %v1633
        %v1771 = vadd.f32 %v1763, %v1638
        %v1772 = vadd.f32 %v1764, %v1643
        %v1773 = vadd.f32 %v1765, %v1648
        %v1774 = vadd.f32 %v1766, %v1653
        %v1775 = vadd.f32 %v1767, %v1658
        %v1776 = vadd.f32 %v1768, %v1663
        %v1777 = vmax.f32 %v1769, 0.0
        %v1778 = vmax.f32 %v1770, 0.0
        %v1779 = vmax.f32 %v1771, 0.0
        %v1780 = vmax.f32 %v1772, 0.0
        %v1781 = vmax.f32 %v1773, 0.0
        %v1782 = vmax.f32 %v1774, 0.0
        %v1783 = vmax.f32 %v1775, 0.0
        %v1784 = vmax.f32 %v1776, 0.0
        %v1785 = vmax.f32 %v1745, %v1777
        %v1786 = vmax.f32 %v1746, %v1778
        %v1787 = vmax.f32 %v1747, %v1779
        %v1788 = vmax.f32 %v1748, %v1780
        %v1789 = vmax.f32 %v1749, %v1781
        %v1790 = vmax.f32 %v1750, %v1782
        %v1791 = vmax.f32 %v1751, %v1783
        %v1792 = vmax.f32 %v1752, %v1784
        %v1793 = vadd.f32 %v1753, %v1777
        %v1794 = vadd.f32 %v1754, %v1778
        %v1795 = vadd.f32 %v1755, %v1779
        %v1796 = vadd.f32 %v1756, %v1780
        %v1797 = vadd.f32 %v1757, %v1781
        %v1798 = vadd.f32 %v1758, %v1782
        %v1799 = vadd.f32 %v1759, %v1783
        %v1800 = vadd.f32 %v1760, %v1784
        %v1801 = vmul.f32 %v1793, 0.25
        %v1802 = vmul.f32 %v1794, 0.25
        %v1803 = vmul.f32 %v1795, 0.25
        %v1804 = vmul.f32 %v1796, 0.25
        %v1805 = vmul.f32 %v1797, 0.25
        %v1806 = vmul.f32 %v1798, 0.25
        %v1807 = vmul.f32 %v1799, 0.25
        %v1808 = vmul.f32 %v1800, 0.25
        %v1809 = vadd.f32 %v1785, %v1801
        %v1810 = vadd.f32 %v1786, %v1802
        %v1811 = vadd.f32 %v1787, %v1803
        %v1812 = vadd.f32 %v1788, %v1804
        %v1813 = vadd.f32 %v1789, %v1805
        %v1814 = vadd.f32 %v1790, %v1806
        %v1815 = vadd.f32 %v1791, %v1807
        %v1816 = vadd.f32 %v1792, %v1808
        %1817 = vst [vmem:[%s225] sm:$0xff] %v1809
        %1818 = vst [vmem:[%s225 + $0x8] sm:$0xff] %v1810
        %1819 = vst [vmem:[%s225 + $0x10] sm:$0xff] %v1811
        %1820 = vst [vmem:[%s225 + $0x18] sm:$0xff] %v1812
        %1821 = vst [vmem:[%s225 + $0x20] sm:$0xff] %v1813
        %1822 = vst [vmem:[%s225 + $0x28] sm:$0xff] %v1814
        %1823 = vst [vmem:[%s225 + $0x30] sm:$0xff] %v1815
        %1824 = vst [vmem:[%s225 + $0x38] sm:$0xff] %v1816
      $region52: #{depthnet_forward.7} parent=35 // pred_fallthru
        _
      %s1825 = smul.u32 %s19, %s20
      %p1826 = scmp.lt.s32.totalorder %s1825, 0
      %s1827 = scalar_select %p1826, %s1825, 0
      %s1828 = smul.addr %s1827, 8
      %s1829 = scalar_lea.vmem %s4, %s1828
      // Predicated region
      $region53: #{depthnet_forward.7} parent=35 // pred_check
        %p1830 = pneg %p140
      $region54: #{depthnet_forward.7} parent=35 // pred_check_branch
        %1832 = sbr.rel (%p1830) target = $region56
      $region55: #{depthnet_forward.7} parent=35 // pred_region
        %s1833 = smul.u32 %s19, %s20
      $region56: #{depthnet_forward.7} parent=35 // pred_fallthru
        _
    $region36: #{depthnet_forward.7} parent=5 // pred_fallthru
      _
    %p1834 = scmp.le.s32.totalorder 2, %s10
    // Predicated region
    $region57: #{depthnet_forward.7} parent=5 // pred_check
      %p1835 = pneg %p1834
    $region58: #{depthnet_forward.7} parent=5 // pred_check_branch
      %1837 = sbr.rel (%p1835) target = $region60
    $region59: #{depthnet_forward.7} parent=5 // pred_region
      %s1838 = ssub.s32 %s10, 2
      // Predicated region
      $region61: #{depthnet_forward.7} parent=59 // pred_check
        %p1839 = pneg %p146
      $region62: #{depthnet_forward.7} parent=59 // pred_check_branch
        %1841 = sbr.rel (%p1839) target = $region64
      $region63: #{depthnet_forward.7} parent=59 // pred_region
        %s1842 = smul.u32 %s21, %s22
        %p1843 = scmp.lt.s32.totalorder %s1842, 0
        %s1844 = scalar_select %p1843, %s1842, 0
        %s1845 = smul.addr %s1844, 8
        %s1846 = scalar_lea.vmem %s4, %s1845
      $region64: #{depthnet_forward.7} parent=59 // pred_fallthru
        _
    $region60: #{depthnet_forward.7} parent=5 // pred_fallthru
      _
  $region6: #{depthnet_forward.7} parent=0 // loop_footer
    %s14 = sadd.s32 1, %s10
  $region7: #{depthnet_forward.7} parent=0 // loop_footer_branch
    %9 = sbr.rel target = $region3
  $region8: #{depthnet_forward.7} parent=0 // loop_exit
    _

</llo_original>
